<compile_context>
chip_gen: v5e
topology: v5e:2x2
jax: 0.10.0
libtpu: 0.0.40
codegen_flags: <defaults>
</compile_context>

<pallas_src>
import math

import jax
import jax.numpy as jnp
from jax import lax
from jax.experimental import pallas as pl
from jax.experimental.pallas import tpu as pltpu

# ---------------------------------------------------------------------------
# Tiny deterministic stand-in for the Qwen2.5-0.5B config
# ---------------------------------------------------------------------------
BATCH = 2
SEQ = 8
VOCAB = 256
DIM = 128
N_LAYERS = 2
N_HEADS = 4
N_KV_HEADS = 2
HEAD_DIM = DIM // N_HEADS            # 32
N_REP = N_HEADS // N_KV_HEADS        # 2
Q_DIM = N_HEADS * HEAD_DIM           # 128
KV_DIM = N_KV_HEADS * HEAD_DIM       # 64
QKV_DIM = Q_DIM + 2 * KV_DIM         # 256
ROT_DIM = Q_DIM + KV_DIM             # 192 (pre-rotated Q|K columns)
PROJ_DIM = QKV_DIM + ROT_DIM         # 448 (fused projection width)
FFN_DIM = 256
FP8_BLOCK = 128                      # config.fp8_block_size (== DIM here)
ROPE_THETA = 1_000_000.0
RMS_EPS = 1e-6
FP8_MAX = 448.0                      # float8_e4m3fn max (matches act_quant)
VOCAB_TILE = 128


# ---------------------------------------------------------------------------
# Fused per-layer kernel:
#   RMSNorm -> QKV(+rot) matmul -> RoPE -> GQA causal attention -> per-head Wo
#   -> residual -> RMSNorm -> gate/up matmul -> SwiGLU -> down proj -> residual
# ---------------------------------------------------------------------------
def _layer_kernel(h_ref, anorm_ref, wproj_ref, bproj_ref, wo_ref,
                  fnorm_ref, wgu_ref, wdown_ref, cos_ref, sin_ref, o_ref):
    x = h_ref[...].astype(jnp.float32)                       # (B*S, D)
    bs = x.shape[0]
    S = SEQ
    B = bs // S

    # ---- attention RMSNorm ----
    var = jnp.mean(x * x, axis=-1, keepdims=True)
    a = (x * lax.rsqrt(var + RMS_EPS) * anorm_ref[...]).astype(jnp.bfloat16)

    # ---- fused QKV (+ pre-rotated Q|K) projection, bf16 x bf16 -> f32 ----
    proj = jnp.dot(a, wproj_ref[...], preferred_element_type=jnp.float32)
    proj = proj + bproj_ref[...]                              # (B*S, PROJ_DIM)
    qk = proj[:, :ROT_DIM]                                    # Q|K
    v = proj[:, ROT_DIM:QKV_DIM]                              # V
    rot = proj[:, QKV_DIM:]                                   # rotate_half(Q|K)

    # RoPE applied to the full Q|K slab in one shot (rotation folded into the
    # weight columns, so no per-head slicing / concatenation here).
    qk = qk * cos_ref[...] + rot * sin_ref[...]
    qk = qk.astype(jnp.bfloat16)                              # MXU operands
    v = v.astype(jnp.bfloat16)

    row = lax.broadcasted_iota(jnp.int32, (S, S), 0)
    col = lax.broadcasted_iota(jnp.int32, (S, S), 1)
    causal = col <= row
    scale = 1.0 / math.sqrt(HEAD_DIM)

    wo = wo_ref[...]                                          # (D, D) bf16

    attn_parts = []
    for b in range(B):                                        # static, B small
        qb = qk[b * S:(b + 1) * S, :Q_DIM]                    # (S, Q_DIM)
        kb = qk[b * S:(b + 1) * S, Q_DIM:]                    # (S, KV_DIM)
        vb = v[b * S:(b + 1) * S, :]                          # (S, KV_DIM)
        acc = jnp.zeros((S, DIM), jnp.float32)
        for g in range(N_KV_HEADS):                           # rope'd KV reused
            kg = kb[:, g * HEAD_DIM:(g + 1) * HEAD_DIM]
            vg = vb[:, g * HEAD_DIM:(g + 1) * HEAD_DIM]
            for r in range(N_REP):
                hh = g * N_REP + r
                qh = qb[:, hh * HEAD_DIM:(hh + 1) * HEAD_DIM]
                s = lax.dot_general(qh, kg, (((1,), (1,)), ((), ())),
                                    preferred_element_type=jnp.float32) * scale
                s = jnp.where(causal, s, -1e30)
                m = jnp.max(s, axis=-1, keepdims=True)
                p = jnp.exp(s - m)
                l = jnp.sum(p, axis=-1, keepdims=True)
                oh = jnp.dot(p.astype(jnp.bfloat16), vg,
                             preferred_element_type=jnp.float32)
                oh = (oh / l).astype(jnp.bfloat16)
                # per-head Wo accumulation (no head-output concat)
                acc = acc + jnp.dot(
                    oh, wo[hh * HEAD_DIM:(hh + 1) * HEAD_DIM, :],
                    preferred_element_type=jnp.float32)
        attn_parts.append(acc)
    attn = attn_parts[0] if B == 1 else jnp.concatenate(attn_parts, axis=0)
    h1 = x + attn                                             # residual (f32)

    # ---- MLP: RMSNorm + fused gate/up + SwiGLU + down proj + residual ----
    var1 = jnp.mean(h1 * h1, axis=-1, keepdims=True)
    m1 = (h1 * lax.rsqrt(var1 + RMS_EPS) * fnorm_ref[...]).astype(jnp.bfloat16)
    gu = jnp.dot(m1, wgu_ref[...], preferred_element_type=jnp.float32)
    g_ = gu[:, :FFN_DIM]
    u_ = gu[:, FFN_DIM:]
    # silu(g) = g * sigmoid(g); sigmoid via tanh keeps the work on the EUP slot
    act = (g_ * (0.5 * (jnp.tanh(0.5 * g_) + 1.0)) * u_).astype(jnp.bfloat16)
    down = jnp.dot(act, wdown_ref[...], preferred_element_type=jnp.float32)
    o_ref[...] = (h1 + down).astype(o_ref.dtype)


def layer_pallas(h, lp, cos, sin):
    BS, D = h.shape
    return pl.pallas_call(
        _layer_kernel,
        out_shape=jax.ShapeDtypeStruct((BS, D), h.dtype),
        grid=(1,),
        in_specs=[
            pl.BlockSpec((BS, D), lambda i: (0, 0)),
            pl.BlockSpec((1, D), lambda i: (0, 0)),
            pl.BlockSpec((D, PROJ_DIM), lambda i: (0, 0)),
            pl.BlockSpec((1, PROJ_DIM), lambda i: (0, 0)),
            pl.BlockSpec((D, D), lambda i: (0, 0)),
            pl.BlockSpec((1, D), lambda i: (0, 0)),
            pl.BlockSpec((D, 2 * FFN_DIM), lambda i: (0, 0)),
            pl.BlockSpec((FFN_DIM, D), lambda i: (0, 0)),
            pl.BlockSpec((BS, ROT_DIM), lambda i: (0, 0)),
            pl.BlockSpec((BS, ROT_DIM), lambda i: (0, 0)),
        ],
        out_specs=pl.BlockSpec((BS, D), lambda i: (0, 0)),
        compiler_params=pltpu.CompilerParams(
            dimension_semantics=("arbitrary",)),
    )(h, lp["attn_norm"], lp["wproj"], lp["bproj"], lp["wo"],
      lp["ffn_norm"], lp["w_gate_up"], lp["w_down"], cos, sin)


# ---------------------------------------------------------------------------
# Fused final-RMSNorm + lm_head + cross-entropy (online logsumexp over vocab)
# ---------------------------------------------------------------------------
def _lmhead_ce_kernel(labels_ref, h_ref, norm_ref, w_ref,
                      logits_ref, loss_ref, xn_sc, m_sc, l_sc, t_sc):
    j = pl.program_id(0)

    @pl.when(j == 0)
    def _():
        # final RMSNorm computed once, reused for every vocab tile
        x = h_ref[...].astype(jnp.float32)
        var = jnp.mean(x * x, axis=-1, keepdims=True)
        xn_sc[...] = (x * lax.rsqrt(var + RMS_EPS)
                      * norm_ref[...]).astype(jnp.bfloat16)
        m_sc[...] = jnp.full_like(m_sc, -1e30)
        l_sc[...] = jnp.zeros_like(l_sc)
        t_sc[...] = jnp.zeros_like(t_sc)
        loss_ref[...] = jnp.zeros_like(loss_ref)

    logits = jnp.dot(xn_sc[...], w_ref[...],
                     preferred_element_type=jnp.float32)      # (N, TV)
    logits_ref[...] = logits                                  # logits written once

    labels = labels_ref[...]                                  # (N, 1) int32
    tv = logits.shape[1]
    col = lax.broadcasted_iota(jnp.int32, logits.shape, 1) + j * tv

    m_new = jnp.maximum(m_sc[...], jnp.max(logits, axis=-1, keepdims=True))
    alpha = jnp.exp(m_sc[...] - m_new)
    p = jnp.exp(logits - m_new)
    l_sc[...] = alpha * l_sc[...] + jnp.sum(p, axis=-1, keepdims=True)
    t_sc[...] = t_sc[...] + jnp.sum(
        jnp.where(col == labels, logits, 0.0), axis=-1, keepdims=True)
    m_sc[...] = m_new

    @pl.when(j == pl.num_programs(0) - 1)
    def _():
        loss_ref[...] = m_sc[...] + jnp.log(l_sc[...]) - t_sc[...]


def lmhead_ce_pallas(h, final_norm, w, labels, *, tv=VOCAB_TILE):
    """Returns (logits (N, V) f32, per-token CE loss (N,) f32)."""
    N, D = h.shape
    _, V = w.shape
    assert V % tv == 0, "vocab size must be divisible by the vocab tile"
    labels2 = labels.reshape(N, 1).astype(jnp.int32)
    logits, per_tok = pl.pallas_call(
        _lmhead_ce_kernel,
        out_shape=(jax.ShapeDtypeStruct((N, V), jnp.float32),
                   jax.ShapeDtypeStruct((N, 1), jnp.float32)),
        grid=(V // tv,),
        in_specs=[
            pl.BlockSpec((N, 1), lambda j: (0, 0)),
            pl.BlockSpec((N, D), lambda j: (0, 0)),
            pl.BlockSpec((1, D), lambda j: (0, 0)),
            pl.BlockSpec((D, tv), lambda j: (0, j)),
        ],
        out_specs=(pl.BlockSpec((N, tv), lambda j: (0, j)),
                   pl.BlockSpec((N, 1), lambda j: (0, 0))),
        scratch_shapes=[pltpu.VMEM((N, D), jnp.bfloat16),
                        pltpu.VMEM((N, 1), jnp.float32),
                        pltpu.VMEM((N, 1), jnp.float32),
                        pltpu.VMEM((N, 1), jnp.float32)],
        compiler_params=pltpu.CompilerParams(
            dimension_semantics=("arbitrary",)),
    )(labels2, h, final_norm, w)
    return logits, per_tok[:, 0]


# ---------------------------------------------------------------------------
# act_quant: block-wise fp8 quantization of the input embeddings
# ---------------------------------------------------------------------------
def _act_quant_kernel(x_ref, y_ref, s_ref):
    x = x_ref[...].astype(jnp.float32)                        # (M, block)
    amax = jnp.max(jnp.abs(x), axis=-1, keepdims=True)
    amax = jnp.maximum(amax, 1e-12)                           # guard all-zero blocks
    s = amax * (1.0 / FP8_MAX)
    y = x / s                                                 # exact divide
    y_ref[...] = jnp.clip(y, -FP8_MAX, FP8_MAX)               # fp8 saturation
    s_ref[...] = s


def act_quant_pallas(x, block_size=FP8_BLOCK):
    """Block-wise fp8 quantization (per-block scale = amax / 448)."""
    M, D = x.shape
    assert D % block_size == 0
    nb = D // block_size
    # NOTE: the (M, 1) scale block relies on nb == full last dim (nb == 1 here).
    y, s = pl.pallas_call(
        _act_quant_kernel,
        out_shape=(
            jax.ShapeDtypeStruct((M, D), jnp.float32),
            jax.ShapeDtypeStruct((M, nb), jnp.float32),
        ),
        grid=(nb,),
        in_specs=[pl.BlockSpec((M, block_size), lambda j: (0, j))],
        out_specs=(
            pl.BlockSpec((M, block_size), lambda j: (0, j)),
            pl.BlockSpec((M, 1), lambda j: (0, j)),
        ),
        compiler_params=pltpu.CompilerParams(
            dimension_semantics=("parallel",)),
    )(x)
    # TODO(synk): on v7x the f8e4m3 cast can be done in-kernel; the XLA-boundary
    # cast keeps the kernel portable across v5e/v6e (values are discarded
    # downstream anyway, mirroring the PyTorch forward).
    return y.astype(jnp.float8_e4m3fn), s


# ---------------------------------------------------------------------------
# Glue: RoPE tables, rotate-half folded into weights, transformer forward
# ---------------------------------------------------------------------------
def rope_tables(batch, seq):
    """cos/sin tiled across the Q|K lane layout, shape (batch*seq, ROT_DIM)."""
    inv = 1.0 / (ROPE_THETA ** (jnp.arange(0, HEAD_DIM, 2, dtype=jnp.float32)
                                / HEAD_DIM))
    t = jnp.arange(seq, dtype=jnp.float32)
    f = jnp.outer(t, inv)                                     # (S, HEAD_DIM/2)
    cos_h = jnp.concatenate([jnp.cos(f), jnp.cos(f)], axis=-1)  # (S, HEAD_DIM)
    sin_h = jnp.concatenate([jnp.sin(f), jnp.sin(f)], axis=-1)
    n_qk_heads = N_HEADS + N_KV_HEADS
    cos = jnp.tile(cos_h, (batch, n_qk_heads))                # (B*S, ROT_DIM)
    sin = jnp.tile(sin_h, (batch, n_qk_heads))
    return cos, sin


def _rotate_half_cols(w):
    """rotate_half applied along the last axis, per HEAD_DIM-wide head group."""
    *lead, n = w.shape
    nh = n // HEAD_DIM
    w4 = w.reshape(*lead, nh, 2, HEAD_DIM // 2)
    rot = jnp.concatenate([-w4[..., 1, :], w4[..., 0, :]], axis=-1)
    return rot.reshape(*lead, n)


def transformer_forward(params, input_embeds):
    B, S, D = input_embeds.shape
    h = input_embeds.reshape(B * S, D)                        # collapse batch
    cos, sin = rope_tables(B, S)
    for lp in params["layers"]:
        h = layer_pallas(h, lp, cos, sin)
    return h                                                  # (B*S, D) bf16


def init_params(key):
    keys = jax.random.split(key, 2 + N_LAYERS)

    def w(k, shape, scale=0.02, dtype=jnp.bfloat16):
        return (scale * jax.random.normal(k, shape, jnp.float32)).astype(dtype)

    params = {
        "tok_embeddings": w(keys[0], (VOCAB, DIM)),
        "final_norm": jnp.ones((1, DIM), jnp.float32),
        "lm_head": w(keys[1], (DIM, VOCAB)),
        "layers": [],
    }
    for i in range(N_LAYERS):
        ks = jax.random.split(keys[2 + i], 10)
        wq = w(ks[0], (DIM, Q_DIM))
        wk = w(ks[2], (DIM, KV_DIM))
        wv = w(ks[4], (DIM, KV_DIM))
        bq = w(ks[1], (Q_DIM,), dtype=jnp.float32)
        bk = w(ks[3], (KV_DIM,), dtype=jnp.float32)
        bv = w(ks[5], (KV_DIM,), dtype=jnp.float32)
        wqk = jnp.concatenate([wq, wk], axis=1)               # (D, ROT_DIM)
        bqk = jnp.concatenate([bq, bk])                       # (ROT_DIM,)
        # fused projection = [Q | K | V | rotate_half(Q|K)] so RoPE needs no
        # in-kernel lane permute (rotation folded into the weight columns)
        wproj = jnp.concatenate([wqk, wv, _rotate_half_cols(wqk)], axis=1)
        bproj = jnp.concatenate([bqk, bv, _rotate_half_cols(bqk)])
        params["layers"].append({
            "attn_norm": jnp.ones((1, DIM), jnp.float32),
            "wproj": wproj,                                   # (D, PROJ_DIM) bf16
            "bproj": bproj.reshape(1, PROJ_DIM).astype(jnp.float32),
            "wo": w(ks[6], (DIM, DIM)),
            "ffn_norm": jnp.ones((1, DIM), jnp.float32),
            "w_gate_up": jnp.concatenate(
                [w(ks[7], (DIM, FFN_DIM)), w(ks[8], (DIM, FFN_DIM))], axis=1),
            "w_down": w(ks[9], (FFN_DIM, DIM)),
        })
    return params


# ---------------------------------------------------------------------------
# FP8Qwen2Wrapper.forward equivalent (fully jittable, no host syncs)
# ---------------------------------------------------------------------------
def fp8_qwen2_forward(params, input_ids, attention_mask=None, labels=None):
    # TODO(synk): attention_mask is accepted but unused — this matches the
    # reference, which calls self.model(input_ids, start_pos=0) without it.
    B, S = input_ids.shape
    input_embeds = jnp.take(params["tok_embeddings"], input_ids, axis=0)

    # fp8_enabled path: quantize the input embeddings. The PyTorch forward
    # discards the result; we return it (tiny) so the kernel is not DCE'd
    # under jit, but it never feeds the transformer (matching the reference).
    quantized_inputs, input_scale = act_quant_pallas(
        input_embeds.reshape(B * S, DIM), FP8_BLOCK)

    h = transformer_forward(params, input_embeds)             # (B*S, D)

    # Labels shifted so that token (b, t) is paired with labels[b, t+1]; the
    # last position of each sequence gets ignore_index (-100).
    if labels is not None:
        shift_labels = jnp.concatenate(
            [labels[:, 1:], jnp.full((B, 1), -100, labels.dtype)], axis=1)
    else:
        shift_labels = jnp.full((B, S), -100, jnp.int32)
    labels_flat = shift_labels.reshape(B * S)

    logits_flat, per_tok = lmhead_ce_pallas(
        h, params["final_norm"], params["lm_head"], labels_flat)
    logits = logits_flat.reshape(B, S, VOCAB)

    out = {
        "logits": logits,
        "quantized_inputs": quantized_inputs,
        "input_scale": input_scale,
    }
    if labels is not None:
        valid = (labels_flat >= 0).astype(jnp.float32)        # ignore_index=-100
        out["loss"] = jnp.sum(per_tok * valid) / jnp.maximum(jnp.sum(valid), 1.0)
    return out


if __name__ == "__main__":
    key = jax.random.PRNGKey(0)
    pkey, ikey, lkey = jax.random.split(key, 3)
    params = init_params(pkey)
    input_ids = jax.random.randint(ikey, (BATCH, SEQ), 0, VOCAB, dtype=jnp.int32)
    labels = jax.random.randint(lkey, (BATCH, SEQ), 0, VOCAB, dtype=jnp.int32)

    forward = jax.jit(fp8_qwen2_forward)
    out = jax.block_until_ready(forward(params, input_ids, labels=labels))

    assert out["logits"].shape == (BATCH, SEQ, VOCAB)
    assert out["logits"].dtype == jnp.float32
    assert out["loss"].shape == ()
    assert bool(jnp.isfinite(out["loss"]))
    print("KERNEL_OK")
</pallas_src>

<mosaic_0001>
module attributes {stable_mosaic.version = 11 : i64} {
  func.func @_act_quant_kernel(%arg0: i32, %arg1: memref<16x128xbf16, #tpu.memory_space<vmem>>, %arg2: memref<16x128xf32, #tpu.memory_space<vmem>>, %arg3: memref<16x1xf32, #tpu.memory_space<vmem>>) attributes {dimension_semantics = [#tpu.dimension_semantics<parallel>], iteration_bounds = array<i64: 1>, scalar_prefetch = 0 : i64, scratch_operands = 0 : i64, tpu.core_type = #tpu.core_type<tc>, window_params = [{transform_indices = @transform_0, window_bounds = array<i64: 16, 128>}, {transform_indices = @transform_1, window_bounds = array<i64: 16, 128>}, {transform_indices = @transform_2, window_bounds = array<i64: 16, 1>}]} {
    %c0 = arith.constant 0 : index
    %c0_0 = arith.constant 0 : index
    %0 = vector.load %arg1[%c0, %c0_0] : memref<16x128xbf16, #tpu.memory_space<vmem>>, vector<16x128xbf16>
    %1 = arith.extf %0 : vector<16x128xbf16> to vector<16x128xf32>
    %2 = math.absf %1 : vector<16x128xf32>
    %cst = arith.constant dense<0xFF800000> : vector<16xf32>
    %3 = vector.multi_reduction <maximumf>, %2, %cst [1] : vector<16x128xf32> to vector<16xf32>
    %4 = vector.shape_cast %3 : vector<16xf32> to vector<16x1xf32>
    %cst_1 = arith.constant 9.99999996E-13 : f32
    %5 = vector.broadcast %cst_1 : f32 to vector<16x1xf32>
    %6 = arith.maximumf %4, %5 : vector<16x1xf32>
    %cst_2 = arith.constant 0.00223214296 : f32
    %7 = vector.broadcast %cst_2 : f32 to vector<16x1xf32>
    %8 = arith.mulf %6, %7 : vector<16x1xf32>
    %9 = vector.broadcast %8 : vector<16x1xf32> to vector<16x128xf32>
    %10 = arith.divf %1, %9 : vector<16x128xf32>
    %cst_3 = arith.constant -4.480000e+02 : f32
    %cst_4 = arith.constant 4.480000e+02 : f32
    %11 = vector.broadcast %cst_3 : f32 to vector<16x128xf32>
    %12 = arith.maximumf %11, %10 : vector<16x128xf32>
    %13 = vector.broadcast %cst_4 : f32 to vector<16x128xf32>
    %14 = arith.minimumf %13, %12 : vector<16x128xf32>
    %c0_5 = arith.constant 0 : index
    %c0_6 = arith.constant 0 : index
    %15 = vector.load %arg2[%c0_5, %c0_6] : memref<16x128xf32, #tpu.memory_space<vmem>>, vector<16x128xf32>
    tpu.vector_store %arg2[%c0_5, %c0_6], %14 {strides = array<i32>} : memref<16x128xf32, #tpu.memory_space<vmem>>, vector<16x128xf32>,
    %c0_7 = arith.constant 0 : index
    %c0_8 = arith.constant 0 : index
    %16 = vector.load %arg3[%c0_7, %c0_8] : memref<16x1xf32, #tpu.memory_space<vmem>>, vector<16x1xf32>
    tpu.vector_store %arg3[%c0_7, %c0_8], %8 {strides = array<i32>} : memref<16x1xf32, #tpu.memory_space<vmem>>, vector<16x1xf32>,
    return
  }
  func.func @transform_0(%arg0: i32) -> (i32, i32) {
    %c0_i32 = arith.constant 0 : i32
    %c0_i32_0 = arith.constant 0 : i32
    return %c0_i32, %arg0 : i32, i32
  }
  func.func @transform_1(%arg0: i32) -> (i32, i32) {
    %c0_i32 = arith.constant 0 : i32
    %c0_i32_0 = arith.constant 0 : i32
    return %c0_i32, %arg0 : i32, i32
  }
  func.func @transform_2(%arg0: i32) -> (i32, i32) {
    %c0_i32 = arith.constant 0 : i32
    %c0_i32_0 = arith.constant 0 : i32
    return %c0_i32, %arg0 : i32, i32
  }
}

module attributes {stable_mosaic.version = 11 : i64} {
  func.func @_layer_kernel(%arg0: i32, %arg1: memref<16x128xbf16, #tpu.memory_space<vmem>>, %arg2: memref<1x128xf32, #tpu.memory_space<vmem>>, %arg3: memref<128x448xbf16, #tpu.memory_space<vmem>>, %arg4: memref<1x448xf32, #tpu.memory_space<vmem>>, %arg5: memref<128x128xbf16, #tpu.memory_space<vmem>>, %arg6: memref<1x128xf32, #tpu.memory_space<vmem>>, %arg7: memref<128x512xbf16, #tpu.memory_space<vmem>>, %arg8: memref<256x128xbf16, #tpu.memory_space<vmem>>, %arg9: memref<16x192xf32, #tpu.memory_space<vmem>>, %arg10: memref<16x192xf32, #tpu.memory_space<vmem>>, %arg11: memref<16x128xbf16, #tpu.memory_space<vmem>>) attributes {dimension_semantics = [#tpu.dimension_semantics<arbitrary>], iteration_bounds = array<i64: 1>, scalar_prefetch = 0 : i64, scratch_operands = 0 : i64, tpu.core_type = #tpu.core_type<tc>, window_params = [{pipeline_mode = #tpu.pipeline_mode<synchronous>, transform_indices = @transform_0, window_bounds = array<i64: 16, 128>}, {pipeline_mode = #tpu.pipeline_mode<synchronous>, transform_indices = @transform_1, window_bounds = array<i64: 1, 128>}, {pipeline_mode = #tpu.pipeline_mode<synchronous>, transform_indices = @transform_2, window_bounds = array<i64: 128, 448>}, {pipeline_mode = #tpu.pipeline_mode<synchronous>, transform_indices = @transform_3, window_bounds = array<i64: 1, 448>}, {pipeline_mode = #tpu.pipeline_mode<synchronous>, transform_indices = @transform_4, window_bounds = array<i64: 128, 128>}, {pipeline_mode = #tpu.pipeline_mode<synchronous>, transform_indices = @transform_5, window_bounds = array<i64: 1, 128>}, {pipeline_mode = #tpu.pipeline_mode<synchronous>, transform_indices = @transform_6, window_bounds = array<i64: 128, 512>}, {pipeline_mode = #tpu.pipeline_mode<synchronous>, transform_indices = @transform_7, window_bounds = array<i64: 256, 128>}, {pipeline_mode = #tpu.pipeline_mode<synchronous>, transform_indices = @transform_8, window_bounds = array<i64: 16, 192>}, {pipeline_mode = #tpu.pipeline_mode<synchronous>, transform_indices = @transform_9, window_bounds = array<i64: 16, 192>}, {pipeline_mode = #tpu.pipeline_mode<synchronous>, transform_indices = @transform_10, window_bounds = array<i64: 16, 128>}]} {
    %c0 = arith.constant 0 : index
    %c0_0 = arith.constant 0 : index
    %0 = vector.load %arg1[%c0, %c0_0] : memref<16x128xbf16, #tpu.memory_space<vmem>>, vector<16x128xbf16>
    %1 = arith.extf %0 : vector<16x128xbf16> to vector<16x128xf32>
    %2 = arith.mulf %1, %1 : vector<16x128xf32>
    %cst = arith.constant dense<0.000000e+00> : vector<16xf32>
    %3 = vector.multi_reduction <add>, %2, %cst [1] : vector<16x128xf32> to vector<16xf32>
    %4 = vector.shape_cast %3 : vector<16xf32> to vector<16x1xf32>
    %cst_1 = arith.constant 1.280000e+02 : f32
    %5 = vector.broadcast %cst_1 : f32 to vector<16x1xf32>
    %6 = arith.divf %4, %5 : vector<16x1xf32>
    %cst_2 = arith.constant 9.99999997E-7 : f32
    %7 = vector.broadcast %cst_2 : f32 to vector<16x1xf32>
    %8 = arith.addf %6, %7 : vector<16x1xf32>
    %9 = math.rsqrt %8 : vector<16x1xf32>
    %10 = vector.broadcast %9 : vector<16x1xf32> to vector<16x128xf32>
    %11 = arith.mulf %1, %10 : vector<16x128xf32>
    %c0_3 = arith.constant 0 : index
    %c0_4 = arith.constant 0 : index
    %12 = vector.load %arg2[%c0_3, %c0_4] : memref<1x128xf32, #tpu.memory_space<vmem>>, vector<1x128xf32>
    %13 = vector.broadcast %12 : vector<1x128xf32> to vector<16x128xf32>
    %14 = arith.mulf %11, %13 : vector<16x128xf32>
    %15 = arith.truncf %14 : vector<16x128xf32> to vector<16x128xbf16>
    %c0_5 = arith.constant 0 : index
    %c0_6 = arith.constant 0 : index
    %16 = vector.load %arg3[%c0_5, %c0_6] : memref<128x448xbf16, #tpu.memory_space<vmem>>, vector<128x448xbf16>
    %cst_7 = arith.constant dense<0.000000e+00> : vector<16x448xf32>
    %17 = tpu.matmul %15, %16, %cst_7 {dimension_numbers = #tpu.dot_dimension_numbers<[1], [0], [0], [1], [0, 0, 1, 1], [], []>} : vector<16x128xbf16>, vector<128x448xbf16>, vector<16x448xf32> -> vector<16x448xf32>
    %c0_8 = arith.constant 0 : index
    %c0_9 = arith.constant 0 : index
    %18 = vector.load %arg4[%c0_8, %c0_9] : memref<1x448xf32, #tpu.memory_space<vmem>>, vector<1x448xf32>
    %19 = vector.broadcast %18 : vector<1x448xf32> to vector<16x448xf32>
    %20 = arith.addf %17, %19 : vector<16x448xf32>
    %21 = vector.extract_strided_slice %20 {offsets = [0, 0], sizes = [16, 192], strides = [1, 1]} : vector<16x448xf32> to vector<16x192xf32>
    %22 = vector.extract_strided_slice %20 {offsets = [0, 192], sizes = [16, 64], strides = [1, 1]} : vector<16x448xf32> to vector<16x64xf32>
    %23 = vector.extract_strided_slice %20 {offsets = [0, 256], sizes = [16, 192], strides = [1, 1]} : vector<16x448xf32> to vector<16x192xf32>
    %c0_10 = arith.constant 0 : index
    %c0_11 = arith.constant 0 : index
    %24 = vector.load %arg9[%c0_10, %c0_11] : memref<16x192xf32, #tpu.memory_space<vmem>>, vector<16x192xf32>
    %25 = arith.mulf %21, %24 : vector<16x192xf32>
    %c0_12 = arith.constant 0 : index
    %c0_13 = arith.constant 0 : index
    %26 = vector.load %arg10[%c0_12, %c0_13] : memref<16x192xf32, #tpu.memory_space<vmem>>, vector<16x192xf32>
    %27 = arith.mulf %23, %26 : vector<16x192xf32>
    %28 = arith.addf %25, %27 : vector<16x192xf32>
    %29 = arith.truncf %28 : vector<16x192xf32> to vector<16x192xbf16>
    %30 = arith.truncf %22 : vector<16x64xf32> to vector<16x64xbf16>
    %31 = tpu.iota {dimensions = array<i32: 0>} : vector<8x8xi32>
    %32 = tpu.iota {dimensions = array<i32: 1>} : vector<8x8xi32>
    %33 = arith.cmpi sle, %32, %31 : vector<8x8xi32>
    %c0_14 = arith.constant 0 : index
    %c0_15 = arith.constant 0 : index
    %34 = vector.load %arg5[%c0_14, %c0_15] : memref<128x128xbf16, #tpu.memory_space<vmem>>, vector<128x128xbf16>
    %35 = vector.extract_strided_slice %29 {offsets = [0, 0], sizes = [8, 128], strides = [1, 1]} : vector<16x192xbf16> to vector<8x128xbf16>
    %36 = vector.extract_strided_slice %29 {offsets = [0, 128], sizes = [8, 64], strides = [1, 1]} : vector<16x192xbf16> to vector<8x64xbf16>
    %37 = vector.extract_strided_slice %30 {offsets = [0, 0], sizes = [8, 64], strides = [1, 1]} : vector<16x64xbf16> to vector<8x64xbf16>
    %cst_16 = arith.constant 0.000000e+00 : f32
    %38 = vector.broadcast %cst_16 : f32 to vector<8x128xf32>
    %39 = vector.extract_strided_slice %36 {offsets = [0, 0], sizes = [8, 32], strides = [1, 1]} : vector<8x64xbf16> to vector<8x32xbf16>
    %40 = vector.extract_strided_slice %37 {offsets = [0, 0], sizes = [8, 32], strides = [1, 1]} : vector<8x64xbf16> to vector<8x32xbf16>
    %41 = vector.extract_strided_slice %35 {offsets = [0, 0], sizes = [8, 32], strides = [1, 1]} : vector<8x128xbf16> to vector<8x32xbf16>
    %cst_17 = arith.constant dense<0.000000e+00> : vector<8x8xf32>
    %42 = tpu.matmul %41, %39, %cst_17 {dimension_numbers = #tpu.dot_dimension_numbers<[1], [1], [0], [0], [0, 0, 1, 0], [], []>} : vector<8x32xbf16>, vector<8x32xbf16>, vector<8x8xf32> -> vector<8x8xf32>
    %cst_18 = arith.constant 0.176776692 : f32
    %43 = vector.broadcast %cst_18 : f32 to vector<8x8xf32>
    %44 = arith.mulf %42, %43 : vector<8x8xf32>
    %cst_19 = arith.constant -1.000000e+30 : f32
    %45 = vector.broadcast %cst_19 : f32 to vector<8x8xf32>
    %46 = arith.select %33, %44, %45 : vector<8x8xi1>, vector<8x8xf32>
    %cst_20 = arith.constant dense<0xFF800000> : vector<8xf32>
    %47 = vector.multi_reduction <maximumf>, %46, %cst_20 [1] : vector<8x8xf32> to vector<8xf32>
    %48 = vector.shape_cast %47 : vector<8xf32> to vector<8x1xf32>
    %49 = vector.broadcast %48 : vector<8x1xf32> to vector<8x8xf32>
    %50 = arith.subf %46, %49 : vector<8x8xf32>
    %51 = math.exp %50 : vector<8x8xf32>
    %cst_21 = arith.constant dense<0.000000e+00> : vector<8xf32>
    %52 = vector.multi_reduction <add>, %51, %cst_21 [1] : vector<8x8xf32> to vector<8xf32>
    %53 = vector.shape_cast %52 : vector<8xf32> to vector<8x1xf32>
    %54 = arith.truncf %51 : vector<8x8xf32> to vector<8x8xbf16>
    %cst_22 = arith.constant dense<0.000000e+00> : vector<8x32xf32>
    %55 = tpu.matmul %54, %40, %cst_22 {dimension_numbers = #tpu.dot_dimension_numbers<[1], [0], [0], [1], [0, 0, 1, 1], [], []>} : vector<8x8xbf16>, vector<8x32xbf16>, vector<8x32xf32> -> vector<8x32xf32>
    %56 = vector.broadcast %53 : vector<8x1xf32> to vector<8x32xf32>
    %57 = arith.divf %55, %56 : vector<8x32xf32>
    %58 = arith.truncf %57 : vector<8x32xf32> to vector<8x32xbf16>
    %59 = vector.extract_strided_slice %34 {offsets = [0, 0], sizes = [32, 128], strides = [1, 1]} : vector<128x128xbf16> to vector<32x128xbf16>
    %cst_23 = arith.constant dense<0.000000e+00> : vector<8x128xf32>
    %60 = tpu.matmul %58, %59, %cst_23 {dimension_numbers = #tpu.dot_dimension_numbers<[1], [0], [0], [1], [0, 0, 1, 1], [], []>} : vector<8x32xbf16>, vector<32x128xbf16>, vector<8x128xf32> -> vector<8x128xf32>
    %61 = arith.addf %38, %60 : vector<8x128xf32>
    %62 = vector.extract_strided_slice %35 {offsets = [0, 32], sizes = [8, 32], strides = [1, 1]} : vector<8x128xbf16> to vector<8x32xbf16>
    %cst_24 = arith.constant dense<0.000000e+00> : vector<8x8xf32>
    %63 = tpu.matmul %62, %39, %cst_24 {dimension_numbers = #tpu.dot_dimension_numbers<[1], [1], [0], [0], [0, 0, 1, 0], [], []>} : vector<8x32xbf16>, vector<8x32xbf16>, vector<8x8xf32> -> vector<8x8xf32>
    %cst_25 = arith.constant 0.176776692 : f32
    %64 = vector.broadcast %cst_25 : f32 to vector<8x8xf32>
    %65 = arith.mulf %63, %64 : vector<8x8xf32>
    %cst_26 = arith.constant -1.000000e+30 : f32
    %66 = vector.broadcast %cst_26 : f32 to vector<8x8xf32>
    %67 = arith.select %33, %65, %66 : vector<8x8xi1>, vector<8x8xf32>
    %cst_27 = arith.constant dense<0xFF800000> : vector<8xf32>
    %68 = vector.multi_reduction <maximumf>, %67, %cst_27 [1] : vector<8x8xf32> to vector<8xf32>
    %69 = vector.shape_cast %68 : vector<8xf32> to vector<8x1xf32>
    %70 = vector.broadcast %69 : vector<8x1xf32> to vector<8x8xf32>
    %71 = arith.subf %67, %70 : vector<8x8xf32>
    %72 = math.exp %71 : vector<8x8xf32>
    %cst_28 = arith.constant dense<0.000000e+00> : vector<8xf32>
    %73 = vector.multi_reduction <add>, %72, %cst_28 [1] : vector<8x8xf32> to vector<8xf32>
    %74 = vector.shape_cast %73 : vector<8xf32> to vector<8x1xf32>
    %75 = arith.truncf %72 : vector<8x8xf32> to vector<8x8xbf16>
    %cst_29 = arith.constant dense<0.000000e+00> : vector<8x32xf32>
    %76 = tpu.matmul %75, %40, %cst_29 {dimension_numbers = #tpu.dot_dimension_numbers<[1], [0], [0], [1], [0, 0, 1, 1], [], []>} : vector<8x8xbf16>, vector<8x32xbf16>, vector<8x32xf32> -> vector<8x32xf32>
    %77 = vector.broadcast %74 : vector<8x1xf32> to vector<8x32xf32>
    %78 = arith.divf %76, %77 : vector<8x32xf32>
    %79 = arith.truncf %78 : vector<8x32xf32> to vector<8x32xbf16>
    %80 = vector.extract_strided_slice %34 {offsets = [32, 0], sizes = [32, 128], strides = [1, 1]} : vector<128x128xbf16> to vector<32x128xbf16>
    %cst_30 = arith.constant dense<0.000000e+00> : vector<8x128xf32>
    %81 = tpu.matmul %79, %80, %cst_30 {dimension_numbers = #tpu.dot_dimension_numbers<[1], [0], [0], [1], [0, 0, 1, 1], [], []>} : vector<8x32xbf16>, vector<32x128xbf16>, vector<8x128xf32> -> vector<8x128xf32>
    %82 = arith.addf %61, %81 : vector<8x128xf32>
    %83 = vector.extract_strided_slice %36 {offsets = [0, 32], sizes = [8, 32], strides = [1, 1]} : vector<8x64xbf16> to vector<8x32xbf16>
    %84 = vector.extract_strided_slice %37 {offsets = [0, 32], sizes = [8, 32], strides = [1, 1]} : vector<8x64xbf16> to vector<8x32xbf16>
    %85 = vector.extract_strided_slice %35 {offsets = [0, 64], sizes = [8, 32], strides = [1, 1]} : vector<8x128xbf16> to vector<8x32xbf16>
    %cst_31 = arith.constant dense<0.000000e+00> : vector<8x8xf32>
    %86 = tpu.matmul %85, %83, %cst_31 {dimension_numbers = #tpu.dot_dimension_numbers<[1], [1], [0], [0], [0, 0, 1, 0], [], []>} : vector<8x32xbf16>, vector<8x32xbf16>, vector<8x8xf32> -> vector<8x8xf32>
    %cst_32 = arith.constant 0.176776692 : f32
    %87 = vector.broadcast %cst_32 : f32 to vector<8x8xf32>
    %88 = arith.mulf %86, %87 : vector<8x8xf32>
    %cst_33 = arith.constant -1.000000e+30 : f32
    %89 = vector.broadcast %cst_33 : f32 to vector<8x8xf32>
    %90 = arith.select %33, %88, %89 : vector<8x8xi1>, vector<8x8xf32>
    %cst_34 = arith.constant dense<0xFF800000> : vector<8xf32>
    %91 = vector.multi_reduction <maximumf>, %90, %cst_34 [1] : vector<8x8xf32> to vector<8xf32>
    %92 = vector.shape_cast %91 : vector<8xf32> to vector<8x1xf32>
    %93 = vector.broadcast %92 : vector<8x1xf32> to vector<8x8xf32>
    %94 = arith.subf %90, %93 : vector<8x8xf32>
    %95 = math.exp %94 : vector<8x8xf32>
    %cst_35 = arith.constant dense<0.000000e+00> : vector<8xf32>
    %96 = vector.multi_reduction <add>, %95, %cst_35 [1] : vector<8x8xf32> to vector<8xf32>
    %97 = vector.shape_cast %96 : vector<8xf32> to vector<8x1xf32>
    %98 = arith.truncf %95 : vector<8x8xf32> to vector<8x8xbf16>
    %cst_36 = arith.constant dense<0.000000e+00> : vector<8x32xf32>
    %99 = tpu.matmul %98, %84, %cst_36 {dimension_numbers = #tpu.dot_dimension_numbers<[1], [0], [0], [1], [0, 0, 1, 1], [], []>} : vector<8x8xbf16>, vector<8x32xbf16>, vector<8x32xf32> -> vector<8x32xf32>
    %100 = vector.broadcast %97 : vector<8x1xf32> to vector<8x32xf32>
    %101 = arith.divf %99, %100 : vector<8x32xf32>
    %102 = arith.truncf %101 : vector<8x32xf32> to vector<8x32xbf16>
    %103 = vector.extract_strided_slice %34 {offsets = [64, 0], sizes = [32, 128], strides = [1, 1]} : vector<128x128xbf16> to vector<32x128xbf16>
    %cst_37 = arith.constant dense<0.000000e+00> : vector<8x128xf32>
    %104 = tpu.matmul %102, %103, %cst_37 {dimension_numbers = #tpu.dot_dimension_numbers<[1], [0], [0], [1], [0, 0, 1, 1], [], []>} : vector<8x32xbf16>, vector<32x128xbf16>, vector<8x128xf32> -> vector<8x128xf32>
    %105 = arith.addf %82, %104 : vector<8x128xf32>
    %106 = vector.extract_strided_slice %35 {offsets = [0, 96], sizes = [8, 32], strides = [1, 1]} : vector<8x128xbf16> to vector<8x32xbf16>
    %cst_38 = arith.constant dense<0.000000e+00> : vector<8x8xf32>
    %107 = tpu.matmul %106, %83, %cst_38 {dimension_numbers = #tpu.dot_dimension_numbers<[1], [1], [0], [0], [0, 0, 1, 0], [], []>} : vector<8x32xbf16>, vector<8x32xbf16>, vector<8x8xf32> -> vector<8x8xf32>
    %cst_39 = arith.constant 0.176776692 : f32
    %108 = vector.broadcast %cst_39 : f32 to vector<8x8xf32>
    %109 = arith.mulf %107, %108 : vector<8x8xf32>
    %cst_40 = arith.constant -1.000000e+30 : f32
    %110 = vector.broadcast %cst_40 : f32 to vector<8x8xf32>
    %111 = arith.select %33, %109, %110 : vector<8x8xi1>, vector<8x8xf32>
    %cst_41 = arith.constant dense<0xFF800000> : vector<8xf32>
    %112 = vector.multi_reduction <maximumf>, %111, %cst_41 [1] : vector<8x8xf32> to vector<8xf32>
    %113 = vector.shape_cast %112 : vector<8xf32> to vector<8x1xf32>
    %114 = vector.broadcast %113 : vector<8x1xf32> to vector<8x8xf32>
    %115 = arith.subf %111, %114 : vector<8x8xf32>
    %116 = math.exp %115 : vector<8x8xf32>
    %cst_42 = arith.constant dense<0.000000e+00> : vector<8xf32>
    %117 = vector.multi_reduction <add>, %116, %cst_42 [1] : vector<8x8xf32> to vector<8xf32>
    %118 = vector.shape_cast %117 : vector<8xf32> to vector<8x1xf32>
    %119 = arith.truncf %116 : vector<8x8xf32> to vector<8x8xbf16>
    %cst_43 = arith.constant dense<0.000000e+00> : vector<8x32xf32>
    %120 = tpu.matmul %119, %84, %cst_43 {dimension_numbers = #tpu.dot_dimension_numbers<[1], [0], [0], [1], [0, 0, 1, 1], [], []>} : vector<8x8xbf16>, vector<8x32xbf16>, vector<8x32xf32> -> vector<8x32xf32>
    %121 = vector.broadcast %118 : vector<8x1xf32> to vector<8x32xf32>
    %122 = arith.divf %120, %121 : vector<8x32xf32>
    %123 = arith.truncf %122 : vector<8x32xf32> to vector<8x32xbf16>
    %124 = vector.extract_strided_slice %34 {offsets = [96, 0], sizes = [32, 128], strides = [1, 1]} : vector<128x128xbf16> to vector<32x128xbf16>
    %cst_44 = arith.constant dense<0.000000e+00> : vector<8x128xf32>
    %125 = tpu.matmul %123, %124, %cst_44 {dimension_numbers = #tpu.dot_dimension_numbers<[1], [0], [0], [1], [0, 0, 1, 1], [], []>} : vector<8x32xbf16>, vector<32x128xbf16>, vector<8x128xf32> -> vector<8x128xf32>
    %126 = arith.addf %105, %125 : vector<8x128xf32>
    %127 = vector.extract_strided_slice %29 {offsets = [8, 0], sizes = [8, 128], strides = [1, 1]} : vector<16x192xbf16> to vector<8x128xbf16>
    %128 = vector.extract_strided_slice %29 {offsets = [8, 128], sizes = [8, 64], strides = [1, 1]} : vector<16x192xbf16> to vector<8x64xbf16>
    %129 = vector.extract_strided_slice %30 {offsets = [8, 0], sizes = [8, 64], strides = [1, 1]} : vector<16x64xbf16> to vector<8x64xbf16>
    %cst_45 = arith.constant 0.000000e+00 : f32
    %130 = vector.broadcast %cst_45 : f32 to vector<8x128xf32>
    %131 = vector.extract_strided_slice %128 {offsets = [0, 0], sizes = [8, 32], strides = [1, 1]} : vector<8x64xbf16> to vector<8x32xbf16>
    %132 = vector.extract_strided_slice %129 {offsets = [0, 0], sizes = [8, 32], strides = [1, 1]} : vector<8x64xbf16> to vector<8x32xbf16>
    %133 = vector.extract_strided_slice %127 {offsets = [0, 0], sizes = [8, 32], strides = [1, 1]} : vector<8x128xbf16> to vector<8x32xbf16>
    %cst_46 = arith.constant dense<0.000000e+00> : vector<8x8xf32>
    %134 = tpu.matmul %133, %131, %cst_46 {dimension_numbers = #tpu.dot_dimension_numbers<[1], [1], [0], [0], [0, 0, 1, 0], [], []>} : vector<8x32xbf16>, vector<8x32xbf16>, vector<8x8xf32> -> vector<8x8xf32>
    %cst_47 = arith.constant 0.176776692 : f32
    %135 = vector.broadcast %cst_47 : f32 to vector<8x8xf32>
    %136 = arith.mulf %134, %135 : vector<8x8xf32>
    %cst_48 = arith.constant -1.000000e+30 : f32
    %137 = vector.broadcast %cst_48 : f32 to vector<8x8xf32>
    %138 = arith.select %33, %136, %137 : vector<8x8xi1>, vector<8x8xf32>
    %cst_49 = arith.constant dense<0xFF800000> : vector<8xf32>
    %139 = vector.multi_reduction <maximumf>, %138, %cst_49 [1] : vector<8x8xf32> to vector<8xf32>
    %140 = vector.shape_cast %139 : vector<8xf32> to vector<8x1xf32>
    %141 = vector.broadcast %140 : vector<8x1xf32> to vector<8x8xf32>
    %142 = arith.subf %138, %141 : vector<8x8xf32>
    %143 = math.exp %142 : vector<8x8xf32>
    %cst_50 = arith.constant dense<0.000000e+00> : vector<8xf32>
    %144 = vector.multi_reduction <add>, %143, %cst_50 [1] : vector<8x8xf32> to vector<8xf32>
    %145 = vector.shape_cast %144 : vector<8xf32> to vector<8x1xf32>
    %146 = arith.truncf %143 : vector<8x8xf32> to vector<8x8xbf16>
    %cst_51 = arith.constant dense<0.000000e+00> : vector<8x32xf32>
    %147 = tpu.matmul %146, %132, %cst_51 {dimension_numbers = #tpu.dot_dimension_numbers<[1], [0], [0], [1], [0, 0, 1, 1], [], []>} : vector<8x8xbf16>, vector<8x32xbf16>, vector<8x32xf32> -> vector<8x32xf32>
    %148 = vector.broadcast %145 : vector<8x1xf32> to vector<8x32xf32>
    %149 = arith.divf %147, %148 : vector<8x32xf32>
    %150 = arith.truncf %149 : vector<8x32xf32> to vector<8x32xbf16>
    %151 = vector.extract_strided_slice %34 {offsets = [0, 0], sizes = [32, 128], strides = [1, 1]} : vector<128x128xbf16> to vector<32x128xbf16>
    %cst_52 = arith.constant dense<0.000000e+00> : vector<8x128xf32>
    %152 = tpu.matmul %150, %151, %cst_52 {dimension_numbers = #tpu.dot_dimension_numbers<[1], [0], [0], [1], [0, 0, 1, 1], [], []>} : vector<8x32xbf16>, vector<32x128xbf16>, vector<8x128xf32> -> vector<8x128xf32>
    %153 = arith.addf %130, %152 : vector<8x128xf32>
    %154 = vector.extract_strided_slice %127 {offsets = [0, 32], sizes = [8, 32], strides = [1, 1]} : vector<8x128xbf16> to vector<8x32xbf16>
    %cst_53 = arith.constant dense<0.000000e+00> : vector<8x8xf32>
    %155 = tpu.matmul %154, %131, %cst_53 {dimension_numbers = #tpu.dot_dimension_numbers<[1], [1], [0], [0], [0, 0, 1, 0], [], []>} : vector<8x32xbf16>, vector<8x32xbf16>, vector<8x8xf32> -> vector<8x8xf32>
    %cst_54 = arith.constant 0.176776692 : f32
    %156 = vector.broadcast %cst_54 : f32 to vector<8x8xf32>
    %157 = arith.mulf %155, %156 : vector<8x8xf32>
    %cst_55 = arith.constant -1.000000e+30 : f32
    %158 = vector.broadcast %cst_55 : f32 to vector<8x8xf32>
    %159 = arith.select %33, %157, %158 : vector<8x8xi1>, vector<8x8xf32>
    %cst_56 = arith.constant dense<0xFF800000> : vector<8xf32>
    %160 = vector.multi_reduction <maximumf>, %159, %cst_56 [1] : vector<8x8xf32> to vector<8xf32>
    %161 = vector.shape_cast %160 : vector<8xf32> to vector<8x1xf32>
    %162 = vector.broadcast %161 : vector<8x1xf32> to vector<8x8xf32>
    %163 = arith.subf %159, %162 : vector<8x8xf32>
    %164 = math.exp %163 : vector<8x8xf32>
    %cst_57 = arith.constant dense<0.000000e+00> : vector<8xf32>
    %165 = vector.multi_reduction <add>, %164, %cst_57 [1] : vector<8x8xf32> to vector<8xf32>
    %166 = vector.shape_cast %165 : vector<8xf32> to vector<8x1xf32>
    %167 = arith.truncf %164 : vector<8x8xf32> to vector<8x8xbf16>
    %cst_58 = arith.constant dense<0.000000e+00> : vector<8x32xf32>
    %168 = tpu.matmul %167, %132, %cst_58 {dimension_numbers = #tpu.dot_dimension_numbers<[1], [0], [0], [1], [0, 0, 1, 1], [], []>} : vector<8x8xbf16>, vector<8x32xbf16>, vector<8x32xf32> -> vector<8x32xf32>
    %169 = vector.broadcast %166 : vector<8x1xf32> to vector<8x32xf32>
    %170 = arith.divf %168, %169 : vector<8x32xf32>
    %171 = arith.truncf %170 : vector<8x32xf32> to vector<8x32xbf16>
    %172 = vector.extract_strided_slice %34 {offsets = [32, 0], sizes = [32, 128], strides = [1, 1]} : vector<128x128xbf16> to vector<32x128xbf16>
    %cst_59 = arith.constant dense<0.000000e+00> : vector<8x128xf32>
    %173 = tpu.matmul %171, %172, %cst_59 {dimension_numbers = #tpu.dot_dimension_numbers<[1], [0], [0], [1], [0, 0, 1, 1], [], []>} : vector<8x32xbf16>, vector<32x128xbf16>, vector<8x128xf32> -> vector<8x128xf32>
    %174 = arith.addf %153, %173 : vector<8x128xf32>
    %175 = vector.extract_strided_slice %128 {offsets = [0, 32], sizes = [8, 32], strides = [1, 1]} : vector<8x64xbf16> to vector<8x32xbf16>
    %176 = vector.extract_strided_slice %129 {offsets = [0, 32], sizes = [8, 32], strides = [1, 1]} : vector<8x64xbf16> to vector<8x32xbf16>
    %177 = vector.extract_strided_slice %127 {offsets = [0, 64], sizes = [8, 32], strides = [1, 1]} : vector<8x128xbf16> to vector<8x32xbf16>
    %cst_60 = arith.constant dense<0.000000e+00> : vector<8x8xf32>
    %178 = tpu.matmul %177, %175, %cst_60 {dimension_numbers = #tpu.dot_dimension_numbers<[1], [1], [0], [0], [0, 0, 1, 0], [], []>} : vector<8x32xbf16>, vector<8x32xbf16>, vector<8x8xf32> -> vector<8x8xf32>
    %cst_61 = arith.constant 0.176776692 : f32
    %179 = vector.broadcast %cst_61 : f32 to vector<8x8xf32>
    %180 = arith.mulf %178, %179 : vector<8x8xf32>
    %cst_62 = arith.constant -1.000000e+30 : f32
    %181 = vector.broadcast %cst_62 : f32 to vector<8x8xf32>
    %182 = arith.select %33, %180, %181 : vector<8x8xi1>, vector<8x8xf32>
    %cst_63 = arith.constant dense<0xFF800000> : vector<8xf32>
    %183 = vector.multi_reduction <maximumf>, %182, %cst_63 [1] : vector<8x8xf32> to vector<8xf32>
    %184 = vector.shape_cast %183 : vector<8xf32> to vector<8x1xf32>
    %185 = vector.broadcast %184 : vector<8x1xf32> to vector<8x8xf32>
    %186 = arith.subf %182, %185 : vector<8x8xf32>
    %187 = math.exp %186 : vector<8x8xf32>
    %cst_64 = arith.constant dense<0.000000e+00> : vector<8xf32>
    %188 = vector.multi_reduction <add>, %187, %cst_64 [1] : vector<8x8xf32> to vector<8xf32>
    %189 = vector.shape_cast %188 : vector<8xf32> to vector<8x1xf32>
    %190 = arith.truncf %187 : vector<8x8xf32> to vector<8x8xbf16>
    %cst_65 = arith.constant dense<0.000000e+00> : vector<8x32xf32>
    %191 = tpu.matmul %190, %176, %cst_65 {dimension_numbers = #tpu.dot_dimension_numbers<[1], [0], [0], [1], [0, 0, 1, 1], [], []>} : vector<8x8xbf16>, vector<8x32xbf16>, vector<8x32xf32> -> vector<8x32xf32>
    %192 = vector.broadcast %189 : vector<8x1xf32> to vector<8x32xf32>
    %193 = arith.divf %191, %192 : vector<8x32xf32>
    %194 = arith.truncf %193 : vector<8x32xf32> to vector<8x32xbf16>
    %195 = vector.extract_strided_slice %34 {offsets = [64, 0], sizes = [32, 128], strides = [1, 1]} : vector<128x128xbf16> to vector<32x128xbf16>
    %cst_66 = arith.constant dense<0.000000e+00> : vector<8x128xf32>
    %196 = tpu.matmul %194, %195, %cst_66 {dimension_numbers = #tpu.dot_dimension_numbers<[1], [0], [0], [1], [0, 0, 1, 1], [], []>} : vector<8x32xbf16>, vector<32x128xbf16>, vector<8x128xf32> -> vector<8x128xf32>
    %197 = arith.addf %174, %196 : vector<8x128xf32>
    %198 = vector.extract_strided_slice %127 {offsets = [0, 96], sizes = [8, 32], strides = [1, 1]} : vector<8x128xbf16> to vector<8x32xbf16>
    %cst_67 = arith.constant dense<0.000000e+00> : vector<8x8xf32>
    %199 = tpu.matmul %198, %175, %cst_67 {dimension_numbers = #tpu.dot_dimension_numbers<[1], [1], [0], [0], [0, 0, 1, 0], [], []>} : vector<8x32xbf16>, vector<8x32xbf16>, vector<8x8xf32> -> vector<8x8xf32>
    %cst_68 = arith.constant 0.176776692 : f32
    %200 = vector.broadcast %cst_68 : f32 to vector<8x8xf32>
    %201 = arith.mulf %199, %200 : vector<8x8xf32>
    %cst_69 = arith.constant -1.000000e+30 : f32
    %202 = vector.broadcast %cst_69 : f32 to vector<8x8xf32>
    %203 = arith.select %33, %201, %202 : vector<8x8xi1>, vector<8x8xf32>
    %cst_70 = arith.constant dense<0xFF800000> : vector<8xf32>
    %204 = vector.multi_reduction <maximumf>, %203, %cst_70 [1] : vector<8x8xf32> to vector<8xf32>
    %205 = vector.shape_cast %204 : vector<8xf32> to vector<8x1xf32>
    %206 = vector.broadcast %205 : vector<8x1xf32> to vector<8x8xf32>
    %207 = arith.subf %203, %206 : vector<8x8xf32>
    %208 = math.exp %207 : vector<8x8xf32>
    %cst_71 = arith.constant dense<0.000000e+00> : vector<8xf32>
    %209 = vector.multi_reduction <add>, %208, %cst_71 [1] : vector<8x8xf32> to vector<8xf32>
    %210 = vector.shape_cast %209 : vector<8xf32> to vector<8x1xf32>
    %211 = arith.truncf %208 : vector<8x8xf32> to vector<8x8xbf16>
    %cst_72 = arith.constant dense<0.000000e+00> : vector<8x32xf32>
    %212 = tpu.matmul %211, %176, %cst_72 {dimension_numbers = #tpu.dot_dimension_numbers<[1], [0], [0], [1], [0, 0, 1, 1], [], []>} : vector<8x8xbf16>, vector<8x32xbf16>, vector<8x32xf32> -> vector<8x32xf32>
    %213 = vector.broadcast %210 : vector<8x1xf32> to vector<8x32xf32>
    %214 = arith.divf %212, %213 : vector<8x32xf32>
    %215 = arith.truncf %214 : vector<8x32xf32> to vector<8x32xbf16>
    %216 = vector.extract_strided_slice %34 {offsets = [96, 0], sizes = [32, 128], strides = [1, 1]} : vector<128x128xbf16> to vector<32x128xbf16>
    %cst_73 = arith.constant dense<0.000000e+00> : vector<8x128xf32>
    %217 = tpu.matmul %215, %216, %cst_73 {dimension_numbers = #tpu.dot_dimension_numbers<[1], [0], [0], [1], [0, 0, 1, 1], [], []>} : vector<8x32xbf16>, vector<32x128xbf16>, vector<8x128xf32> -> vector<8x128xf32>
    %218 = arith.addf %197, %217 : vector<8x128xf32>
    %219 = tpu.concatenate %126, %218 in 0 : vector<8x128xf32>, vector<8x128xf32> -> vector<16x128xf32>
    %220 = arith.addf %1, %219 : vector<16x128xf32>
    %221 = arith.mulf %220, %220 : vector<16x128xf32>
    %cst_74 = arith.constant dense<0.000000e+00> : vector<16xf32>
    %222 = vector.multi_reduction <add>, %221, %cst_74 [1] : vector<16x128xf32> to vector<16xf32>
    %223 = vector.shape_cast %222 : vector<16xf32> to vector<16x1xf32>
    %cst_75 = arith.constant 1.280000e+02 : f32
    %224 = vector.broadcast %cst_75 : f32 to vector<16x1xf32>
    %225 = arith.divf %223, %224 : vector<16x1xf32>
    %cst_76 = arith.constant 9.99999997E-7 : f32
    %226 = vector.broadcast %cst_76 : f32 to vector<16x1xf32>
    %227 = arith.addf %225, %226 : vector<16x1xf32>
    %228 = math.rsqrt %227 : vector<16x1xf32>
    %229 = vector.broadcast %228 : vector<16x1xf32> to vector<16x128xf32>
    %230 = arith.mulf %220, %229 : vector<16x128xf32>
    %c0_77 = arith.constant 0 : index
    %c0_78 = arith.constant 0 : index
    %231 = vector.load %arg6[%c0_77, %c0_78] : memref<1x128xf32, #tpu.memory_space<vmem>>, vector<1x128xf32>
    %232 = vector.broadcast %231 : vector<1x128xf32> to vector<16x128xf32>
    %233 = arith.mulf %230, %232 : vector<16x128xf32>
    %234 = arith.truncf %233 : vector<16x128xf32> to vector<16x128xbf16>
    %c0_79 = arith.constant 0 : index
    %c0_80 = arith.constant 0 : index
    %235 = vector.load %arg7[%c0_79, %c0_80] : memref<128x512xbf16, #tpu.memory_space<vmem>>, vector<128x512xbf16>
    %cst_81 = arith.constant dense<0.000000e+00> : vector<16x512xf32>
    %236 = tpu.matmul %234, %235, %cst_81 {dimension_numbers = #tpu.dot_dimension_numbers<[1], [0], [0], [1], [0, 0, 1, 1], [], []>} : vector<16x128xbf16>, vector<128x512xbf16>, vector<16x512xf32> -> vector<16x512xf32>
    %237 = vector.extract_strided_slice %236 {offsets = [0, 0], sizes = [16, 256], strides = [1, 1]} : vector<16x512xf32> to vector<16x256xf32>
    %238 = vector.extract_strided_slice %236 {offsets = [0, 256], sizes = [16, 256], strides = [1, 1]} : vector<16x512xf32> to vector<16x256xf32>
    %cst_82 = arith.constant 5.000000e-01 : f32
    %239 = vector.broadcast %cst_82 : f32 to vector<16x256xf32>
    %240 = arith.mulf %239, %237 : vector<16x256xf32>
    %241 = math.tanh %240 : vector<16x256xf32>
    %cst_83 = arith.constant 1.000000e+00 : f32
    %242 = vector.broadcast %cst_83 : f32 to vector<16x256xf32>
    %243 = arith.addf %241, %242 : vector<16x256xf32>
    %cst_84 = arith.constant 5.000000e-01 : f32
    %244 = vector.broadcast %cst_84 : f32 to vector<16x256xf32>
    %245 = arith.mulf %244, %243 : vector<16x256xf32>
    %246 = arith.mulf %237, %245 : vector<16x256xf32>
    %247 = arith.mulf %246, %238 : vector<16x256xf32>
    %248 = arith.truncf %247 : vector<16x256xf32> to vector<16x256xbf16>
    %c0_85 = arith.constant 0 : index
    %c0_86 = arith.constant 0 : index
    %249 = vector.load %arg8[%c0_85, %c0_86] : memref<256x128xbf16, #tpu.memory_space<vmem>>, vector<256x128xbf16>
    %cst_87 = arith.constant dense<0.000000e+00> : vector<16x128xf32>
    %250 = tpu.matmul %248, %249, %cst_87 {dimension_numbers = #tpu.dot_dimension_numbers<[1], [0], [0], [1], [0, 0, 1, 1], [], []>} : vector<16x256xbf16>, vector<256x128xbf16>, vector<16x128xf32> -> vector<16x128xf32>
    %251 = arith.addf %220, %250 : vector<16x128xf32>
    %252 = arith.truncf %251 : vector<16x128xf32> to vector<16x128xbf16>
    %c0_88 = arith.constant 0 : index
    %c0_89 = arith.constant 0 : index
    %253 = vector.load %arg11[%c0_88, %c0_89] : memref<16x128xbf16, #tpu.memory_space<vmem>>, vector<16x128xbf16>
    tpu.vector_store %arg11[%c0_88, %c0_89], %252 {strides = array<i32>} : memref<16x128xbf16, #tpu.memory_space<vmem>>, vector<16x128xbf16>,
    return
  }
  func.func @transform_0(%arg0: i32) -> (i32, i32) {
    %c0_i32 = arith.constant 0 : i32
    %c0_i32_0 = arith.constant 0 : i32
    %c0_i32_1 = arith.constant 0 : i32
    return %c0_i32, %c0_i32_0 : i32, i32
  }
  func.func @transform_1(%arg0: i32) -> (i32, i32) {
    %c0_i32 = arith.constant 0 : i32
    %c0_i32_0 = arith.constant 0 : i32
    %c0_i32_1 = arith.constant 0 : i32
    return %c0_i32, %c0_i32_0 : i32, i32
  }
  func.func @transform_2(%arg0: i32) -> (i32, i32) {
    %c0_i32 = arith.constant 0 : i32
    %c0_i32_0 = arith.constant 0 : i32
    %c0_i32_1 = arith.constant 0 : i32
    return %c0_i32, %c0_i32_0 : i32, i32
  }
  func.func @transform_3(%arg0: i32) -> (i32, i32) {
    %c0_i32 = arith.constant 0 : i32
    %c0_i32_0 = arith.constant 0 : i32
    %c0_i32_1 = arith.constant 0 : i32
    return %c0_i32, %c0_i32_0 : i32, i32
  }
  func.func @transform_4(%arg0: i32) -> (i32, i32) {
    %c0_i32 = arith.constant 0 : i32
    %c0_i32_0 = arith.constant 0 : i32
    %c0_i32_1 = arith.constant 0 : i32
    return %c0_i32, %c0_i32_0 : i32, i32
  }
  func.func @transform_5(%arg0: i32) -> (i32, i32) {
    %c0_i32 = arith.constant 0 : i32
    %c0_i32_0 = arith.constant 0 : i32
    %c0_i32_1 = arith.constant 0 : i32
    return %c0_i32, %c0_i32_0 : i32, i32
  }
  func.func @transform_6(%arg0: i32) -> (i32, i32) {
    %c0_i32 = arith.constant 0 : i32
    %c0_i32_0 = arith.constant 0 : i32
    %c0_i32_1 = arith.constant 0 : i32
    return %c0_i32, %c0_i32_0 : i32, i32
  }
  func.func @transform_7(%arg0: i32) -> (i32, i32) {
    %c0_i32 = arith.constant 0 : i32
    %c0_i32_0 = arith.constant 0 : i32
    %c0_i32_1 = arith.constant 0 : i32
    return %c0_i32, %c0_i32_0 : i32, i32
  }
  func.func @transform_8(%arg0: i32) -> (i32, i32) {
    %c0_i32 = arith.constant 0 : i32
    %c0_i32_0 = arith.constant 0 : i32
    %c0_i32_1 = arith.constant 0 : i32
    return %c0_i32, %c0_i32_0 : i32, i32
  }
  func.func @transform_9(%arg0: i32) -> (i32, i32) {
    %c0_i32 = arith.constant 0 : i32
    %c0_i32_0 = arith.constant 0 : i32
    %c0_i32_1 = arith.constant 0 : i32
    return %c0_i32, %c0_i32_0 : i32, i32
  }
  func.func @transform_10(%arg0: i32) -> (i32, i32) {
    %c0_i32 = arith.constant 0 : i32
    %c0_i32_0 = arith.constant 0 : i32
    %c0_i32_1 = arith.constant 0 : i32
    return %c0_i32, %c0_i32_0 : i32, i32
  }
}

module attributes {stable_mosaic.version = 11 : i64} {
  func.func @_lmhead_ce_kernel(%arg0: i32, %arg1: memref<16x1xi32, #tpu.memory_space<vmem>>, %arg2: memref<16x128xbf16, #tpu.memory_space<vmem>>, %arg3: memref<1x128xf32, #tpu.memory_space<vmem>>, %arg4: memref<128x128xbf16, #tpu.memory_space<vmem>>, %arg5: memref<16x128xf32, #tpu.memory_space<vmem>>, %arg6: memref<16x1xf32, #tpu.memory_space<vmem>>, %arg7: memref<16x128xbf16, #tpu.memory_space<vmem>>, %arg8: memref<16x1xf32, #tpu.memory_space<vmem>>, %arg9: memref<16x1xf32, #tpu.memory_space<vmem>>, %arg10: memref<16x1xf32, #tpu.memory_space<vmem>>) attributes {dimension_semantics = [#tpu.dimension_semantics<arbitrary>], iteration_bounds = array<i64: 2>, scalar_prefetch = 0 : i64, scratch_operands = 4 : i64, tpu.core_type = #tpu.core_type<tc>, window_params = [{pipeline_mode = #tpu.pipeline_mode<synchronous>, transform_indices = @transform_0, window_bounds = array<i64: 16, 1>}, {pipeline_mode = #tpu.pipeline_mode<synchronous>, transform_indices = @transform_1, window_bounds = array<i64: 16, 128>}, {pipeline_mode = #tpu.pipeline_mode<synchronous>, transform_indices = @transform_2, window_bounds = array<i64: 1, 128>}, {transform_indices = @transform_3, window_bounds = array<i64: 128, 128>}, {transform_indices = @transform_4, window_bounds = array<i64: 16, 128>}, {pipeline_mode = #tpu.pipeline_mode<synchronous>, transform_indices = @transform_5, window_bounds = array<i64: 16, 1>}]} {
    %c0_i32 = arith.constant 0 : i32
    %0 = arith.cmpi eq, %arg0, %c0_i32 : i32
    %1 = arith.extui %0 : i1 to i32
    %c0_i32_0 = arith.constant 0 : i32
    %2 = arith.cmpi ne, %1, %c0_i32_0 : i32
    scf.if %2 {
      %c0_27 = arith.constant 0 : index
      %c0_28 = arith.constant 0 : index
      %41 = vector.load %arg2[%c0_27, %c0_28] : memref<16x128xbf16, #tpu.memory_space<vmem>>, vector<16x128xbf16>
      %42 = arith.extf %41 : vector<16x128xbf16> to vector<16x128xf32>
      %43 = arith.mulf %42, %42 : vector<16x128xf32>
      %cst_29 = arith.constant dense<0.000000e+00> : vector<16xf32>
      %44 = vector.multi_reduction <add>, %43, %cst_29 [1] : vector<16x128xf32> to vector<16xf32>
      %45 = vector.shape_cast %44 : vector<16xf32> to vector<16x1xf32>
      %cst_30 = arith.constant 1.280000e+02 : f32
      %46 = vector.broadcast %cst_30 : f32 to vector<16x1xf32>
      %47 = arith.divf %45, %46 : vector<16x1xf32>
      %cst_31 = arith.constant 9.99999997E-7 : f32
      %48 = vector.broadcast %cst_31 : f32 to vector<16x1xf32>
      %49 = arith.addf %47, %48 : vector<16x1xf32>
      %50 = math.rsqrt %49 : vector<16x1xf32>
      %51 = vector.broadcast %50 : vector<16x1xf32> to vector<16x128xf32>
      %52 = arith.mulf %42, %51 : vector<16x128xf32>
      %c0_32 = arith.constant 0 : index
      %c0_33 = arith.constant 0 : index
      %53 = vector.load %arg3[%c0_32, %c0_33] : memref<1x128xf32, #tpu.memory_space<vmem>>, vector<1x128xf32>
      %54 = vector.broadcast %53 : vector<1x128xf32> to vector<16x128xf32>
      %55 = arith.mulf %52, %54 : vector<16x128xf32>
      %56 = arith.truncf %55 : vector<16x128xf32> to vector<16x128xbf16>
      %c0_34 = arith.constant 0 : index
      %c0_35 = arith.constant 0 : index
      %57 = vector.load %arg7[%c0_34, %c0_35] : memref<16x128xbf16, #tpu.memory_space<vmem>>, vector<16x128xbf16>
      tpu.vector_store %arg7[%c0_34, %c0_35], %56 {strides = array<i32>} : memref<16x128xbf16, #tpu.memory_space<vmem>>, vector<16x128xbf16>,
      %cst_36 = arith.constant -1.000000e+30 : f32
      %58 = vector.broadcast %cst_36 : f32 to vector<16x1xf32>
      %c0_37 = arith.constant 0 : index
      %c0_38 = arith.constant 0 : index
      %59 = vector.load %arg8[%c0_37, %c0_38] : memref<16x1xf32, #tpu.memory_space<vmem>>, vector<16x1xf32>
      tpu.vector_store %arg8[%c0_37, %c0_38], %58 {strides = array<i32>} : memref<16x1xf32, #tpu.memory_space<vmem>>, vector<16x1xf32>,
      %cst_39 = arith.constant 0.000000e+00 : f32
      %60 = vector.broadcast %cst_39 : f32 to vector<16x1xf32>
      %c0_40 = arith.constant 0 : index
      %c0_41 = arith.constant 0 : index
      %61 = vector.load %arg9[%c0_40, %c0_41] : memref<16x1xf32, #tpu.memory_space<vmem>>, vector<16x1xf32>
      tpu.vector_store %arg9[%c0_40, %c0_41], %60 {strides = array<i32>} : memref<16x1xf32, #tpu.memory_space<vmem>>, vector<16x1xf32>,
      %cst_42 = arith.constant 0.000000e+00 : f32
      %62 = vector.broadcast %cst_42 : f32 to vector<16x1xf32>
      %c0_43 = arith.constant 0 : index
      %c0_44 = arith.constant 0 : index
      %63 = vector.load %arg10[%c0_43, %c0_44] : memref<16x1xf32, #tpu.memory_space<vmem>>, vector<16x1xf32>
      tpu.vector_store %arg10[%c0_43, %c0_44], %62 {strides = array<i32>} : memref<16x1xf32, #tpu.memory_space<vmem>>, vector<16x1xf32>,
      %cst_45 = arith.constant 0.000000e+00 : f32
      %64 = vector.broadcast %cst_45 : f32 to vector<16x1xf32>
      %c0_46 = arith.constant 0 : index
      %c0_47 = arith.constant 0 : index
      %65 = vector.load %arg6[%c0_46, %c0_47] : memref<16x1xf32, #tpu.memory_space<vmem>>, vector<16x1xf32>
      tpu.vector_store %arg6[%c0_46, %c0_47], %64 {strides = array<i32>} : memref<16x1xf32, #tpu.memory_space<vmem>>, vector<16x1xf32>,
    } else {
    }
    %c0 = arith.constant 0 : index
    %c0_1 = arith.constant 0 : index
    %3 = vector.load %arg7[%c0, %c0_1] : memref<16x128xbf16, #tpu.memory_space<vmem>>, vector<16x128xbf16>
    %c0_2 = arith.constant 0 : index
    %c0_3 = arith.constant 0 : index
    %4 = vector.load %arg4[%c0_2, %c0_3] : memref<128x128xbf16, #tpu.memory_space<vmem>>, vector<128x128xbf16>
    %cst = arith.constant dense<0.000000e+00> : vector<16x128xf32>
    %5 = tpu.matmul %3, %4, %cst {dimension_numbers = #tpu.dot_dimension_numbers<[1], [0], [0], [1], [0, 0, 1, 1], [], []>} : vector<16x128xbf16>, vector<128x128xbf16>, vector<16x128xf32> -> vector<16x128xf32>
    %c0_4 = arith.constant 0 : index
    %c0_5 = arith.constant 0 : index
    %6 = vector.load %arg5[%c0_4, %c0_5] : memref<16x128xf32, #tpu.memory_space<vmem>>, vector<16x128xf32>
    tpu.vector_store %arg5[%c0_4, %c0_5], %5 {strides = array<i32>} : memref<16x128xf32, #tpu.memory_space<vmem>>, vector<16x128xf32>,
    %c0_6 = arith.constant 0 : index
    %c0_7 = arith.constant 0 : index
    %7 = vector.load %arg1[%c0_6, %c0_7] : memref<16x1xi32, #tpu.memory_space<vmem>>, vector<16x1xi32>
    %8 = tpu.iota {dimensions = array<i32: 1>} : vector<16x128xi32>
    %c128_i32 = arith.constant 128 : i32
    %9 = arith.muli %arg0, %c128_i32 : i32
    %10 = vector.broadcast %9 : i32 to vector<16x128xi32>
    %11 = arith.addi %8, %10 : vector<16x128xi32>
    %c0_8 = arith.constant 0 : index
    %c0_9 = arith.constant 0 : index
    %12 = vector.load %arg8[%c0_8, %c0_9] : memref<16x1xf32, #tpu.memory_space<vmem>>, vector<16x1xf32>
    %cst_10 = arith.constant dense<0xFF800000> : vector<16xf32>
    %13 = vector.multi_reduction <maximumf>, %5, %cst_10 [1] : vector<16x128xf32> to vector<16xf32>
    %14 = vector.shape_cast %13 : vector<16xf32> to vector<16x1xf32>
    %15 = arith.maximumf %12, %14 : vector<16x1xf32>
    %c0_11 = arith.constant 0 : index
    %c0_12 = arith.constant 0 : index
    %16 = vector.load %arg8[%c0_11, %c0_12] : memref<16x1xf32, #tpu.memory_space<vmem>>, vector<16x1xf32>
    %17 = arith.subf %16, %15 : vector<16x1xf32>
    %18 = math.exp %17 : vector<16x1xf32>
    %19 = vector.broadcast %15 : vector<16x1xf32> to vector<16x128xf32>
    %20 = arith.subf %5, %19 : vector<16x128xf32>
    %21 = math.exp %20 : vector<16x128xf32>
    %c0_13 = arith.constant 0 : index
    %c0_14 = arith.constant 0 : index
    %22 = vector.load %arg9[%c0_13, %c0_14] : memref<16x1xf32, #tpu.memory_space<vmem>>, vector<16x1xf32>
    %23 = arith.mulf %18, %22 : vector<16x1xf32>
    %cst_15 = arith.constant dense<0.000000e+00> : vector<16xf32>
    %24 = vector.multi_reduction <add>, %21, %cst_15 [1] : vector<16x128xf32> to vector<16xf32>
    %25 = vector.shape_cast %24 : vector<16xf32> to vector<16x1xf32>
    %26 = arith.addf %23, %25 : vector<16x1xf32>
    %c0_16 = arith.constant 0 : index
    %c0_17 = arith.constant 0 : index
    %27 = vector.load %arg9[%c0_16, %c0_17] : memref<16x1xf32, #tpu.memory_space<vmem>>, vector<16x1xf32>
    tpu.vector_store %arg9[%c0_16, %c0_17], %26 {strides = array<i32>} : memref<16x1xf32, #tpu.memory_space<vmem>>, vector<16x1xf32>,
    %c0_18 = arith.constant 0 : index
    %c0_19 = arith.constant 0 : index
    %28 = vector.load %arg10[%c0_18, %c0_19] : memref<16x1xf32, #tpu.memory_space<vmem>>, vector<16x1xf32>
    %29 = vector.broadcast %7 : vector<16x1xi32> to vector<16x128xi32>
    %30 = arith.cmpi eq, %11, %29 : vector<16x128xi32>
    %cst_20 = arith.constant 0.000000e+00 : f32
    %31 = vector.broadcast %cst_20 : f32 to vector<16x128xf32>
    %32 = arith.select %30, %5, %31 : vector<16x128xi1>, vector<16x128xf32>
    %cst_21 = arith.constant dense<0.000000e+00> : vector<16xf32>
    %33 = vector.multi_reduction <add>, %32, %cst_21 [1] : vector<16x128xf32> to vector<16xf32>
    %34 = vector.shape_cast %33 : vector<16xf32> to vector<16x1xf32>
    %35 = arith.addf %28, %34 : vector<16x1xf32>
    %c0_22 = arith.constant 0 : index
    %c0_23 = arith.constant 0 : index
    %36 = vector.load %arg10[%c0_22, %c0_23] : memref<16x1xf32, #tpu.memory_space<vmem>>, vector<16x1xf32>
    tpu.vector_store %arg10[%c0_22, %c0_23], %35 {strides = array<i32>} : memref<16x1xf32, #tpu.memory_space<vmem>>, vector<16x1xf32>,
    %c0_24 = arith.constant 0 : index
    %c0_25 = arith.constant 0 : index
    %37 = vector.load %arg8[%c0_24, %c0_25] : memref<16x1xf32, #tpu.memory_space<vmem>>, vector<16x1xf32>
    tpu.vector_store %arg8[%c0_24, %c0_25], %15 {strides = array<i32>} : memref<16x1xf32, #tpu.memory_space<vmem>>, vector<16x1xf32>,
    %c1_i32 = arith.constant 1 : i32
    %38 = arith.cmpi eq, %arg0, %c1_i32 : i32
    %39 = arith.extui %38 : i1 to i32
    %c0_i32_26 = arith.constant 0 : i32
    %40 = arith.cmpi ne, %39, %c0_i32_26 : i32
    scf.if %40 {
      %c0_27 = arith.constant 0 : index
      %c0_28 = arith.constant 0 : index
      %41 = vector.load %arg8[%c0_27, %c0_28] : memref<16x1xf32, #tpu.memory_space<vmem>>, vector<16x1xf32>
      %c0_29 = arith.constant 0 : index
      %c0_30 = arith.constant 0 : index
      %42 = vector.load %arg9[%c0_29, %c0_30] : memref<16x1xf32, #tpu.memory_space<vmem>>, vector<16x1xf32>
      %43 = math.log %42 : vector<16x1xf32>
      %44 = arith.addf %41, %43 : vector<16x1xf32>
      %c0_31 = arith.constant 0 : index
      %c0_32 = arith.constant 0 : index
      %45 = vector.load %arg10[%c0_31, %c0_32] : memref<16x1xf32, #tpu.memory_space<vmem>>, vector<16x1xf32>
      %46 = arith.subf %44, %45 : vector<16x1xf32>
      %c0_33 = arith.constant 0 : index
      %c0_34 = arith.constant 0 : index
      %47 = vector.load %arg6[%c0_33, %c0_34] : memref<16x1xf32, #tpu.memory_space<vmem>>, vector<16x1xf32>
      tpu.vector_store %arg6[%c0_33, %c0_34], %46 {strides = array<i32>} : memref<16x1xf32, #tpu.memory_space<vmem>>, vector<16x1xf32>,
    } else {
    }
    return
  }
  func.func @transform_0(%arg0: i32) -> (i32, i32) {
    %c0_i32 = arith.constant 0 : i32
    %c0_i32_0 = arith.constant 0 : i32
    %c0_i32_1 = arith.constant 0 : i32
    return %c0_i32, %c0_i32_0 : i32, i32
  }
  func.func @transform_1(%arg0: i32) -> (i32, i32) {
    %c0_i32 = arith.constant 0 : i32
    %c0_i32_0 = arith.constant 0 : i32
    %c0_i32_1 = arith.constant 0 : i32
    return %c0_i32, %c0_i32_0 : i32, i32
  }
  func.func @transform_2(%arg0: i32) -> (i32, i32) {
    %c0_i32 = arith.constant 0 : i32
    %c0_i32_0 = arith.constant 0 : i32
    %c0_i32_1 = arith.constant 0 : i32
    return %c0_i32, %c0_i32_0 : i32, i32
  }
  func.func @transform_3(%arg0: i32) -> (i32, i32) {
    %c0_i32 = arith.constant 0 : i32
    %c0_i32_0 = arith.constant 0 : i32
    return %c0_i32, %arg0 : i32, i32
  }
  func.func @transform_4(%arg0: i32) -> (i32, i32) {
    %c0_i32 = arith.constant 0 : i32
    %c0_i32_0 = arith.constant 0 : i32
    return %c0_i32, %arg0 : i32, i32
  }
  func.func @transform_5(%arg0: i32) -> (i32, i32) {
    %c0_i32 = arith.constant 0 : i32
    %c0_i32_0 = arith.constant 0 : i32
    %c0_i32_1 = arith.constant 0 : i32
    return %c0_i32, %c0_i32_0 : i32, i32
  }
}

</mosaic_0001>

<llo_original>
// kernel: tile.13
$region0: #{tile.13}
  #allocation0 [shape = 's32[1]{0}', space=sflag, size = 0x4, scoped, tag = 'scoped memory for tile.13']
  %s0 = inlined_call_operand.vmem [shape: f32[8,32], index: 0, kind: input, shape index: {}]
  %s1 = inlined_call_operand.vmem [shape: f32[2,8,6,32], index: 1, kind: output, shape index: {}]
  // Predicated region
  $region2: #{tile.13} parent=0 // pred_check
    _
  $region3: #{tile.13} parent=0 // pred_check_branch
    %3 = sbr.rel (0) target = $region5
  $region4: #{tile.13} parent=0 // pred_region
    _
  $region5: #{tile.13} parent=0 // pred_fallthru
    _
  %v4 = vld [vmem:[%s0] ss:$0 sm:$0xff]
  %5 = vst [vmem:[%s1] sm:$0xff] %v4
  %s6 = scalar_lea.vmem %s1, 64
  %7 = vst [vmem:[%s6] sm:$0xff] %v4
  %s8 = scalar_lea.vmem %s0, 1
  %v9 = vld [vmem:[%s8] ss:$0 sm:$0xff]
  %s10 = scalar_lea.vmem %s1, 8
  %11 = vst [vmem:[%s10] sm:$0xff] %v9
  %s12 = scalar_lea.vmem %s1, 72
  %13 = vst [vmem:[%s12] sm:$0xff] %v9
  %s14 = scalar_lea.vmem %s0, 2
  %v15 = vld [vmem:[%s14] ss:$0 sm:$0xff]
  %s16 = scalar_lea.vmem %s1, 16
  %17 = vst [vmem:[%s16] sm:$0xff] %v15
  %s18 = scalar_lea.vmem %s1, 80
  %19 = vst [vmem:[%s18] sm:$0xff] %v15
  %s20 = scalar_lea.vmem %s0, 3
  %v21 = vld [vmem:[%s20] ss:$0 sm:$0xff]
  %s22 = scalar_lea.vmem %s1, 24
  %23 = vst [vmem:[%s22] sm:$0xff] %v21
  %s24 = scalar_lea.vmem %s1, 88
  %25 = vst [vmem:[%s24] sm:$0xff] %v21
  %s26 = scalar_lea.vmem %s0, 4
  %v27 = vld [vmem:[%s26] ss:$0 sm:$0xff]
  %s28 = scalar_lea.vmem %s1, 32
  %29 = vst [vmem:[%s28] sm:$0xff] %v27
  %s30 = scalar_lea.vmem %s1, 96
  %31 = vst [vmem:[%s30] sm:$0xff] %v27
  %s32 = scalar_lea.vmem %s0, 5
  %v33 = vld [vmem:[%s32] ss:$0 sm:$0xff]
  %s34 = scalar_lea.vmem %s1, 40
  %35 = vst [vmem:[%s34] sm:$0xff] %v33
  %s36 = scalar_lea.vmem %s1, 104
  %37 = vst [vmem:[%s36] sm:$0xff] %v33
  %s38 = scalar_lea.vmem %s0, 6
  %v39 = vld [vmem:[%s38] ss:$0 sm:$0xff]
  %s40 = scalar_lea.vmem %s1, 48
  %41 = vst [vmem:[%s40] sm:$0xff] %v39
  %s42 = scalar_lea.vmem %s1, 112
  %43 = vst [vmem:[%s42] sm:$0xff] %v39
  %s44 = scalar_lea.vmem %s0, 7
  %v45 = vld [vmem:[%s44] ss:$0 sm:$0xff]
  %s46 = scalar_lea.vmem %s1, 56
  %47 = vst [vmem:[%s46] sm:$0xff] %v45
  %s48 = scalar_lea.vmem %s1, 120
  %49 = vst [vmem:[%s48] sm:$0xff] %v45

// kernel: tile.14
$region0: #{tile.14}
  %s0 = inlined_call_operand.vmem [shape: f32[2,8,6,32], index: 0, kind: input, shape index: {}]
  %s1 = inlined_call_operand.vmem [shape: f32[16,192], index: 1, kind: output, shape index: {}]
  %v2 = vld [vmem:[%s0] ss:$4 sm:$0xff]
  %vm3 = vcmask 261120
  %4 = vst.msk [vmem:[%s1] ss:$8 sm:$0x3] %vm3, %v2
  %s5 = scalar_lea.vmem %s1, 4294967281
  %6 = vst.msk [vmem:[%s5] ss:$8 sm:$0xc] %vm3, %v2
  %s7 = scalar_lea.vmem %s1, 4294967266
  %8 = vst.msk [vmem:[%s7] ss:$8 sm:$0x30] %vm3, %v2
  %s9 = scalar_lea.vmem %s1, 4294967251
  %10 = vst.msk [vmem:[%s9] ss:$8 sm:$0xc0] %vm3, %v2
  %s11 = scalar_lea.vmem %s0, 32
  %v12 = vld [vmem:[%s11] ss:$4 sm:$0xff]
  %vm13 = vcmask 261120
  %s14 = scalar_lea.vmem %s1, 4
  %15 = vst.msk [vmem:[%s14] ss:$8 sm:$0x3] %vm13, %v12
  %s16 = scalar_lea.vmem %s1, 4294967285
  %17 = vst.msk [vmem:[%s16] ss:$8 sm:$0xc] %vm13, %v12
  %s18 = scalar_lea.vmem %s1, 4294967270
  %19 = vst.msk [vmem:[%s18] ss:$8 sm:$0x30] %vm13, %v12
  %s20 = scalar_lea.vmem %s1, 4294967255
  %21 = vst.msk [vmem:[%s20] ss:$8 sm:$0xc0] %vm13, %v12
  %s22 = scalar_lea.vmem %s0, 64
  %v23 = vld [vmem:[%s22] ss:$4 sm:$0xff]
  %vm24 = vcmask 261120
  %s25 = scalar_lea.vmem %s1, 16
  %26 = vst.msk [vmem:[%s25] ss:$8 sm:$0x3] %vm24, %v23
  %s27 = scalar_lea.vmem %s1, 1
  %28 = vst.msk [vmem:[%s27] ss:$8 sm:$0xc] %vm24, %v23
  %s29 = scalar_lea.vmem %s1, 4294967282
  %30 = vst.msk [vmem:[%s29] ss:$8 sm:$0x30] %vm24, %v23
  %s31 = scalar_lea.vmem %s1, 4294967267
  %32 = vst.msk [vmem:[%s31] ss:$8 sm:$0xc0] %vm24, %v23
  %s33 = scalar_lea.vmem %s0, 96
  %v34 = vld [vmem:[%s33] ss:$4 sm:$0xff]
  %vm35 = vcmask 261120
  %s36 = scalar_lea.vmem %s1, 20
  %37 = vst.msk [vmem:[%s36] ss:$8 sm:$0x3] %vm35, %v34
  %s38 = scalar_lea.vmem %s1, 5
  %39 = vst.msk [vmem:[%s38] ss:$8 sm:$0xc] %vm35, %v34
  %s40 = scalar_lea.vmem %s1, 4294967286
  %41 = vst.msk [vmem:[%s40] ss:$8 sm:$0x30] %vm35, %v34
  %s42 = scalar_lea.vmem %s1, 4294967271
  %43 = vst.msk [vmem:[%s42] ss:$8 sm:$0xc0] %vm35, %v34
  %s44 = scalar_lea.vmem %s0, 3
  %v45 = vld [vmem:[%s44] ss:$8 sm:$0xf]
  %s46 = scalar_lea.vmem %s0, 3
  %v47 = vld [vmem:[%s46] ss:$8 sm:$0xf0]
  %vm48 = vcmask 1047556
  %v49 = vsel %vm48, %v47, %v45
  %50 = vrot.lane.b32.xlu0 %v49, 96
  %v51 = vpop.permute.xlu0 %50
  %vm52 = vcmask 1048320
  %53 = vst.msk [vmem:[%s1] sm:$0xff] %vm52, %v51
  %s54 = scalar_lea.vmem %s0, 67
  %v55 = vld [vmem:[%s54] ss:$8 sm:$0xf]
  %s56 = scalar_lea.vmem %s0, 67
  %v57 = vld [vmem:[%s56] ss:$8 sm:$0xf0]
  %vm58 = vcmask 1047556
  %v59 = vsel %vm58, %v57, %v55
  %60 = vrot.lane.b32.xlu0 %v59, 96
  %v61 = vpop.permute.xlu0 %60
  %vm62 = vcmask 1048320
  %s63 = scalar_lea.vmem %s1, 16
  %64 = vst.msk [vmem:[%s63] sm:$0xff] %vm62, %v61
  %s65 = scalar_lea.vmem %s0, 2
  %v66 = vld [vmem:[%s65] ss:$8 sm:$0xf]
  %s67 = scalar_lea.vmem %s0, 2
  %v68 = vld [vmem:[%s67] ss:$8 sm:$0xf0]
  %vm69 = vcmask 1047556
  %v70 = vsel %vm69, %v68, %v66
  %71 = vrot.lane.b32.xlu0 %v70, 64
  %v72 = vpop.permute.xlu0 %71
  %vm73 = vcmask 785920
  %74 = vst.msk [vmem:[%s1] sm:$0xff] %vm73, %v72
  %s75 = scalar_lea.vmem %s0, 66
  %v76 = vld [vmem:[%s75] ss:$8 sm:$0xf]
  %s77 = scalar_lea.vmem %s0, 66
  %v78 = vld [vmem:[%s77] ss:$8 sm:$0xf0]
  %vm79 = vcmask 1047556
  %v80 = vsel %vm79, %v78, %v76
  %81 = vrot.lane.b32.xlu0 %v80, 64
  %v82 = vpop.permute.xlu0 %81
  %vm83 = vcmask 785920
  %s84 = scalar_lea.vmem %s1, 16
  %85 = vst.msk [vmem:[%s84] sm:$0xff] %vm83, %v82
  %s86 = scalar_lea.vmem %s0, 1
  %v87 = vld [vmem:[%s86] ss:$8 sm:$0xf]
  %s88 = scalar_lea.vmem %s0, 1
  %v89 = vld [vmem:[%s88] ss:$8 sm:$0xf0]
  %vm90 = vcmask 1047556
  %v91 = vsel %vm90, %v89, %v87
  %92 = vrot.lane.b32.xlu0 %v91, 32
  %v93 = vpop.permute.xlu0 %92
  %vm94 = vcmask 523520
  %95 = vst.msk [vmem:[%s1] sm:$0xff] %vm94, %v93
  %s96 = scalar_lea.vmem %s0, 5
  %v97 = vld [vmem:[%s96] ss:$8 sm:$0xf]
  %s98 = scalar_lea.vmem %s0, 5
  %v99 = vld [vmem:[%s98] ss:$8 sm:$0xf0]
  %vm100 = vcmask 1047556
  %v101 = vsel %vm100, %v99, %v97
  %102 = vrot.lane.b32.xlu0 %v101, 32
  %v103 = vpop.permute.xlu0 %102
  %vm104 = vcmask 523520
  %s105 = scalar_lea.vmem %s1, 8
  %106 = vst.msk [vmem:[%s105] sm:$0xff] %vm104, %v103
  %s107 = scalar_lea.vmem %s0, 65
  %v108 = vld [vmem:[%s107] ss:$8 sm:$0xf]
  %s109 = scalar_lea.vmem %s0, 65
  %v110 = vld [vmem:[%s109] ss:$8 sm:$0xf0]
  %vm111 = vcmask 1047556
  %v112 = vsel %vm111, %v110, %v108
  %113 = vrot.lane.b32.xlu0 %v112, 32
  %v114 = vpop.permute.xlu0 %113
  %vm115 = vcmask 523520
  %s116 = scalar_lea.vmem %s1, 16
  %117 = vst.msk [vmem:[%s116] sm:$0xff] %vm115, %v114
  %s118 = scalar_lea.vmem %s0, 69
  %v119 = vld [vmem:[%s118] ss:$8 sm:$0xf]
  %s120 = scalar_lea.vmem %s0, 69
  %v121 = vld [vmem:[%s120] ss:$8 sm:$0xf0]
  %vm122 = vcmask 1047556
  %v123 = vsel %vm122, %v121, %v119
  %124 = vrot.lane.b32.xlu0 %v123, 32
  %v125 = vpop.permute.xlu0 %124
  %vm126 = vcmask 523520
  %s127 = scalar_lea.vmem %s1, 24
  %128 = vst.msk [vmem:[%s127] sm:$0xff] %vm126, %v125

// kernel: fp8_qwen2_forward.4
$region0: #{fp8_qwen2_forward.4}
  #allocation0 [shape = 'u32[]', space=smem, size = 0x4, offset = 0x4, fixed_abs, tag = 'smem constant byte address 0x4 - core index']
  #allocation1 [shape = 'u32[72,128]{1,0:T(1,128)}', space=vmem, size = 0x9000, scoped, tag = 'internal scratch']
  %s0 = inlined_call_operand.vmem [shape: bf16[16,128], index: 0, kind: input, shape index: {}]
  %s1 = inlined_call_operand.vmem [shape: f32[16,128], index: 1, kind: output, shape index: {0}]
  %s2 = inlined_call_operand.vmem [shape: f32[16,1], index: 2, kind: output, shape index: {1}]
  %3 = xla_tuple %s1, %s2
  %s4 = sld [smem:[#allocation0]]
  $region22: #{fp8_qwen2_forward.4} parent=0
    _
  %s6 = ssub.s32 1, %s4
  %s7 = scalar_select 0, %s6, %s4
  // Predicated region
  $region2: #{fp8_qwen2_forward.4} parent=0 // pred_check
    _
  $region3: #{fp8_qwen2_forward.4} parent=0 // pred_check_branch
    %9 = sbr.rel (0) target = $region5
  $region4: #{fp8_qwen2_forward.4} parent=0 // pred_region
    _
  $region5: #{fp8_qwen2_forward.4} parent=0 // pred_fallthru
    _
  %v10 = vld [vmem:[%s0] sm:$0xf]
  %v11 = vld [vmem:[%s0 + $0x4] sm:$0xf]
  %v12 = vunpack.c.l.bf16 %v10
  %v13 = vunpack.c.l.bf16 %v11
  %v14 = vand.u32 2147483647, %v12
  %v15 = vand.u32 2147483647, %v13
  %16 = vmax.xlane.f32.xlu0 %v14
  %v17 = vpop.xlane.xlu0 %16
  %18 = vmax.xlane.f32.xlu0 %v15
  %v19 = vpop.xlane.xlu0 %18
  %v20 = vmax.f32 %v17, 1e-12
  %v21 = vmax.f32 %v19, 1e-12
  %v22 = vmul.f32 %v20, 0.002232143
  %v23 = vmul.f32 %v21, 0.002232143
  %v24 = vrcp.pop %v22
  %v25 = vmul.f32 %v22, %v24
  %v26 = vsub.f32 1.0, %v25
  %v27 = vmul.f32 %v24, %v26
  %v28 = vadd.f32 %v24, %v27
  %vm29 = vweird.f32 %v22
  %vm30 = vweird.f32 %v24
  %vm31 = vmor %vm29, %vm30
  %v32 = vsel %vm31, %v24, %v28
  %v33 = vand.u32 2147483647, %v22
  %vm34 = vcmp.eq.f32.partialorder %v33, 8.507059e+37
  %v35 = vand.u32 %v22, 2147483648
  %v36 = vor.u32 1.1754944e-38, %v35
  %v37 = vsel %vm34, %v36, %v32
  %v38 = vmul.f32 %v12, %v37
  %v39 = vrcp.pop %v23
  %v40 = vmul.f32 %v23, %v39
  %v41 = vsub.f32 1.0, %v40
  %v42 = vmul.f32 %v39, %v41
  %v43 = vadd.f32 %v39, %v42
  %vm44 = vweird.f32 %v23
  %vm45 = vweird.f32 %v39
  %vm46 = vmor %vm44, %vm45
  %v47 = vsel %vm46, %v39, %v43
  %v48 = vand.u32 2147483647, %v23
  %vm49 = vcmp.eq.f32.partialorder %v48, 8.507059e+37
  %v50 = vand.u32 %v23, 2147483648
  %v51 = vor.u32 1.1754944e-38, %v50
  %v52 = vsel %vm49, %v51, %v47
  %v53 = vmul.f32 %v13, %v52
  %v54 = vmax.f32 %v38, -448.0
  %v55 = vmax.f32 %v53, -448.0
  %v56 = vmin.f32 %v54, 448.0
  %v57 = vmin.f32 %v55, 448.0
  %58 = vst [vmem:[%s1] sm:$0xff] %v56
  %59 = vst [vmem:[%s1 + $0x8] sm:$0xff] %v57
  %vm60 = vcmask 7168
  %61 = vst.msk [vmem:[%s2] sm:$0xff] %vm60, %v22
  %62 = vst.msk [vmem:[%s2 + $0x8] sm:$0xff] %vm60, %v23
  // Predicated region
  $region6: #{fp8_qwen2_forward.4} parent=0 // pred_check
    _
  $region7: #{fp8_qwen2_forward.4} parent=0 // pred_check_branch
    %64 = sbr.rel (0) target = $region9
  $region8: #{fp8_qwen2_forward.4} parent=0 // pred_region
    _
  $region9: #{fp8_qwen2_forward.4} parent=0 // pred_fallthru
    _
  // Predicated region
  $region10: #{fp8_qwen2_forward.4} parent=0 // pred_check
    _
  $region11: #{fp8_qwen2_forward.4} parent=0 // pred_check_branch
    %66 = sbr.rel (0) target = $region13
  $region12: #{fp8_qwen2_forward.4} parent=0 // pred_region
    _
  $region13: #{fp8_qwen2_forward.4} parent=0 // pred_fallthru
    _
  // Predicated region
  $region14: #{fp8_qwen2_forward.4} parent=0 // pred_check
    _
  $region15: #{fp8_qwen2_forward.4} parent=0 // pred_check_branch
    %68 = sbr.rel (0) target = $region17
  $region16: #{fp8_qwen2_forward.4} parent=0 // pred_region
    _
  $region17: #{fp8_qwen2_forward.4} parent=0 // pred_fallthru
    _
  // Predicated region
  $region18: #{fp8_qwen2_forward.4} parent=0 // pred_check
    _
  $region19: #{fp8_qwen2_forward.4} parent=0 // pred_check_branch
    %70 = sbr.rel (0) target = $region21
  $region20: #{fp8_qwen2_forward.4} parent=0 // pred_region
    _
  $region21: #{fp8_qwen2_forward.4} parent=0 // pred_fallthru
    _

// kernel: fp8_qwen2_forward.7
$region0: #{fp8_qwen2_forward.7}
  #allocation0 [shape = 'u32[]', space=smem, size = 0x4, offset = 0x4, fixed_abs, tag = 'smem constant byte address 0x4 - core index']
  #allocation1 [shape = 'u32[72,128]{1,0:T(1,128)}', space=vmem, size = 0x9000, scoped, tag = 'internal scratch']
  #allocation2 [shape = 'bf16[16,128]{1,0:T(8,128)(2,1)}', space=vmem, size = 0x1000, scoped, tag = 'scratch operand']
  #allocation3 [shape = 'f32[16,1]{1,0:T(8,128)}', space=vmem, size = 0x2000, scoped, tag = 'scratch operand']
  #allocation4 [shape = 'f32[16,1]{1,0:T(8,128)}', space=vmem, size = 0x2000, scoped, tag = 'scratch operand']
  #allocation5 [shape = 'f32[16,1]{1,0:T(8,128)}', space=vmem, size = 0x2000, scoped, tag = 'scratch operand']
  %s0 = inlined_call_operand.vmem [shape: s32[16,1], index: 0, kind: input, shape index: {}]
  %s1 = inlined_call_operand.vmem [shape: bf16[16,128], index: 1, kind: input, shape index: {}]
  %s2 = inlined_call_operand.vmem [shape: f32[1,128], index: 2, kind: input, shape index: {}]
  %s3 = inlined_call_operand.vmem [shape: bf16[128,256], index: 3, kind: input, shape index: {}]
  %s4 = inlined_call_operand.hbm [shape: f32[16,256], index: 4, kind: output, shape index: {0}]
  %s5 = inlined_call_operand.vmem [shape: f32[16,1], index: 5, kind: output, shape index: {1}]
  %6 = xla_tuple %s4, %s5
  %s7 = sld [smem:[#allocation0]]
  $region106: #{fp8_qwen2_forward.7} parent=0
    _
  %s9 = ssub.s32 1, %s7
  %s10 = scalar_select 0, %s9, %s7
  $region1: #{fp8_qwen2_forward.7} parent=0
    #allocation6 [shape = 'u8[65536]{0}', space=vmem, size = 0x10000, scoped, tag = 'input window, operand 3']
    #allocation7 [shape = 'u8[16384]{0}', space=vmem, size = 0x4000, scoped, tag = 'output window, operand 0']
    #allocation8 [shape = 's32[2]{0}', space=sflag, size = 0x8, scoped, tag = 'scoped memory for fp8_qwen2_forward.7']
    %11 = vsyncpa [#allocation8], 0
    %s12 = scalar_lea.sflag [#allocation8], 1
    %13 = vsyncpa %s12, 0
    loop: start=0, step=1, limit=4
    $region2: #{fp8_qwen2_forward.7} parent=1 // loop_pre_header
      _
    $region3: #{fp8_qwen2_forward.7} parent=1 // loop_header
      %s15 = sphi 0, %s19
      %p16 = scmp.ge.s32.totalorder %s15, 4
      %s23 = sphi 0, %s23
      %s25 = sphi 0, %s23
      %s26 = sphi 0, %s25
      %s40 = sphi 0, %s26
      %s44 = sphi 0, %s44
      %s46 = sphi 0, %s44
      %s47 = sphi 0, %s46
      %s61 = sphi 0, %s47
      %s65 = sphi 0, %s65
      %s67 = sphi 0, %s65
      %s68 = sphi 0, %s67
      %s82 = sphi 0, %s68
      %s88 = sphi 0, %s90
      %s91 = sphi 0, %s88
      %s92 = sphi 0, %s91
      %s108 = sphi 0, %s92
      %s114 = sphi 0, %s116
      %s117 = sphi 0, %s114
      %s118 = sphi 0, %s117
      %s134 = sphi 0, %s118
      %s138 = sphi 0, %s138
      %s140 = sphi 0, %s138
      %s141 = sphi 0, %s140
      %s155 = sphi 0, %s141
    $region4: #{fp8_qwen2_forward.7} parent=1 // loop_header_branch
      %18 = sbr.rel (%p16) target = $region8
    $region5: #{fp8_qwen2_forward.7} parent=1 // loop_body
      %s20 = ssub.s32 %s15, 1
      %s21 = ssub.s32 %s15, 2
      %s22 = sadd.s32 %s15, 1
      %s24 = sadd.s32 %s23, 1
      %p27 = scmp.eq.s32.totalorder %s15, 1
      %p28 = scmp.ne.s32.totalorder %s23, %s25
      %p29 = scmp.eq.s32.totalorder %s15, 0
      %p30 = por %p28, %p29
      %p31 = scmp.ne.s32.totalorder %s23, %s25
      %p32 = scmp.eq.s32.totalorder %s20, 1
      %p33 = por %p31, %p32
      %p34 = scmp.ne.s32.totalorder %s25, %s26
      %p35 = scmp.eq.s32.totalorder %s20, 0
      %p36 = por %p34, %p35
      %p37 = scmp.ne.s32.totalorder %s25, %s26
      %p38 = scmp.eq.s32.totalorder %s21, 1
      %p39 = por %p37, %p38
      %p41 = scmp.ne.s32.totalorder %s26, %s40
      %p42 = scmp.eq.s32.totalorder %s21, 0
      %p43 = por %p41, %p42
      %s45 = sadd.s32 %s44, 1
      %p48 = scmp.eq.s32.totalorder %s15, 1
      %p49 = scmp.ne.s32.totalorder %s44, %s46
      %p50 = scmp.eq.s32.totalorder %s15, 0
      %p51 = por %p49, %p50
      %p52 = scmp.ne.s32.totalorder %s44, %s46
      %p53 = scmp.eq.s32.totalorder %s20, 1
      %p54 = por %p52, %p53
      %p55 = scmp.ne.s32.totalorder %s46, %s47
      %p56 = scmp.eq.s32.totalorder %s20, 0
      %p57 = por %p55, %p56
      %p58 = scmp.ne.s32.totalorder %s46, %s47
      %p59 = scmp.eq.s32.totalorder %s21, 1
      %p60 = por %p58, %p59
      %p62 = scmp.ne.s32.totalorder %s47, %s61
      %p63 = scmp.eq.s32.totalorder %s21, 0
      %p64 = por %p62, %p63
      %s66 = sadd.s32 %s65, 1
      %p69 = scmp.eq.s32.totalorder %s15, 1
      %p70 = scmp.ne.s32.totalorder %s65, %s67
      %p71 = scmp.eq.s32.totalorder %s15, 0
      %p72 = por %p70, %p71
      %p73 = scmp.ne.s32.totalorder %s65, %s67
      %p74 = scmp.eq.s32.totalorder %s20, 1
      %p75 = por %p73, %p74
      %p76 = scmp.ne.s32.totalorder %s67, %s68
      %p77 = scmp.eq.s32.totalorder %s20, 0
      %p78 = por %p76, %p77
      %p79 = scmp.ne.s32.totalorder %s67, %s68
      %p80 = scmp.eq.s32.totalorder %s21, 1
      %p81 = por %p79, %p80
      %p83 = scmp.ne.s32.totalorder %s68, %s82
      %p84 = scmp.eq.s32.totalorder %s21, 0
      %p85 = por %p83, %p84
      %s86 = ssub.s32 %s15, %s22
      %p87 = scmp.eq.s32.totalorder %s86, 0
      %s89 = sadd.s32 %s88, 1
      %s90 = scalar_select %p87, %s88, %s89
      %p93 = pneg %p87
      %p94 = scmp.eq.s32.totalorder %s15, 1
      %p95 = por %p93, %p94
      %p96 = scmp.ne.s32.totalorder %s88, %s91
      %p97 = scmp.eq.s32.totalorder %s15, 0
      %p98 = por %p96, %p97
      %p99 = scmp.ne.s32.totalorder %s88, %s91
      %p100 = scmp.eq.s32.totalorder %s20, 1
      %p101 = por %p99, %p100
      %p102 = scmp.ne.s32.totalorder %s91, %s92
      %p103 = scmp.eq.s32.totalorder %s20, 0
      %p104 = por %p102, %p103
      %p105 = scmp.ne.s32.totalorder %s91, %s92
      %p106 = scmp.eq.s32.totalorder %s21, 1
      %p107 = por %p105, %p106
      %p109 = scmp.ne.s32.totalorder %s92, %s108
      %p110 = scmp.eq.s32.totalorder %s21, 0
      %p111 = por %p109, %p110
      %s112 = ssub.s32 %s15, %s22
      %p113 = scmp.eq.s32.totalorder %s112, 0
      %s115 = sadd.s32 %s114, 1
      %s116 = scalar_select %p113, %s114, %s115
      %p119 = pneg %p113
      %p120 = scmp.eq.s32.totalorder %s15, 1
      %p121 = por %p119, %p120
      %p122 = scmp.ne.s32.totalorder %s114, %s117
      %p123 = scmp.eq.s32.totalorder %s15, 0
      %p124 = por %p122, %p123
      %p125 = scmp.ne.s32.totalorder %s114, %s117
      %p126 = scmp.eq.s32.totalorder %s20, 1
      %p127 = por %p125, %p126
      %p128 = scmp.ne.s32.totalorder %s117, %s118
      %p129 = scmp.eq.s32.totalorder %s20, 0
      %p130 = por %p128, %p129
      %p131 = scmp.ne.s32.totalorder %s117, %s118
      %p132 = scmp.eq.s32.totalorder %s21, 1
      %p133 = por %p131, %p132
      %p135 = scmp.ne.s32.totalorder %s118, %s134
      %p136 = scmp.eq.s32.totalorder %s21, 0
      %p137 = por %p135, %p136
      %s139 = sadd.s32 %s138, 1
      %p142 = scmp.eq.s32.totalorder %s15, 1
      %p143 = scmp.ne.s32.totalorder %s138, %s140
      %p144 = scmp.eq.s32.totalorder %s15, 0
      %p145 = por %p143, %p144
      %p146 = scmp.ne.s32.totalorder %s138, %s140
      %p147 = scmp.eq.s32.totalorder %s20, 1
      %p148 = por %p146, %p147
      %p149 = scmp.ne.s32.totalorder %s140, %s141
      %p150 = scmp.eq.s32.totalorder %s20, 0
      %p151 = por %p149, %p150
      %p152 = scmp.ne.s32.totalorder %s140, %s141
      %p153 = scmp.eq.s32.totalorder %s21, 1
      %p154 = por %p152, %p153
      %p156 = scmp.ne.s32.totalorder %s141, %s155
      %p157 = scmp.eq.s32.totalorder %s21, 0
      %p158 = por %p156, %p157
      %p159 = scmp.le.s32.totalorder 1, %s15
      %p160 = scmp.lt.s32.totalorder %s15, 3
      %p161 = pnand %p159, %p160
      %p162 = pneg %p161
      // Predicated region
      $region9: #{fp8_qwen2_forward.7} parent=5 // pred_check
        _
      $region10: #{fp8_qwen2_forward.7} parent=5 // pred_check_branch
        %164 = sbr.rel (%p161) target = $region12
      $region11: #{fp8_qwen2_forward.7} parent=5 // pred_region
        %s165 = ssub.s32 %s15, 1
        // Predicated region
        $region13: #{fp8_qwen2_forward.7} parent=11 // pred_check
          %p166 = pneg %p36
        $region14: #{fp8_qwen2_forward.7} parent=11 // pred_check_branch
          %168 = sbr.rel (%p166) target = $region16
        $region15: #{fp8_qwen2_forward.7} parent=11 // pred_region
          _
        $region16: #{fp8_qwen2_forward.7} parent=11 // pred_fallthru
          _
        // Predicated region
        $region17: #{fp8_qwen2_forward.7} parent=11 // pred_check
          %p169 = pneg %p57
        $region18: #{fp8_qwen2_forward.7} parent=11 // pred_check_branch
          %171 = sbr.rel (%p169) target = $region20
        $region19: #{fp8_qwen2_forward.7} parent=11 // pred_region
          _
        $region20: #{fp8_qwen2_forward.7} parent=11 // pred_fallthru
          _
        // Predicated region
        $region21: #{fp8_qwen2_forward.7} parent=11 // pred_check
          %p172 = pneg %p78
        $region22: #{fp8_qwen2_forward.7} parent=11 // pred_check_branch
          %174 = sbr.rel (%p172) target = $region24
        $region23: #{fp8_qwen2_forward.7} parent=11 // pred_region
          _
        $region24: #{fp8_qwen2_forward.7} parent=11 // pred_fallthru
          _
      $region12: #{fp8_qwen2_forward.7} parent=5 // pred_fallthru
        _
      %p175 = scmp.lt.s32.totalorder %s15, 2
      // Predicated region
      $region25: #{fp8_qwen2_forward.7} parent=5 // pred_check
        %p176 = pneg %p175
      $region26: #{fp8_qwen2_forward.7} parent=5 // pred_check_branch
        %178 = sbr.rel (%p176) target = $region28
      $region27: #{fp8_qwen2_forward.7} parent=5 // pred_region
        // Predicated region
        $region29: #{fp8_qwen2_forward.7} parent=27 // pred_check
          %p179 = pneg %p98
        $region30: #{fp8_qwen2_forward.7} parent=27 // pred_check_branch
          %181 = sbr.rel (%p179) target = $region32
        $region31: #{fp8_qwen2_forward.7} parent=27 // pred_region
          %s182 = sand.u32 %s88, 1
          %s183 = sand.u32 %s88, 1
          %s184 = smul.addr %s183, 64
          %s185 = scalar_lea.vmem [#allocation6], %s184
          %s186 = smul.addr %s15, 4
          %s187 = scalar_lea.vmem %s3, %s186
          // Predicated region
          $region33: #{fp8_qwen2_forward.7} parent=31 // pred_check
            _
          $region34: #{fp8_qwen2_forward.7} parent=31 // pred_check_branch
            %189 = sbr.rel (0) target = $region36
          $region35: #{fp8_qwen2_forward.7} parent=31 // pred_region
            // Predicated region
            $region37: #{fp8_qwen2_forward.7} parent=35 // pred_check
              _
            $region38: #{fp8_qwen2_forward.7} parent=35 // pred_check_branch
              %191 = sbr.rel target = $region40
            $region39: #{fp8_qwen2_forward.7} parent=35 // pred_region
              // Predicated region
              $region52: #{fp8_qwen2_forward.7} parent=39 // pred_check
                _
              $region53: #{fp8_qwen2_forward.7} parent=39 // pred_check_branch
                %237 = sbr.rel (0) target = $region55
              $region54: #{fp8_qwen2_forward.7} parent=39 // pred_region
                loop: start=0, step=1, limit=1
                $region56: #{fp8_qwen2_forward.7} parent=54 // loop_pre_header
                  _
                $region57: #{fp8_qwen2_forward.7} parent=54 // loop_header
                  %s239 = sphi 0, %s243
                  %p240 = scmp.ge.s32.totalorder %s239, 1
                  %s244 = sphi %s187, %s187
                  %s245 = sphi %s185, %s185
                $region58: #{fp8_qwen2_forward.7} parent=54 // loop_header_branch
                  %242 = sbr.rel (%p240) target = $region62
                $region59: #{fp8_qwen2_forward.7} parent=54 // loop_body
                  _
                $region60: #{fp8_qwen2_forward.7} parent=54 // loop_footer
                  %s243 = sadd.s32 1, %s239
                $region61: #{fp8_qwen2_forward.7} parent=54 // loop_footer_branch
                  %238 = sbr.rel target = $region57
                $region62: #{fp8_qwen2_forward.7} parent=54 // loop_exit
                  _
                %s247 = ssub.s32 16, 1
                loop: start=0, step=1, limit=1
                $region63: #{fp8_qwen2_forward.7} parent=54 // loop_pre_header
                  _
                $region64: #{fp8_qwen2_forward.7} parent=54 // loop_header
                  %s249 = sphi 0, %s253
                  %p250 = scmp.ge.s32.totalorder %s249, 1
                  %s254 = sphi %s187, %s187
                  %s255 = sphi %s185, %s185
                $region65: #{fp8_qwen2_forward.7} parent=54 // loop_header_branch
                  %252 = sbr.rel (%p250) target = $region69
                $region66: #{fp8_qwen2_forward.7} parent=54 // loop_body
                  %v256 = vld [vmem:[%s254] sm:%s247]
                  %257 = vst [vmem:[%s255] sm:%s247] %v256
                  %v258 = vld [vmem:[%s254 + $0x8] sm:%s247]
                  %259 = vst [vmem:[%s255 + $0x4] sm:%s247] %v258
                  %v260 = vld [vmem:[%s254 + $0x10] sm:%s247]
                  %261 = vst [vmem:[%s255 + $0x8] sm:%s247] %v260
                  %v262 = vld [vmem:[%s254 + $0x18] sm:%s247]
                  %263 = vst [vmem:[%s255 + $0xc] sm:%s247] %v262
                  %v264 = vld [vmem:[%s254 + $0x20] sm:%s247]
                  %265 = vst [vmem:[%s255 + $0x10] sm:%s247] %v264
                  %v266 = vld [vmem:[%s254 + $0x28] sm:%s247]
                  %267 = vst [vmem:[%s255 + $0x14] sm:%s247] %v266
                  %v268 = vld [vmem:[%s254 + $0x30] sm:%s247]
                  %269 = vst [vmem:[%s255 + $0x18] sm:%s247] %v268
                  %v270 = vld [vmem:[%s254 + $0x38] sm:%s247]
                  %271 = vst [vmem:[%s255 + $0x1c] sm:%s247] %v270
                  %v272 = vld [vmem:[%s254 + $0x40] sm:%s247]
                  %273 = vst [vmem:[%s255 + $0x20] sm:%s247] %v272
                  %v274 = vld [vmem:[%s254 + $0x48] sm:%s247]
                  %275 = vst [vmem:[%s255 + $0x24] sm:%s247] %v274
                  %v276 = vld [vmem:[%s254 + $0x50] sm:%s247]
                  %277 = vst [vmem:[%s255 + $0x28] sm:%s247] %v276
                  %v278 = vld [vmem:[%s254 + $0x58] sm:%s247]
                  %279 = vst [vmem:[%s255 + $0x2c] sm:%s247] %v278
                  %v280 = vld [vmem:[%s254 + $0x60] sm:%s247]
                  %281 = vst [vmem:[%s255 + $0x30] sm:%s247] %v280
                  %v282 = vld [vmem:[%s254 + $0x68] sm:%s247]
                  %283 = vst [vmem:[%s255 + $0x34] sm:%s247] %v282
                  %v284 = vld [vmem:[%s254 + $0x70] sm:%s247]
                  %285 = vst [vmem:[%s255 + $0x38] sm:%s247] %v284
                  %v286 = vld [vmem:[%s254 + $0x78] sm:%s247]
                  %287 = vst [vmem:[%s255 + $0x3c] sm:%s247] %v286
                $region67: #{fp8_qwen2_forward.7} parent=54 // loop_footer
                  %s253 = sadd.s32 1, %s249
                $region68: #{fp8_qwen2_forward.7} parent=54 // loop_footer_branch
                  %248 = sbr.rel target = $region64
                $region69: #{fp8_qwen2_forward.7} parent=54 // loop_exit
                  _
              $region55: #{fp8_qwen2_forward.7} parent=39 // pred_fallthru
                _
            $region40: #{fp8_qwen2_forward.7} parent=35 // pred_fallthru
              _
            // Predicated region
            $region41: #{fp8_qwen2_forward.7} parent=35 // pred_check
              _
            $region42: #{fp8_qwen2_forward.7} parent=35 // pred_check_branch
              %193 = sbr.rel (0) target = $region44
            $region43: #{fp8_qwen2_forward.7} parent=35 // pred_region
              %s195 = ssub.s32 16, 1
              loop: start=0, step=1, limit=1
              $region45: #{fp8_qwen2_forward.7} parent=43 // loop_pre_header
                _
              $region46: #{fp8_qwen2_forward.7} parent=43 // loop_header
                %s197 = sphi 0, %s201
                %p198 = scmp.ge.s32.totalorder %s197, 1
                %s202 = sphi %s187, %s187
                %s203 = sphi %s185, %s185
              $region47: #{fp8_qwen2_forward.7} parent=43 // loop_header_branch
                %200 = sbr.rel (%p198) target = $region51
              $region48: #{fp8_qwen2_forward.7} parent=43 // loop_body
                %v204 = vld [vmem:[%s202] sm:%s195]
                %205 = vst [vmem:[%s203] sm:%s195] %v204
                %v206 = vld [vmem:[%s202 + $0x8] sm:%s195]
                %207 = vst [vmem:[%s203 + $0x4] sm:%s195] %v206
                %v208 = vld [vmem:[%s202 + $0x10] sm:%s195]
                %209 = vst [vmem:[%s203 + $0x8] sm:%s195] %v208
                %v210 = vld [vmem:[%s202 + $0x18] sm:%s195]
                %211 = vst [vmem:[%s203 + $0xc] sm:%s195] %v210
                %v212 = vld [vmem:[%s202 + $0x20] sm:%s195]
                %213 = vst [vmem:[%s203 + $0x10] sm:%s195] %v212
                %v214 = vld [vmem:[%s202 + $0x28] sm:%s195]
                %215 = vst [vmem:[%s203 + $0x14] sm:%s195] %v214
                %v216 = vld [vmem:[%s202 + $0x30] sm:%s195]
                %217 = vst [vmem:[%s203 + $0x18] sm:%s195] %v216
                %v218 = vld [vmem:[%s202 + $0x38] sm:%s195]
                %219 = vst [vmem:[%s203 + $0x1c] sm:%s195] %v218
                %v220 = vld [vmem:[%s202 + $0x40] sm:%s195]
                %221 = vst [vmem:[%s203 + $0x20] sm:%s195] %v220
                %v222 = vld [vmem:[%s202 + $0x48] sm:%s195]
                %223 = vst [vmem:[%s203 + $0x24] sm:%s195] %v222
                %v224 = vld [vmem:[%s202 + $0x50] sm:%s195]
                %225 = vst [vmem:[%s203 + $0x28] sm:%s195] %v224
                %v226 = vld [vmem:[%s202 + $0x58] sm:%s195]
                %227 = vst [vmem:[%s203 + $0x2c] sm:%s195] %v226
                %v228 = vld [vmem:[%s202 + $0x60] sm:%s195]
                %229 = vst [vmem:[%s203 + $0x30] sm:%s195] %v228
                %v230 = vld [vmem:[%s202 + $0x68] sm:%s195]
                %231 = vst [vmem:[%s203 + $0x34] sm:%s195] %v230
                %v232 = vld [vmem:[%s202 + $0x70] sm:%s195]
                %233 = vst [vmem:[%s203 + $0x38] sm:%s195] %v232
                %v234 = vld [vmem:[%s202 + $0x78] sm:%s195]
                %235 = vst [vmem:[%s203 + $0x3c] sm:%s195] %v234
              $region49: #{fp8_qwen2_forward.7} parent=43 // loop_footer
                %s201 = sadd.s32 1, %s197
              $region50: #{fp8_qwen2_forward.7} parent=43 // loop_footer_branch
                %196 = sbr.rel target = $region46
              $region51: #{fp8_qwen2_forward.7} parent=43 // loop_exit
                _
            $region44: #{fp8_qwen2_forward.7} parent=35 // pred_fallthru
              _
          $region36: #{fp8_qwen2_forward.7} parent=31 // pred_fallthru
            _
          %288 = vnop
        $region32: #{fp8_qwen2_forward.7} parent=27 // pred_fallthru
          _
      $region28: #{fp8_qwen2_forward.7} parent=5 // pred_fallthru
        _
      %p289 = scmp.le.s32.totalorder 1, %s15
      %p290 = scmp.lt.s32.totalorder %s15, 3
      %p291 = pnand %p289, %p290
      %p292 = pneg %p291
      // Predicated region
      $region70: #{fp8_qwen2_forward.7} parent=5 // pred_check
        _
      $region71: #{fp8_qwen2_forward.7} parent=5 // pred_check_branch
        %294 = sbr.rel (%p291) target = $region73
      $region72: #{fp8_qwen2_forward.7} parent=5 // pred_region
        %s295 = ssub.s32 %s15, 1
        %s296 = sand.u32 %s91, 1
        %s297 = sand.u32 %s91, 1
        %s298 = smul.addr %s297, 64
        %s299 = scalar_lea.vmem [#allocation6], %s298
        // Predicated region
        $region74: #{fp8_qwen2_forward.7} parent=72 // pred_check
          %p300 = pneg %p104
        $region75: #{fp8_qwen2_forward.7} parent=72 // pred_check_branch
          %302 = sbr.rel (%p300) target = $region77
        $region76: #{fp8_qwen2_forward.7} parent=72 // pred_region
          _
        $region77: #{fp8_qwen2_forward.7} parent=72 // pred_fallthru
          _
        %p303 = pneg %p36
        %p304 = pneg %p33
        %p305 = pneg %p57
        %p306 = pneg %p54
        %p307 = pneg %p78
        %p308 = pneg %p75
        %s309 = sand.u32 %s91, 1
        %s310 = sand.u32 %s91, 1
        %s311 = smul.addr %s310, 64
        %s312 = scalar_lea.vmem [#allocation6], %s311
        %p313 = pneg %p104
        %p314 = pneg %p101
        %p315 = pneg %p130
        %p316 = pneg %p127
        %s317 = sand.u32 %s117, 1
        %s318 = scalar_lea.sflag [#allocation8], %s317
        %s319 = sand.u32 %s117, 1
        %s320 = smul.addr %s319, 16
        %s321 = scalar_lea.vmem [#allocation7], %s320
        %p322 = pneg %p151
        %p323 = pneg %p148
        %p324 = scmp.eq.s32.totalorder %s20, 0
        // Predicated region
        $region78: #{fp8_qwen2_forward.7} parent=72 // pred_check
          %p325 = pneg %p324
        $region79: #{fp8_qwen2_forward.7} parent=72 // pred_check_branch
          %327 = sbr.rel (%p325) target = $region81
        $region80: #{fp8_qwen2_forward.7} parent=72 // pred_region
          %v328 = vld [vmem:[%s1] sm:$0xf]
          %v329 = vld [vmem:[%s1 + $0x4] sm:$0xf]
          %v330 = vunpack.c.l.bf16 %v328
          %v331 = vunpack.c.l.bf16 %v329
          %v332 = vmul.f32 %v330, %v330
          %v333 = vmul.f32 %v331, %v331
          %334 = vadd.xlane.f32.xlu0 %v332
          %v335 = vpop.xlane.xlu0 %334
          %336 = vadd.xlane.f32.xlu0 %v333
          %v337 = vpop.xlane.xlu0 %336
          %v338 = vrcp.pop 128.0
          %v339 = vmul.f32 128.0, %v338
          %v340 = vsub.f32 1.0, %v339
          %v341 = vmul.f32 %v338, %v340
          %v342 = vadd.f32 %v338, %v341
          %vm343 = vweird.f32 %v338
          %v344 = vsel %vm343, %v338, %v342
          %v345 = vmul.f32 %v335, %v344
          %v346 = vmul.f32 %v337, %v344
          %v347 = vadd.f32 %v345, 1e-06
          %v348 = vadd.f32 %v346, 1e-06
          %v349 = vrsqrt.pop %v347
          %v350 = vmul.f32 %v349, %v347
          %v351 = vmul.f32 %v350, %v349
          %v352 = vmul.f32 0.5, %v351
          %v353 = vsub.f32 1.5, %v352
          %v354 = vmul.f32 %v349, %v353
          %vm355 = vweird.f32 %v347
          %vm356 = vweird.f32 %v349
          %vm357 = vmor %vm355, %vm356
          %v358 = vsel %vm357, %v349, %v354
          %v359 = vrsqrt.pop %v348
          %v360 = vmul.f32 %v359, %v348
          %v361 = vmul.f32 %v360, %v359
          %v362 = vmul.f32 0.5, %v361
          %v363 = vsub.f32 1.5, %v362
          %v364 = vmul.f32 %v359, %v363
          %vm365 = vweird.f32 %v348
          %vm366 = vweird.f32 %v359
          %vm367 = vmor %vm365, %vm366
          %v368 = vsel %vm367, %v359, %v364
          %v369 = vmul.f32 %v330, %v358
          %v370 = vmul.f32 %v331, %v368
          %v371 = vld [vmem:[%s2] sm:$0x1]
          %v373 = vperm.slane %v371, 0
          %v375 = vmul.f32 %v369, %v373
          %v376 = vmul.f32 %v370, %v373
          %v377 = vpack.c.bf16 %v375, %v375
          %v378 = vpack.c.bf16 %v376, %v376
          %379 = vst [vmem:[#allocation2] sm:$0xf] %v377
          %380 = vst [vmem:[#allocation2 + $0x4] sm:$0xf] %v378
          %vm381 = vcmask 7168
          %382 = vst.msk [vmem:[#allocation3] sm:$0xff] %vm381, -1e+30
          %383 = vst.msk [vmem:[#allocation3 + $0x8] sm:$0xff] %vm381, -1e+30
          %384 = vst.msk [vmem:[#allocation4] sm:$0xff] %vm381, 0.0
          %385 = vst.msk [vmem:[#allocation4 + $0x8] sm:$0xff] %vm381, 0.0
          %386 = vst.msk [vmem:[#allocation5] sm:$0xff] %vm381, 0.0
          %387 = vst.msk [vmem:[#allocation5 + $0x8] sm:$0xff] %vm381, 0.0
          %388 = vst.msk [vmem:[%s5] sm:$0xff] %vm381, 0.0
          %389 = vst.msk [vmem:[%s5 + $0x8] sm:$0xff] %vm381, 0.0
        $region81: #{fp8_qwen2_forward.7} parent=72 // pred_fallthru
          _
        %v390 = vld [vmem:[#allocation2] sm:$0xf]
        %v391 = vld [vmem:[#allocation2 + $0x4] sm:$0xf]
        %v392 = vld [vmem:[%s299] sm:$0xf]
        %v393 = vld [vmem:[%s299 + $0x4] sm:$0xf]
        %v394 = vld [vmem:[%s299 + $0x8] sm:$0xf]
        %v395 = vld [vmem:[%s299 + $0xc] sm:$0xf]
        %v396 = vld [vmem:[%s299 + $0x10] sm:$0xf]
        %v397 = vld [vmem:[%s299 + $0x14] sm:$0xf]
        %v398 = vld [vmem:[%s299 + $0x18] sm:$0xf]
        %v399 = vld [vmem:[%s299 + $0x1c] sm:$0xf]
        %v400 = vld [vmem:[%s299 + $0x20] sm:$0xf]
        %v401 = vld [vmem:[%s299 + $0x24] sm:$0xf]
        %v402 = vld [vmem:[%s299 + $0x28] sm:$0xf]
        %v403 = vld [vmem:[%s299 + $0x2c] sm:$0xf]
        %v404 = vld [vmem:[%s299 + $0x30] sm:$0xf]
        %v405 = vld [vmem:[%s299 + $0x34] sm:$0xf]
        %v406 = vld [vmem:[%s299 + $0x38] sm:$0xf]
        %v407 = vld [vmem:[%s299 + $0x3c] sm:$0xf]
        %v410 = vunpack.c.l.b16 %v390
        %v411 = vunpack.c.l.b16 %v391
        %v412 = vpack.c.b16 %v411, %v410
        %v430 = vunpack.c.l.b16 %v392
        %v431 = vunpack.c.l.b16 %v393
        %v432 = vunpack.c.l.b16 %v394
        %v433 = vunpack.c.l.b16 %v395
        %v434 = vunpack.c.l.b16 %v396
        %v435 = vunpack.c.l.b16 %v397
        %v436 = vunpack.c.l.b16 %v398
        %v437 = vunpack.c.l.b16 %v399
        %v438 = vunpack.c.l.b16 %v400
        %v439 = vunpack.c.l.b16 %v401
        %v440 = vunpack.c.l.b16 %v402
        %v441 = vunpack.c.l.b16 %v403
        %v442 = vunpack.c.l.b16 %v404
        %v443 = vunpack.c.l.b16 %v405
        %v444 = vunpack.c.l.b16 %v406
        %v445 = vunpack.c.l.b16 %v407
        %v446 = vpack.c.b16 %v431, %v430
        %v447 = vpack.c.b16 %v433, %v432
        %v448 = vpack.c.b16 %v435, %v434
        %v449 = vpack.c.b16 %v437, %v436
        %v450 = vpack.c.b16 %v439, %v438
        %v451 = vpack.c.b16 %v441, %v440
        %v452 = vpack.c.b16 %v443, %v442
        %v453 = vpack.c.b16 %v445, %v444
        %462 = vmatpush.bf16.msra.mxu0 %v453
        %463 = vmatpush.bf16.msra.mxu0 %v452
        %464 = vmatpush.bf16.msra.mxu0 %v451
        %465 = vmatpush.bf16.msra.mxu0 %v450
        %466 = vmatpush.bf16.msra.mxu0 %v449
        %467 = vmatpush.bf16.msra.mxu0 %v448
        %468 = vmatpush.bf16.msra.mxu0 %v447
        %469 = vmatpush.bf16.msra.mxu0 %v446
        %470 = vmatmul.bf16.gmra.mxu0 %v412
        %v471 = vpop.f32.mrf.mxu0
        %v472 = vadd.f32 0.0, %v471
        %v473 = vpop.f32.mrf.mxu0
        %v474 = vadd.f32 0.0, %v473
        %475 = vdwg.mxu0
        %476 = vst [vmem:[%s321] sm:$0xff] %v472
        %477 = vst [vmem:[%s321 + $0x8] sm:$0xff] %v474
        %v478 = vld [vmem:[%s0] sm:$0xff]
        %v479 = vld [vmem:[%s0 + $0x8] sm:$0xff]
        %v480 = vlaneseq
        %v481 = vand.u32 %v480, 127
        %s482 = smul.u32 %s20, 128
        %v483 = vstv %s482
        %v484 = vadd.s32 %v481, %v483
        %v485 = vld [vmem:[#allocation3] sm:$0xff]
        %v486 = vld [vmem:[#allocation3 + $0x8] sm:$0xff]
        %487 = vmax.xlane.f32.xlu0 %v472
        %v488 = vpop.xlane.xlu0 %487
        %489 = vmax.xlane.f32.xlu0 %v474
        %v490 = vpop.xlane.xlu0 %489
        %v491 = vmax.f32 %v485, %v488
        %v492 = vmax.f32 %v486, %v490
        %v493 = vsub.f32 %v485, %v491
        %v494 = vsub.f32 %v486, %v492
        %v495 = vmul.f32 %v493, 1.442695
        %v496 = vpow.pop %v495
        %v497 = vmul.f32 %v494, 1.442695
        %v498 = vpow.pop %v497
        %500 = vset.pattern.permute.xlu0 0
        %501 = vperm.xlu0 %500, %v491
        %v502 = vpop.permute.xlu0 %501
        %505 = vset.pattern.permute.xlu0 0
        %506 = vperm.xlu0 %505, %v492
        %v507 = vpop.permute.xlu0 %506
        %v509 = vsub.f32 %v472, %v502
        %v510 = vsub.f32 %v474, %v507
        %v511 = vmul.f32 %v509, 1.442695
        %v512 = vpow.pop %v511
        %v513 = vmul.f32 %v510, 1.442695
        %v514 = vpow.pop %v513
        %v515 = vld [vmem:[#allocation4] sm:$0xff]
        %v516 = vld [vmem:[#allocation4 + $0x8] sm:$0xff]
        %v517 = vmul.f32 %v496, %v515
        %v518 = vmul.f32 %v498, %v516
        %519 = vadd.xlane.f32.xlu0 %v512
        %v520 = vpop.xlane.xlu0 %519
        %521 = vadd.xlane.f32.xlu0 %v514
        %v522 = vpop.xlane.xlu0 %521
        %v523 = vadd.f32 %v517, %v520
        %v524 = vadd.f32 %v518, %v522
        %vm525 = vcmask 7168
        %526 = vst.msk [vmem:[#allocation4] sm:$0xff] %vm525, %v523
        %527 = vst.msk [vmem:[#allocation4 + $0x8] sm:$0xff] %vm525, %v524
        %v528 = vld [vmem:[#allocation5] sm:$0xff]
        %v529 = vld [vmem:[#allocation5 + $0x8] sm:$0xff]
        %530 = vset.pattern.permute.xlu0 0
        %531 = vperm.xlu0 %530, %v478
        %v532 = vpop.permute.xlu0 %531
        %533 = vset.pattern.permute.xlu0 0
        %534 = vperm.xlu0 %533, %v479
        %v535 = vpop.permute.xlu0 %534
        %vm536 = vcmp.eq.s32.totalorder %v484, %v532
        %vm537 = vcmp.eq.s32.totalorder %v484, %v535
        %v538 = vsel %vm536, %v472, 0.0
        %v539 = vsel %vm537, %v474, 0.0
        %540 = vadd.xlane.f32.xlu0 %v538
        %v541 = vpop.xlane.xlu0 %540
        %542 = vadd.xlane.f32.xlu0 %v539
        %v543 = vpop.xlane.xlu0 %542
        %v544 = vadd.f32 %v528, %v541
        %v545 = vadd.f32 %v529, %v543
        %546 = vst.msk [vmem:[#allocation5] sm:$0xff] %vm525, %v544
        %547 = vst.msk [vmem:[#allocation5 + $0x8] sm:$0xff] %vm525, %v545
        %548 = vst.msk [vmem:[#allocation3] sm:$0xff] %vm525, %v491
        %549 = vst.msk [vmem:[#allocation3 + $0x8] sm:$0xff] %vm525, %v492
        %p550 = scmp.eq.s32.totalorder %s20, 1
        // Predicated region
        $region82: #{fp8_qwen2_forward.7} parent=72 // pred_check
          %p551 = pneg %p550
        $region83: #{fp8_qwen2_forward.7} parent=72 // pred_check_branch
          %553 = sbr.rel (%p551) target = $region85
        $region84: #{fp8_qwen2_forward.7} parent=72 // pred_region
          %v554 = vld [vmem:[#allocation3] sm:$0xff]
          %v555 = vld [vmem:[#allocation3 + $0x8] sm:$0xff]
          %v556 = vld [vmem:[#allocation4] sm:$0xff]
          %v557 = vld [vmem:[#allocation4 + $0x8] sm:$0xff]
          %v558 = vlog2.pop %v556
          %v559 = vmul.f32 %v558, 0.6931472
          %v560 = vlog2.pop %v557
          %v561 = vmul.f32 %v560, 0.6931472
          %v562 = vadd.f32 %v554, %v559
          %v563 = vadd.f32 %v555, %v561
          %v564 = vld [vmem:[#allocation5] sm:$0xff]
          %v565 = vld [vmem:[#allocation5 + $0x8] sm:$0xff]
          %v566 = vsub.f32 %v562, %v564
          %v567 = vsub.f32 %v563, %v565
          %568 = vst.msk [vmem:[%s5] sm:$0xff] %vm525, %v566
          %569 = vst.msk [vmem:[%s5 + $0x8] sm:$0xff] %vm525, %v567
        $region85: #{fp8_qwen2_forward.7} parent=72 // pred_fallthru
          _
        %s570 = sand.u32 %s117, 1
        %s571 = scalar_lea.sflag [#allocation8], %s570
        %s572 = sand.u32 %s117, 1
        %s573 = smul.addr %s572, 16
        %s574 = scalar_lea.vmem [#allocation7], %s573
        // Predicated region
        $region86: #{fp8_qwen2_forward.7} parent=72 // pred_check
          %p575 = pneg %p127
        $region87: #{fp8_qwen2_forward.7} parent=72 // pred_check_branch
          %577 = sbr.rel (%p575) target = $region89
        $region88: #{fp8_qwen2_forward.7} parent=72 // pred_region
          %579 = vsyncadd %s571, 0
          %s580 = smul.addr %s20, 8
          %s581 = scalar_lea.hbm %s4, %s580
          %s582 = sshll.u32 %s574, 4
          %s583 = int_to_ptr.vmem [resolvable:$true] %s582
          %s584 = sshll.u32 %s581, 4
          %s585 = int_to_ptr.hbm [resolvable:$true] %s584
          %590 = dma.vmem_to_hbm [thread:$0]  %s583, 256, %s585, %s571, 128, 256, 8
        $region89: #{fp8_qwen2_forward.7} parent=72 // pred_fallthru
          _
        // Predicated region
        $region90: #{fp8_qwen2_forward.7} parent=72 // pred_check
          %p591 = pneg %p148
        $region91: #{fp8_qwen2_forward.7} parent=72 // pred_check_branch
          %593 = sbr.rel (%p591) target = $region93
        $region92: #{fp8_qwen2_forward.7} parent=72 // pred_region
          _
        $region93: #{fp8_qwen2_forward.7} parent=72 // pred_fallthru
          _
        // Predicated region
        $region94: #{fp8_qwen2_forward.7} parent=72 // pred_check
          %p594 = pneg %p148
        $region95: #{fp8_qwen2_forward.7} parent=72 // pred_check_branch
          %596 = sbr.rel (%p594) target = $region97
        $region96: #{fp8_qwen2_forward.7} parent=72 // pred_region
          _
        $region97: #{fp8_qwen2_forward.7} parent=72 // pred_fallthru
          _
      $region73: #{fp8_qwen2_forward.7} parent=5 // pred_fallthru
        _
      %p597 = scmp.le.s32.totalorder 2, %s15
      // Predicated region
      $region98: #{fp8_qwen2_forward.7} parent=5 // pred_check
        %p598 = pneg %p597
      $region99: #{fp8_qwen2_forward.7} parent=5 // pred_check_branch
        %600 = sbr.rel (%p598) target = $region101
      $region100: #{fp8_qwen2_forward.7} parent=5 // pred_region
        %s601 = ssub.s32 %s15, 2
        // Predicated region
        $region102: #{fp8_qwen2_forward.7} parent=100 // pred_check
          %p602 = pneg %p133
        $region103: #{fp8_qwen2_forward.7} parent=100 // pred_check_branch
          %604 = sbr.rel (%p602) target = $region105
        $region104: #{fp8_qwen2_forward.7} parent=100 // pred_region
          %s605 = sand.u32 %s118, 1
          %s606 = scalar_lea.sflag [#allocation8], %s605
          %s607 = sand.u32 %s118, 1
          %s608 = smul.addr %s607, 16
          %s609 = scalar_lea.vmem [#allocation7], %s608
          %611 = dma.done %s606, 256
        $region105: #{fp8_qwen2_forward.7} parent=100 // pred_fallthru
          _
      $region101: #{fp8_qwen2_forward.7} parent=5 // pred_fallthru
        _
    $region6: #{fp8_qwen2_forward.7} parent=1 // loop_footer
      %s19 = sadd.s32 1, %s15
    $region7: #{fp8_qwen2_forward.7} parent=1 // loop_footer_branch
      %14 = sbr.rel target = $region3
    $region8: #{fp8_qwen2_forward.7} parent=1 // loop_exit
      _
    %612 = vsyncpa [#allocation8], 1
    %s613 = scalar_lea.sflag [#allocation8], 1
    %614 = vsyncpa %s613, 1

// kernel: fp8_qwen2_forward.5
$region0: #{fp8_qwen2_forward.5}
  #allocation0 [shape = 'u32[]', space=smem, size = 0x4, offset = 0x4, fixed_abs, tag = 'smem constant byte address 0x4 - core index']
  #allocation1 [shape = 'u32[72,128]{1,0:T(1,128)}', space=vmem, size = 0x9000, scoped, tag = 'internal scratch']
  %s0 = inlined_call_operand.vmem [shape: bf16[16,128], index: 0, kind: input, shape index: {}]
  %s1 = inlined_call_operand.vmem [shape: f32[1,128], index: 1, kind: input, shape index: {}]
  %s2 = inlined_call_operand.vmem [shape: bf16[128,448], index: 2, kind: input, shape index: {}]
  %s3 = inlined_call_operand.vmem [shape: f32[1,448], index: 3, kind: input, shape index: {}]
  %s4 = inlined_call_operand.vmem [shape: bf16[128,128], index: 4, kind: input, shape index: {}]
  %s5 = inlined_call_operand.vmem [shape: f32[1,128], index: 5, kind: input, shape index: {}]
  %s6 = inlined_call_operand.vmem [shape: bf16[128,512], index: 6, kind: input, shape index: {}]
  %s7 = inlined_call_operand.vmem [shape: bf16[256,128], index: 7, kind: input, shape index: {}]
  %s8 = inlined_call_operand.vmem [shape: f32[16,192], index: 8, kind: input, shape index: {}]
  %s9 = inlined_call_operand.vmem [shape: f32[16,192], index: 9, kind: input, shape index: {}]
  %s10 = inlined_call_operand.vmem [shape: bf16[16,128], index: 10, kind: output, shape index: {}]
  %s11 = sld [smem:[#allocation0]]
  $region50: #{fp8_qwen2_forward.5} parent=0
    _
  %s13 = ssub.s32 1, %s11
  %s14 = scalar_select 0, %s13, %s11
  // Predicated region
  $region2: #{fp8_qwen2_forward.5} parent=0 // pred_check
    _
  $region3: #{fp8_qwen2_forward.5} parent=0 // pred_check_branch
    %16 = sbr.rel (0) target = $region5
  $region4: #{fp8_qwen2_forward.5} parent=0 // pred_region
    _
  $region5: #{fp8_qwen2_forward.5} parent=0 // pred_fallthru
    _
  // Predicated region
  $region6: #{fp8_qwen2_forward.5} parent=0 // pred_check
    _
  $region7: #{fp8_qwen2_forward.5} parent=0 // pred_check_branch
    %18 = sbr.rel (0) target = $region9
  $region8: #{fp8_qwen2_forward.5} parent=0 // pred_region
    _
  $region9: #{fp8_qwen2_forward.5} parent=0 // pred_fallthru
    _
  // Predicated region
  $region10: #{fp8_qwen2_forward.5} parent=0 // pred_check
    _
  $region11: #{fp8_qwen2_forward.5} parent=0 // pred_check_branch
    %20 = sbr.rel (0) target = $region13
  $region12: #{fp8_qwen2_forward.5} parent=0 // pred_region
    _
  $region13: #{fp8_qwen2_forward.5} parent=0 // pred_fallthru
    _
  // Predicated region
  $region14: #{fp8_qwen2_forward.5} parent=0 // pred_check
    _
  $region15: #{fp8_qwen2_forward.5} parent=0 // pred_check_branch
    %22 = sbr.rel (0) target = $region17
  $region16: #{fp8_qwen2_forward.5} parent=0 // pred_region
    _
  $region17: #{fp8_qwen2_forward.5} parent=0 // pred_fallthru
    _
  // Predicated region
  $region18: #{fp8_qwen2_forward.5} parent=0 // pred_check
    _
  $region19: #{fp8_qwen2_forward.5} parent=0 // pred_check_branch
    %24 = sbr.rel (0) target = $region21
  $region20: #{fp8_qwen2_forward.5} parent=0 // pred_region
    _
  $region21: #{fp8_qwen2_forward.5} parent=0 // pred_fallthru
    _
  // Predicated region
  $region22: #{fp8_qwen2_forward.5} parent=0 // pred_check
    _
  $region23: #{fp8_qwen2_forward.5} parent=0 // pred_check_branch
    %26 = sbr.rel (0) target = $region25
  $region24: #{fp8_qwen2_forward.5} parent=0 // pred_region
    _
  $region25: #{fp8_qwen2_forward.5} parent=0 // pred_fallthru
    _
  // Predicated region
  $region26: #{fp8_qwen2_forward.5} parent=0 // pred_check
    _
  $region27: #{fp8_qwen2_forward.5} parent=0 // pred_check_branch
    %28 = sbr.rel (0) target = $region29
  $region28: #{fp8_qwen2_forward.5} parent=0 // pred_region
    _
  $region29: #{fp8_qwen2_forward.5} parent=0 // pred_fallthru
    _
  // Predicated region
  $region30: #{fp8_qwen2_forward.5} parent=0 // pred_check
    _
  $region31: #{fp8_qwen2_forward.5} parent=0 // pred_check_branch
    %30 = sbr.rel (0) target = $region33
  $region32: #{fp8_qwen2_forward.5} parent=0 // pred_region
    _
  $region33: #{fp8_qwen2_forward.5} parent=0 // pred_fallthru
    _
  // Predicated region
  $region34: #{fp8_qwen2_forward.5} parent=0 // pred_check
    _
  $region35: #{fp8_qwen2_forward.5} parent=0 // pred_check_branch
    %32 = sbr.rel (0) target = $region37
  $region36: #{fp8_qwen2_forward.5} parent=0 // pred_region
    _
  $region37: #{fp8_qwen2_forward.5} parent=0 // pred_fallthru
    _
  // Predicated region
  $region38: #{fp8_qwen2_forward.5} parent=0 // pred_check
    _
  $region39: #{fp8_qwen2_forward.5} parent=0 // pred_check_branch
    %34 = sbr.rel (0) target = $region41
  $region40: #{fp8_qwen2_forward.5} parent=0 // pred_region
    _
  $region41: #{fp8_qwen2_forward.5} parent=0 // pred_fallthru
    _
  %v36 = vld [vmem:[%s0] sm:$0xf]
  %v37 = vld [vmem:[%s0 + $0x4] sm:$0xf]
  %v38 = vunpack.c.l.bf16 %v36
  %v39 = vunpack.c.l.bf16 %v37
  %v40 = vmul.f32 %v38, %v38
  %v41 = vmul.f32 %v39, %v39
  %42 = vadd.xlane.f32.xlu0 %v40
  %v43 = vpop.xlane.xlu0 %42
  %44 = vadd.xlane.f32.xlu0 %v41
  %v45 = vpop.xlane.xlu0 %44
  %v46 = vrcp.pop 128.0
  %v47 = vmul.f32 128.0, %v46
  %v48 = vsub.f32 1.0, %v47
  %v49 = vmul.f32 %v46, %v48
  %v50 = vadd.f32 %v46, %v49
  %vm51 = vweird.f32 %v46
  %v52 = vsel %vm51, %v46, %v50
  %v53 = vmul.f32 %v43, %v52
  %v54 = vmul.f32 %v45, %v52
  %v55 = vadd.f32 %v53, 1e-06
  %v56 = vadd.f32 %v54, 1e-06
  %v57 = vrsqrt.pop %v55
  %v58 = vmul.f32 %v57, %v55
  %v59 = vmul.f32 %v58, %v57
  %v60 = vmul.f32 0.5, %v59
  %v61 = vsub.f32 1.5, %v60
  %v62 = vmul.f32 %v57, %v61
  %vm63 = vweird.f32 %v55
  %vm64 = vweird.f32 %v57
  %vm65 = vmor %vm63, %vm64
  %v66 = vsel %vm65, %v57, %v62
  %v67 = vrsqrt.pop %v56
  %v68 = vmul.f32 %v67, %v56
  %v69 = vmul.f32 %v68, %v67
  %v70 = vmul.f32 0.5, %v69
  %v71 = vsub.f32 1.5, %v70
  %v72 = vmul.f32 %v67, %v71
  %vm73 = vweird.f32 %v56
  %vm74 = vweird.f32 %v67
  %vm75 = vmor %vm73, %vm74
  %v76 = vsel %vm75, %v67, %v72
  %v77 = vmul.f32 %v38, %v66
  %v78 = vmul.f32 %v39, %v76
  %v79 = vld [vmem:[%s1] sm:$0x1]
  %v81 = vperm.slane %v79, 0
  %v83 = vmul.f32 %v77, %v81
  %v84 = vmul.f32 %v78, %v81
  %v85 = vpack.c.bf16 %v84, %v83
  %v86 = vld [vmem:[%s2] sm:$0xff]
  %v87 = vld [vmem:[%s2 + $0x8] sm:$0xff]
  %v88 = vld [vmem:[%s2 + $0x10] sm:$0xff]
  %v89 = vld [vmem:[%s2 + $0x18] sm:$0xff]
  %v90 = vld [vmem:[%s2 + $0x20] sm:$0xff]
  %v91 = vld [vmem:[%s2 + $0x28] sm:$0xff]
  %v92 = vld [vmem:[%s2 + $0x30] sm:$0xff]
  %v93 = vld [vmem:[%s2 + $0x38] sm:$0xff]
  %v94 = vld [vmem:[%s2 + $0x40] sm:$0xff]
  %v95 = vld [vmem:[%s2 + $0x48] sm:$0xff]
  %v96 = vld [vmem:[%s2 + $0x50] sm:$0xff]
  %v97 = vld [vmem:[%s2 + $0x58] sm:$0xff]
  %v98 = vld [vmem:[%s2 + $0x60] sm:$0xff]
  %v99 = vld [vmem:[%s2 + $0x68] sm:$0xff]
  %v100 = vld [vmem:[%s2 + $0x70] sm:$0xff]
  %v101 = vld [vmem:[%s2 + $0x78] sm:$0xff]
  %v102 = vld [vmem:[%s2 + $0x80] sm:$0xff]
  %v103 = vld [vmem:[%s2 + $0x88] sm:$0xff]
  %v104 = vld [vmem:[%s2 + $0x90] sm:$0xff]
  %v105 = vld [vmem:[%s2 + $0x98] sm:$0xff]
  %v106 = vld [vmem:[%s2 + $0xa0] sm:$0xff]
  %v107 = vld [vmem:[%s2 + $0xa8] sm:$0xff]
  %v108 = vld [vmem:[%s2 + $0xb0] sm:$0xff]
  %v109 = vld [vmem:[%s2 + $0xb8] sm:$0xff]
  %v110 = vld [vmem:[%s2 + $0xc0] sm:$0xff]
  %v111 = vld [vmem:[%s2 + $0xc8] sm:$0xff]
  %v112 = vld [vmem:[%s2 + $0xd0] sm:$0xff]
  %v113 = vld [vmem:[%s2 + $0xd8] sm:$0xff]
  %v114 = vld [vmem:[%s2 + $0xe0] sm:$0xff]
  %v115 = vld [vmem:[%s2 + $0xe8] sm:$0xff]
  %v116 = vld [vmem:[%s2 + $0xf0] sm:$0xff]
  %v117 = vld [vmem:[%s2 + $0xf8] sm:$0xff]
  %v118 = vld [vmem:[%s3] sm:$0xf]
  %v120 = vperm.slane %v118, 0
  %v121 = vperm.slane %v118, 1
  %v122 = vperm.slane %v118, 2
  %v123 = vperm.slane %v118, 3
  %v160 = vunpack.c.l.b16 %v86
  %v161 = vunpack.c.h.b16 %v86
  %v162 = vunpack.c.l.b16 %v87
  %v163 = vunpack.c.h.b16 %v87
  %v164 = vunpack.c.l.b16 %v88
  %v165 = vunpack.c.h.b16 %v88
  %v166 = vunpack.c.l.b16 %v89
  %v167 = vunpack.c.h.b16 %v89
  %v168 = vunpack.c.l.b16 %v90
  %v169 = vunpack.c.h.b16 %v90
  %v170 = vunpack.c.l.b16 %v91
  %v171 = vunpack.c.h.b16 %v91
  %v172 = vunpack.c.l.b16 %v92
  %v173 = vunpack.c.h.b16 %v92
  %v174 = vunpack.c.l.b16 %v93
  %v175 = vunpack.c.h.b16 %v93
  %v176 = vunpack.c.l.b16 %v94
  %v177 = vunpack.c.h.b16 %v94
  %v178 = vunpack.c.l.b16 %v95
  %v179 = vunpack.c.h.b16 %v95
  %v180 = vunpack.c.l.b16 %v96
  %v181 = vunpack.c.h.b16 %v96
  %v182 = vunpack.c.l.b16 %v97
  %v183 = vunpack.c.h.b16 %v97
  %v184 = vunpack.c.l.b16 %v98
  %v185 = vunpack.c.h.b16 %v98
  %v186 = vunpack.c.l.b16 %v99
  %v187 = vunpack.c.h.b16 %v99
  %v188 = vunpack.c.l.b16 %v100
  %v189 = vunpack.c.h.b16 %v100
  %v190 = vunpack.c.l.b16 %v101
  %v191 = vunpack.c.h.b16 %v101
  %v192 = vunpack.c.l.b16 %v102
  %v193 = vunpack.c.h.b16 %v102
  %v194 = vunpack.c.l.b16 %v103
  %v195 = vunpack.c.h.b16 %v103
  %v196 = vunpack.c.l.b16 %v104
  %v197 = vunpack.c.h.b16 %v104
  %v198 = vunpack.c.l.b16 %v105
  %v199 = vunpack.c.h.b16 %v105
  %v200 = vunpack.c.l.b16 %v106
  %v201 = vunpack.c.h.b16 %v106
  %v202 = vunpack.c.l.b16 %v107
  %v203 = vunpack.c.h.b16 %v107
  %v204 = vunpack.c.l.b16 %v108
  %v205 = vunpack.c.h.b16 %v108
  %v206 = vunpack.c.l.b16 %v109
  %v207 = vunpack.c.h.b16 %v109
  %v208 = vunpack.c.l.b16 %v110
  %v209 = vunpack.c.h.b16 %v110
  %v210 = vunpack.c.l.b16 %v111
  %v211 = vunpack.c.h.b16 %v111
  %v212 = vunpack.c.l.b16 %v112
  %v213 = vunpack.c.h.b16 %v112
  %v214 = vunpack.c.l.b16 %v113
  %v215 = vunpack.c.h.b16 %v113
  %v216 = vunpack.c.l.b16 %v114
  %v217 = vunpack.c.h.b16 %v114
  %v218 = vunpack.c.l.b16 %v115
  %v219 = vunpack.c.h.b16 %v115
  %v220 = vunpack.c.l.b16 %v116
  %v221 = vunpack.c.h.b16 %v116
  %v222 = vunpack.c.l.b16 %v117
  %v223 = vunpack.c.h.b16 %v117
  %v224 = vpack.c.b16 %v164, %v160
  %v225 = vpack.c.b16 %v165, %v161
  %v226 = vpack.c.b16 %v166, %v162
  %v227 = vpack.c.b16 %v167, %v163
  %v228 = vpack.c.b16 %v172, %v168
  %v229 = vpack.c.b16 %v173, %v169
  %v230 = vpack.c.b16 %v174, %v170
  %v231 = vpack.c.b16 %v175, %v171
  %v232 = vpack.c.b16 %v180, %v176
  %v233 = vpack.c.b16 %v181, %v177
  %v234 = vpack.c.b16 %v182, %v178
  %v235 = vpack.c.b16 %v183, %v179
  %v236 = vpack.c.b16 %v188, %v184
  %v237 = vpack.c.b16 %v189, %v185
  %v238 = vpack.c.b16 %v190, %v186
  %v239 = vpack.c.b16 %v191, %v187
  %v240 = vpack.c.b16 %v196, %v192
  %v241 = vpack.c.b16 %v197, %v193
  %v242 = vpack.c.b16 %v198, %v194
  %v243 = vpack.c.b16 %v199, %v195
  %v244 = vpack.c.b16 %v204, %v200
  %v245 = vpack.c.b16 %v205, %v201
  %v246 = vpack.c.b16 %v206, %v202
  %v247 = vpack.c.b16 %v207, %v203
  %v248 = vpack.c.b16 %v212, %v208
  %v249 = vpack.c.b16 %v213, %v209
  %v250 = vpack.c.b16 %v214, %v210
  %v251 = vpack.c.b16 %v215, %v211
  %v252 = vpack.c.b16 %v220, %v216
  %v253 = vpack.c.b16 %v221, %v217
  %v254 = vpack.c.b16 %v222, %v218
  %v255 = vpack.c.b16 %v223, %v219
  %288 = vmatpush.bf16.msra.mxu0 %v252
  %289 = vmatpush.bf16.msra.mxu0 %v248
  %290 = vmatpush.bf16.msra.mxu0 %v244
  %291 = vmatpush.bf16.msra.mxu0 %v240
  %292 = vmatpush.bf16.msra.mxu0 %v236
  %293 = vmatpush.bf16.msra.mxu0 %v232
  %294 = vmatpush.bf16.msra.mxu0 %v228
  %295 = vmatpush.bf16.msra.mxu0 %v224
  %296 = vmatmul.bf16.gmra.mxu0 %v85
  %v297 = vpop.f32.mrf.mxu0
  %v298 = vadd.f32 %v120, %v297
  %v299 = vpop.f32.mrf.mxu0
  %v300 = vadd.f32 %v120, %v299
  %301 = vdwg.mxu0
  %302 = vmatpush.bf16.msra.mxu0 %v253
  %303 = vmatpush.bf16.msra.mxu0 %v249
  %304 = vmatpush.bf16.msra.mxu0 %v245
  %305 = vmatpush.bf16.msra.mxu0 %v241
  %306 = vmatpush.bf16.msra.mxu0 %v237
  %307 = vmatpush.bf16.msra.mxu0 %v233
  %308 = vmatpush.bf16.msra.mxu0 %v229
  %309 = vmatpush.bf16.msra.mxu0 %v225
  %310 = vmatmul.bf16.gmra.mxu0 %v85
  %v311 = vpop.f32.mrf.mxu0
  %v312 = vadd.f32 %v121, %v311
  %v313 = vpop.f32.mrf.mxu0
  %v314 = vadd.f32 %v121, %v313
  %315 = vdwg.mxu0
  %316 = vmatpush.bf16.msra.mxu0 %v254
  %317 = vmatpush.bf16.msra.mxu0 %v250
  %318 = vmatpush.bf16.msra.mxu0 %v246
  %319 = vmatpush.bf16.msra.mxu0 %v242
  %320 = vmatpush.bf16.msra.mxu0 %v238
  %321 = vmatpush.bf16.msra.mxu0 %v234
  %322 = vmatpush.bf16.msra.mxu0 %v230
  %323 = vmatpush.bf16.msra.mxu0 %v226
  %324 = vmatmul.bf16.gmra.mxu0 %v85
  %v325 = vpop.f32.mrf.mxu0
  %v326 = vadd.f32 %v122, %v325
  %v327 = vpop.f32.mrf.mxu0
  %v328 = vadd.f32 %v122, %v327
  %329 = vdwg.mxu0
  %330 = vmatpush.bf16.msra.mxu0 %v255
  %331 = vmatpush.bf16.msra.mxu0 %v251
  %332 = vmatpush.bf16.msra.mxu0 %v247
  %333 = vmatpush.bf16.msra.mxu0 %v243
  %334 = vmatpush.bf16.msra.mxu0 %v239
  %335 = vmatpush.bf16.msra.mxu0 %v235
  %336 = vmatpush.bf16.msra.mxu0 %v231
  %337 = vmatpush.bf16.msra.mxu0 %v227
  %338 = vmatmul.bf16.gmra.mxu0 %v85
  %v339 = vpop.f32.mrf.mxu0
  %v340 = vadd.f32 %v123, %v339
  %v341 = vpop.f32.mrf.mxu0
  %v342 = vadd.f32 %v123, %v341
  %343 = vdwg.mxu0
  %v344 = vld [vmem:[%s8] sm:$0xff]
  %v345 = vld [vmem:[%s8 + $0x8] sm:$0xff]
  %v346 = vld [vmem:[%s8 + $0x10] sm:$0xff]
  %v347 = vld [vmem:[%s8 + $0x18] sm:$0xff]
  %v348 = vmul.f32 %v298, %v344
  %v349 = vmul.f32 %v312, %v345
  %v350 = vmul.f32 %v300, %v346
  %v351 = vmul.f32 %v314, %v347
  %v352 = vld [vmem:[%s9] sm:$0xff]
  %v353 = vld [vmem:[%s9 + $0x8] sm:$0xff]
  %v354 = vld [vmem:[%s9 + $0x10] sm:$0xff]
  %v355 = vld [vmem:[%s9 + $0x18] sm:$0xff]
  %v356 = vmul.f32 %v326, %v352
  %v357 = vmul.f32 %v340, %v353
  %v358 = vmul.f32 %v328, %v354
  %v359 = vmul.f32 %v342, %v355
  %v360 = vadd.f32 %v348, %v356
  %v361 = vadd.f32 %v349, %v357
  %v362 = vadd.f32 %v350, %v358
  %v363 = vadd.f32 %v351, %v359
  %v364 = vpack.c.bf16 %v361, %v360
  %v365 = vpack.c.bf16 %v363, %v362
  %v366 = vpack.c.bf16 %v312, %v312
  %v367 = vpack.c.bf16 %v314, %v314
  %v368 = vlaneseq
  %v369 = vshrl.u32 %v368, 7
  %v370 = vlaneseq
  %v371 = vand.u32 %v370, 127
  %vm372 = vcmp.le.s32.totalorder %v371, %v369
  %v373 = vld [vmem:[%s4] sm:$0xf]
  %v374 = vld [vmem:[%s4 + $0x4] sm:$0xf]
  %v375 = vld [vmem:[%s4 + $0x8] sm:$0xf]
  %v376 = vld [vmem:[%s4 + $0xc] sm:$0xf]
  %v377 = vld [vmem:[%s4 + $0x10] sm:$0xf]
  %v378 = vld [vmem:[%s4 + $0x14] sm:$0xf]
  %v379 = vld [vmem:[%s4 + $0x18] sm:$0xf]
  %v380 = vld [vmem:[%s4 + $0x1c] sm:$0xf]
  %v381 = vld [vmem:[%s4 + $0x20] sm:$0xf]
  %v382 = vld [vmem:[%s4 + $0x24] sm:$0xf]
  %v383 = vld [vmem:[%s4 + $0x28] sm:$0xf]
  %v384 = vld [vmem:[%s4 + $0x2c] sm:$0xf]
  %v385 = vld [vmem:[%s4 + $0x30] sm:$0xf]
  %v386 = vld [vmem:[%s4 + $0x34] sm:$0xf]
  %v387 = vld [vmem:[%s4 + $0x38] sm:$0xf]
  %v388 = vld [vmem:[%s4 + $0x3c] sm:$0xf]
  %v390 = vunpack.c.h.b16 %v364
  %v391 = vpack.c.b16 %v390, %v390
  %vm392 = vcmask 261120
  %v394 = vsel %vm392, %v364, 0
  %v397 = vsel %vm392, %v391, 0
  %399 = vmatpush.bf16.xpose.msra.mxu0 0
  %400 = vmatpush.bf16.xpose.msra.mxu0 0
  %401 = vmatpush.bf16.xpose.msra.mxu0 0
  %402 = vmatpush.bf16.xpose.msra.mxu0 0
  %403 = vmatpush.bf16.xpose.msra.mxu0 0
  %404 = vmatpush.bf16.xpose.msra.mxu0 0
  %405 = vmatpush.bf16.xpose.msra.mxu0 0
  %406 = vmatpush.bf16.xpose.msra.mxu0 %v397
  %407 = vmatmul.bf16.gmra.mxu0 %v394
  %v408 = vpop.f32.mrf.mxu0
  %v409 = vadd.f32 0.0, %v408
  %v410 = vpop.f32.mrf.mxu0
  %411 = vdwg.mxu0
  %v412 = vmul.f32 %v409, 0.17677669
  %v413 = vsel %vm372, %v412, -1e+30
  %vm414 = vcmask 64512
  %v415 = vsel %vm414, %v413, -inf
  %416 = vmax.xlane.f32.xlu0 %v415
  %v417 = vpop.xlane.xlu0 %416
  %v418 = vsub.f32 %v413, %v417
  %v419 = vmul.f32 %v418, 1.442695
  %v420 = vpow.pop %v419
  %v421 = vsel %vm414, %v420, 0.0
  %422 = vadd.xlane.f32.xlu0 %v421
  %v423 = vpop.xlane.xlu0 %422
  %v424 = vpack.c.bf16 %v420, %v420
  %v426 = vunpack.c.l.b16 %v366
  %v427 = vpack.c.b16 %v426, %v426
  %428 = vrot.lane.b32.xlu0 %v427, 64
  %v429 = vpop.permute.xlu0 %428
  %v431 = vsel %vm414, %v424, 0
  %vm433 = vcmask 1043456
  %v435 = vsel %vm433, %v429, 0
  %437 = vmatpush.bf16.msra.mxu0 0
  %438 = vmatpush.bf16.msra.mxu0 0
  %439 = vmatpush.bf16.msra.mxu0 0
  %440 = vmatpush.bf16.msra.mxu0 0
  %441 = vmatpush.bf16.msra.mxu0 0
  %442 = vmatpush.bf16.msra.mxu0 0
  %443 = vmatpush.bf16.msra.mxu0 0
  %444 = vmatpush.bf16.msra.mxu0 %v435
  %445 = vmatmul.bf16.gmra.mxu0 %v431
  %v446 = vpop.f32.mrf.mxu0
  %v447 = vadd.f32 0.0, %v446
  %v448 = vpop.f32.mrf.mxu0
  %449 = vdwg.mxu0
  %v450 = vrcp.pop %v423
  %v451 = vmul.f32 %v423, %v450
  %v452 = vsub.f32 1.0, %v451
  %v453 = vmul.f32 %v450, %v452
  %v454 = vadd.f32 %v450, %v453
  %vm455 = vweird.f32 %v423
  %vm456 = vweird.f32 %v450
  %vm457 = vmor %vm455, %vm456
  %v458 = vsel %vm457, %v450, %v454
  %v459 = vand.u32 2147483647, %v423
  %vm460 = vcmp.eq.f32.partialorder %v459, 8.507059e+37
  %v461 = vand.u32 %v423, 2147483648
  %v462 = vor.u32 1.1754944e-38, %v461
  %v463 = vsel %vm460, %v462, %v458
  %v464 = vmul.f32 %v447, %v463
  %v465 = vpack.c.bf16 %v464, %v464
  %v466 = vunpack.c.l.b16 %v364
  %v467 = vpack.c.b16 %v466, %v466
  %468 = vrot.lane.b32.xlu0 %v467, 96
  %v469 = vpop.permute.xlu0 %468
  %v471 = vsel %vm392, %v469, 0
  %473 = vmatpush.bf16.xpose.msra.mxu0 0
  %474 = vmatpush.bf16.xpose.msra.mxu0 0
  %475 = vmatpush.bf16.xpose.msra.mxu0 0
  %476 = vmatpush.bf16.xpose.msra.mxu0 0
  %477 = vmatpush.bf16.xpose.msra.mxu0 0
  %478 = vmatpush.bf16.xpose.msra.mxu0 0
  %479 = vmatpush.bf16.xpose.msra.mxu0 0
  %480 = vmatpush.bf16.xpose.msra.mxu0 %v397
  %481 = vmatmul.bf16.gmra.mxu0 %v471
  %v482 = vpop.f32.mrf.mxu0
  %v483 = vadd.f32 0.0, %v482
  %v484 = vpop.f32.mrf.mxu0
  %485 = vdwg.mxu0
  %v486 = vmul.f32 %v483, 0.17677669
  %v487 = vsel %vm372, %v486, -1e+30
  %v488 = vsel %vm414, %v487, -inf
  %489 = vmax.xlane.f32.xlu0 %v488
  %v490 = vpop.xlane.xlu0 %489
  %v491 = vsub.f32 %v487, %v490
  %v492 = vmul.f32 %v491, 1.442695
  %v493 = vpow.pop %v492
  %v494 = vsel %vm414, %v493, 0.0
  %495 = vadd.xlane.f32.xlu0 %v494
  %v496 = vpop.xlane.xlu0 %495
  %v497 = vpack.c.bf16 %v493, %v493
  %v499 = vsel %vm414, %v497, 0
  %501 = vmatpush.bf16.msra.mxu0 0
  %502 = vmatpush.bf16.msra.mxu0 0
  %503 = vmatpush.bf16.msra.mxu0 0
  %504 = vmatpush.bf16.msra.mxu0 0
  %505 = vmatpush.bf16.msra.mxu0 0
  %506 = vmatpush.bf16.msra.mxu0 0
  %507 = vmatpush.bf16.msra.mxu0 0
  %508 = vmatpush.bf16.msra.mxu0 %v435
  %509 = vmatmul.bf16.gmra.mxu0 %v499
  %v510 = vpop.f32.mrf.mxu0
  %v511 = vadd.f32 0.0, %v510
  %v512 = vpop.f32.mrf.mxu0
  %513 = vdwg.mxu0
  %v514 = vrcp.pop %v496
  %v515 = vmul.f32 %v496, %v514
  %v516 = vsub.f32 1.0, %v515
  %v517 = vmul.f32 %v514, %v516
  %v518 = vadd.f32 %v514, %v517
  %vm519 = vweird.f32 %v496
  %vm520 = vweird.f32 %v514
  %vm521 = vmor %vm519, %vm520
  %v522 = vsel %vm521, %v514, %v518
  %v523 = vand.u32 2147483647, %v496
  %vm524 = vcmp.eq.f32.partialorder %v523, 8.507059e+37
  %v525 = vand.u32 %v496, 2147483648
  %v526 = vor.u32 1.1754944e-38, %v525
  %v527 = vsel %vm524, %v526, %v522
  %v528 = vmul.f32 %v511, %v527
  %v529 = vpack.c.bf16 %v528, %v528
  %v534 = vunpack.c.l.b16 %v377
  %v535 = vunpack.c.l.b16 %v378
  %v536 = vunpack.c.l.b16 %v379
  %v537 = vunpack.c.l.b16 %v380
  %v538 = vpack.c.b16 %v535, %v534
  %v539 = vpack.c.b16 %v537, %v536
  %v543 = vsel %vm392, %v529, 0
  %545 = vmatpush.bf16.msra.mxu0 0
  %546 = vmatpush.bf16.msra.mxu0 0
  %547 = vmatpush.bf16.msra.mxu0 0
  %548 = vmatpush.bf16.msra.mxu0 0
  %549 = vmatpush.bf16.msra.mxu0 0
  %550 = vmatpush.bf16.msra.mxu0 0
  %551 = vmatpush.bf16.msra.mxu0 %v539
  %552 = vmatpush.bf16.msra.mxu0 %v538
  %553 = vmatmul.bf16.gmra.mxu0 %v543
  %v554 = vpop.f32.mrf.mxu0
  %v555 = vadd.f32 0.0, %v554
  %v556 = vpop.f32.mrf.mxu0
  %557 = vdwg.mxu0
  %v562 = vunpack.c.l.b16 %v373
  %v563 = vunpack.c.l.b16 %v374
  %v564 = vunpack.c.l.b16 %v375
  %v565 = vunpack.c.l.b16 %v376
  %v566 = vpack.c.b16 %v563, %v562
  %v567 = vpack.c.b16 %v565, %v564
  %v571 = vsel %vm392, %v465, 0
  %573 = vmatpush.bf16.msra.mxu0 0
  %574 = vmatpush.bf16.msra.mxu0 0
  %575 = vmatpush.bf16.msra.mxu0 0
  %576 = vmatpush.bf16.msra.mxu0 0
  %577 = vmatpush.bf16.msra.mxu0 0
  %578 = vmatpush.bf16.msra.mxu0 0
  %579 = vmatpush.bf16.msra.mxu0 %v567
  %580 = vmatpush.bf16.msra.mxu0 %v566
  %581 = vmatmul.bf16.gmra.mxu0 %v571
  %v582 = vpop.f32.mrf.mxu0
  %v583 = vadd.f32 %v555, %v582
  %v584 = vpop.f32.mrf.mxu0
  %585 = vdwg.mxu0
  %586 = vrot.lane.b32.xlu0 %v467, 64
  %v587 = vpop.permute.xlu0 %586
  %588 = vrot.lane.b32.xlu0 %v391, 96
  %v589 = vpop.permute.xlu0 %588
  %v591 = vsel %vm392, %v587, 0
  %v594 = vsel %vm392, %v589, 0
  %596 = vmatpush.bf16.xpose.msra.mxu0 0
  %597 = vmatpush.bf16.xpose.msra.mxu0 0
  %598 = vmatpush.bf16.xpose.msra.mxu0 0
  %599 = vmatpush.bf16.xpose.msra.mxu0 0
  %600 = vmatpush.bf16.xpose.msra.mxu0 0
  %601 = vmatpush.bf16.xpose.msra.mxu0 0
  %602 = vmatpush.bf16.xpose.msra.mxu0 0
  %603 = vmatpush.bf16.xpose.msra.mxu0 %v594
  %604 = vmatmul.bf16.gmra.mxu0 %v591
  %v605 = vpop.f32.mrf.mxu0
  %v606 = vadd.f32 0.0, %v605
  %v607 = vpop.f32.mrf.mxu0
  %608 = vdwg.mxu0
  %v609 = vmul.f32 %v606, 0.17677669
  %v610 = vsel %vm372, %v609, -1e+30
  %v611 = vsel %vm414, %v610, -inf
  %612 = vmax.xlane.f32.xlu0 %v611
  %v613 = vpop.xlane.xlu0 %612
  %v614 = vsub.f32 %v610, %v613
  %v615 = vmul.f32 %v614, 1.442695
  %v616 = vpow.pop %v615
  %v617 = vsel %vm414, %v616, 0.0
  %618 = vadd.xlane.f32.xlu0 %v617
  %v619 = vpop.xlane.xlu0 %618
  %v620 = vpack.c.bf16 %v616, %v616
  %621 = vrot.lane.b32.xlu0 %v427, 32
  %v622 = vpop.permute.xlu0 %621
  %v624 = vsel %vm414, %v620, 0
  %v627 = vsel %vm433, %v622, 0
  %629 = vmatpush.bf16.msra.mxu0 0
  %630 = vmatpush.bf16.msra.mxu0 0
  %631 = vmatpush.bf16.msra.mxu0 0
  %632 = vmatpush.bf16.msra.mxu0 0
  %633 = vmatpush.bf16.msra.mxu0 0
  %634 = vmatpush.bf16.msra.mxu0 0
  %635 = vmatpush.bf16.msra.mxu0 0
  %636 = vmatpush.bf16.msra.mxu0 %v627
  %637 = vmatmul.bf16.gmra.mxu0 %v624
  %v638 = vpop.f32.mrf.mxu0
  %v639 = vadd.f32 0.0, %v638
  %v640 = vpop.f32.mrf.mxu0
  %641 = vdwg.mxu0
  %v642 = vrcp.pop %v619
  %v643 = vmul.f32 %v619, %v642
  %v644 = vsub.f32 1.0, %v643
  %v645 = vmul.f32 %v642, %v644
  %v646 = vadd.f32 %v642, %v645
  %vm647 = vweird.f32 %v619
  %vm648 = vweird.f32 %v642
  %vm649 = vmor %vm647, %vm648
  %v650 = vsel %vm649, %v642, %v646
  %v651 = vand.u32 2147483647, %v619
  %vm652 = vcmp.eq.f32.partialorder %v651, 8.507059e+37
  %v653 = vand.u32 %v619, 2147483648
  %v654 = vor.u32 1.1754944e-38, %v653
  %v655 = vsel %vm652, %v654, %v650
  %v656 = vmul.f32 %v639, %v655
  %v657 = vpack.c.bf16 %v656, %v656
  %v662 = vunpack.c.l.b16 %v381
  %v663 = vunpack.c.l.b16 %v382
  %v664 = vunpack.c.l.b16 %v383
  %v665 = vunpack.c.l.b16 %v384
  %v666 = vpack.c.b16 %v663, %v662
  %v667 = vpack.c.b16 %v665, %v664
  %v671 = vsel %vm392, %v657, 0
  %673 = vmatpush.bf16.msra.mxu0 0
  %674 = vmatpush.bf16.msra.mxu0 0
  %675 = vmatpush.bf16.msra.mxu0 0
  %676 = vmatpush.bf16.msra.mxu0 0
  %677 = vmatpush.bf16.msra.mxu0 0
  %678 = vmatpush.bf16.msra.mxu0 0
  %679 = vmatpush.bf16.msra.mxu0 %v667
  %680 = vmatpush.bf16.msra.mxu0 %v666
  %681 = vmatmul.bf16.gmra.mxu0 %v671
  %v682 = vpop.f32.mrf.mxu0
  %v683 = vadd.f32 0.0, %v682
  %v684 = vpop.f32.mrf.mxu0
  %685 = vdwg.mxu0
  %v686 = vadd.f32 %v583, %v683
  %687 = vrot.lane.b32.xlu0 %v467, 32
  %v688 = vpop.permute.xlu0 %687
  %v690 = vsel %vm392, %v688, 0
  %692 = vmatpush.bf16.xpose.msra.mxu0 0
  %693 = vmatpush.bf16.xpose.msra.mxu0 0
  %694 = vmatpush.bf16.xpose.msra.mxu0 0
  %695 = vmatpush.bf16.xpose.msra.mxu0 0
  %696 = vmatpush.bf16.xpose.msra.mxu0 0
  %697 = vmatpush.bf16.xpose.msra.mxu0 0
  %698 = vmatpush.bf16.xpose.msra.mxu0 0
  %699 = vmatpush.bf16.xpose.msra.mxu0 %v594
  %700 = vmatmul.bf16.gmra.mxu0 %v690
  %v701 = vpop.f32.mrf.mxu0
  %v702 = vadd.f32 0.0, %v701
  %v703 = vpop.f32.mrf.mxu0
  %704 = vdwg.mxu0
  %v705 = vmul.f32 %v702, 0.17677669
  %v706 = vsel %vm372, %v705, -1e+30
  %v707 = vsel %vm414, %v706, -inf
  %708 = vmax.xlane.f32.xlu0 %v707
  %v709 = vpop.xlane.xlu0 %708
  %v710 = vsub.f32 %v706, %v709
  %v711 = vmul.f32 %v710, 1.442695
  %v712 = vpow.pop %v711
  %v713 = vsel %vm414, %v712, 0.0
  %714 = vadd.xlane.f32.xlu0 %v713
  %v715 = vpop.xlane.xlu0 %714
  %v716 = vpack.c.bf16 %v712, %v712
  %v718 = vsel %vm414, %v716, 0
  %720 = vmatpush.bf16.msra.mxu0 0
  %721 = vmatpush.bf16.msra.mxu0 0
  %722 = vmatpush.bf16.msra.mxu0 0
  %723 = vmatpush.bf16.msra.mxu0 0
  %724 = vmatpush.bf16.msra.mxu0 0
  %725 = vmatpush.bf16.msra.mxu0 0
  %726 = vmatpush.bf16.msra.mxu0 0
  %727 = vmatpush.bf16.msra.mxu0 %v627
  %728 = vmatmul.bf16.gmra.mxu0 %v718
  %v729 = vpop.f32.mrf.mxu0
  %v730 = vadd.f32 0.0, %v729
  %v731 = vpop.f32.mrf.mxu0
  %732 = vdwg.mxu0
  %v733 = vrcp.pop %v715
  %v734 = vmul.f32 %v715, %v733
  %v735 = vsub.f32 1.0, %v734
  %v736 = vmul.f32 %v733, %v735
  %v737 = vadd.f32 %v733, %v736
  %vm738 = vweird.f32 %v715
  %vm739 = vweird.f32 %v733
  %vm740 = vmor %vm738, %vm739
  %v741 = vsel %vm740, %v733, %v737
  %v742 = vand.u32 2147483647, %v715
  %vm743 = vcmp.eq.f32.partialorder %v742, 8.507059e+37
  %v744 = vand.u32 %v715, 2147483648
  %v745 = vor.u32 1.1754944e-38, %v744
  %v746 = vsel %vm743, %v745, %v741
  %v747 = vmul.f32 %v730, %v746
  %v748 = vpack.c.bf16 %v747, %v747
  %v753 = vunpack.c.l.b16 %v385
  %v754 = vunpack.c.l.b16 %v386
  %v755 = vunpack.c.l.b16 %v387
  %v756 = vunpack.c.l.b16 %v388
  %v757 = vpack.c.b16 %v754, %v753
  %v758 = vpack.c.b16 %v756, %v755
  %v762 = vsel %vm392, %v748, 0
  %764 = vmatpush.bf16.msra.mxu0 0
  %765 = vmatpush.bf16.msra.mxu0 0
  %766 = vmatpush.bf16.msra.mxu0 0
  %767 = vmatpush.bf16.msra.mxu0 0
  %768 = vmatpush.bf16.msra.mxu0 0
  %769 = vmatpush.bf16.msra.mxu0 0
  %770 = vmatpush.bf16.msra.mxu0 %v758
  %771 = vmatpush.bf16.msra.mxu0 %v757
  %772 = vmatmul.bf16.gmra.mxu0 %v762
  %v773 = vpop.f32.mrf.mxu0
  %v774 = vadd.f32 0.0, %v773
  %v775 = vpop.f32.mrf.mxu0
  %776 = vdwg.mxu0
  %v777 = vadd.f32 %v686, %v774
  %v779 = vunpack.c.h.b16 %v365
  %v780 = vpack.c.b16 %v779, %v779
  %v782 = vsel %vm392, %v365, 0
  %v785 = vsel %vm392, %v780, 0
  %787 = vmatpush.bf16.xpose.msra.mxu0 0
  %788 = vmatpush.bf16.xpose.msra.mxu0 0
  %789 = vmatpush.bf16.xpose.msra.mxu0 0
  %790 = vmatpush.bf16.xpose.msra.mxu0 0
  %791 = vmatpush.bf16.xpose.msra.mxu0 0
  %792 = vmatpush.bf16.xpose.msra.mxu0 0
  %793 = vmatpush.bf16.xpose.msra.mxu0 0
  %794 = vmatpush.bf16.xpose.msra.mxu0 %v785
  %795 = vmatmul.bf16.gmra.mxu0 %v782
  %v796 = vpop.f32.mrf.mxu0
  %v797 = vadd.f32 0.0, %v796
  %v798 = vpop.f32.mrf.mxu0
  %799 = vdwg.mxu0
  %v800 = vmul.f32 %v797, 0.17677669
  %v801 = vsel %vm372, %v800, -1e+30
  %v802 = vsel %vm414, %v801, -inf
  %803 = vmax.xlane.f32.xlu0 %v802
  %v804 = vpop.xlane.xlu0 %803
  %v805 = vsub.f32 %v801, %v804
  %v806 = vmul.f32 %v805, 1.442695
  %v807 = vpow.pop %v806
  %v808 = vsel %vm414, %v807, 0.0
  %809 = vadd.xlane.f32.xlu0 %v808
  %v810 = vpop.xlane.xlu0 %809
  %v811 = vpack.c.bf16 %v807, %v807
  %v813 = vunpack.c.l.b16 %v367
  %v814 = vpack.c.b16 %v813, %v813
  %815 = vrot.lane.b32.xlu0 %v814, 64
  %v816 = vpop.permute.xlu0 %815
  %v818 = vsel %vm414, %v811, 0
  %v821 = vsel %vm433, %v816, 0
  %823 = vmatpush.bf16.msra.mxu0 0
  %824 = vmatpush.bf16.msra.mxu0 0
  %825 = vmatpush.bf16.msra.mxu0 0
  %826 = vmatpush.bf16.msra.mxu0 0
  %827 = vmatpush.bf16.msra.mxu0 0
  %828 = vmatpush.bf16.msra.mxu0 0
  %829 = vmatpush.bf16.msra.mxu0 0
  %830 = vmatpush.bf16.msra.mxu0 %v821
  %831 = vmatmul.bf16.gmra.mxu0 %v818
  %v832 = vpop.f32.mrf.mxu0
  %v833 = vadd.f32 0.0, %v832
  %v834 = vpop.f32.mrf.mxu0
  %835 = vdwg.mxu0
  %v836 = vrcp.pop %v810
  %v837 = vmul.f32 %v810, %v836
  %v838 = vsub.f32 1.0, %v837
  %v839 = vmul.f32 %v836, %v838
  %v840 = vadd.f32 %v836, %v839
  %vm841 = vweird.f32 %v810
  %vm842 = vweird.f32 %v836
  %vm843 = vmor %vm841, %vm842
  %v844 = vsel %vm843, %v836, %v840
  %v845 = vand.u32 2147483647, %v810
  %vm846 = vcmp.eq.f32.partialorder %v845, 8.507059e+37
  %v847 = vand.u32 %v810, 2147483648
  %v848 = vor.u32 1.1754944e-38, %v847
  %v849 = vsel %vm846, %v848, %v844
  %v850 = vmul.f32 %v833, %v849
  %v851 = vpack.c.bf16 %v850, %v850
  %v852 = vunpack.c.l.b16 %v365
  %v853 = vpack.c.b16 %v852, %v852
  %854 = vrot.lane.b32.xlu0 %v853, 96
  %v855 = vpop.permute.xlu0 %854
  %v857 = vsel %vm392, %v855, 0
  %859 = vmatpush.bf16.xpose.msra.mxu0 0
  %860 = vmatpush.bf16.xpose.msra.mxu0 0
  %861 = vmatpush.bf16.xpose.msra.mxu0 0
  %862 = vmatpush.bf16.xpose.msra.mxu0 0
  %863 = vmatpush.bf16.xpose.msra.mxu0 0
  %864 = vmatpush.bf16.xpose.msra.mxu0 0
  %865 = vmatpush.bf16.xpose.msra.mxu0 0
  %866 = vmatpush.bf16.xpose.msra.mxu0 %v785
  %867 = vmatmul.bf16.gmra.mxu0 %v857
  %v868 = vpop.f32.mrf.mxu0
  %v869 = vadd.f32 0.0, %v868
  %v870 = vpop.f32.mrf.mxu0
  %871 = vdwg.mxu0
  %v872 = vmul.f32 %v869, 0.17677669
  %v873 = vsel %vm372, %v872, -1e+30
  %v874 = vsel %vm414, %v873, -inf
  %875 = vmax.xlane.f32.xlu0 %v874
  %v876 = vpop.xlane.xlu0 %875
  %v877 = vsub.f32 %v873, %v876
  %v878 = vmul.f32 %v877, 1.442695
  %v879 = vpow.pop %v878
  %v880 = vsel %vm414, %v879, 0.0
  %881 = vadd.xlane.f32.xlu0 %v880
  %v882 = vpop.xlane.xlu0 %881
  %v883 = vpack.c.bf16 %v879, %v879
  %v885 = vsel %vm414, %v883, 0
  %887 = vmatpush.bf16.msra.mxu0 0
  %888 = vmatpush.bf16.msra.mxu0 0
  %889 = vmatpush.bf16.msra.mxu0 0
  %890 = vmatpush.bf16.msra.mxu0 0
  %891 = vmatpush.bf16.msra.mxu0 0
  %892 = vmatpush.bf16.msra.mxu0 0
  %893 = vmatpush.bf16.msra.mxu0 0
  %894 = vmatpush.bf16.msra.mxu0 %v821
  %895 = vmatmul.bf16.gmra.mxu0 %v885
  %v896 = vpop.f32.mrf.mxu0
  %v897 = vadd.f32 0.0, %v896
  %v898 = vpop.f32.mrf.mxu0
  %899 = vdwg.mxu0
  %v900 = vrcp.pop %v882
  %v901 = vmul.f32 %v882, %v900
  %v902 = vsub.f32 1.0, %v901
  %v903 = vmul.f32 %v900, %v902
  %v904 = vadd.f32 %v900, %v903
  %vm905 = vweird.f32 %v882
  %vm906 = vweird.f32 %v900
  %vm907 = vmor %vm905, %vm906
  %v908 = vsel %vm907, %v900, %v904
  %v909 = vand.u32 2147483647, %v882
  %vm910 = vcmp.eq.f32.partialorder %v909, 8.507059e+37
  %v911 = vand.u32 %v882, 2147483648
  %v912 = vor.u32 1.1754944e-38, %v911
  %v913 = vsel %vm910, %v912, %v908
  %v914 = vmul.f32 %v897, %v913
  %v915 = vpack.c.bf16 %v914, %v914
  %v917 = vsel %vm392, %v915, 0
  %919 = vmatpush.bf16.msra.mxu0 0
  %920 = vmatpush.bf16.msra.mxu0 0
  %921 = vmatpush.bf16.msra.mxu0 0
  %922 = vmatpush.bf16.msra.mxu0 0
  %923 = vmatpush.bf16.msra.mxu0 0
  %924 = vmatpush.bf16.msra.mxu0 0
  %925 = vmatpush.bf16.msra.mxu0 %v539
  %926 = vmatpush.bf16.msra.mxu0 %v538
  %927 = vmatmul.bf16.gmra.mxu0 %v917
  %v928 = vpop.f32.mrf.mxu0
  %v929 = vadd.f32 0.0, %v928
  %v930 = vpop.f32.mrf.mxu0
  %931 = vdwg.mxu0
  %v933 = vsel %vm392, %v851, 0
  %935 = vmatpush.bf16.msra.mxu0 0
  %936 = vmatpush.bf16.msra.mxu0 0
  %937 = vmatpush.bf16.msra.mxu0 0
  %938 = vmatpush.bf16.msra.mxu0 0
  %939 = vmatpush.bf16.msra.mxu0 0
  %940 = vmatpush.bf16.msra.mxu0 0
  %941 = vmatpush.bf16.msra.mxu0 %v567
  %942 = vmatpush.bf16.msra.mxu0 %v566
  %943 = vmatmul.bf16.gmra.mxu0 %v933
  %v944 = vpop.f32.mrf.mxu0
  %v945 = vadd.f32 %v929, %v944
  %v946 = vpop.f32.mrf.mxu0
  %947 = vdwg.mxu0
  %948 = vrot.lane.b32.xlu0 %v853, 64
  %v949 = vpop.permute.xlu0 %948
  %950 = vrot.lane.b32.xlu0 %v780, 96
  %v951 = vpop.permute.xlu0 %950
  %v953 = vsel %vm392, %v949, 0
  %v956 = vsel %vm392, %v951, 0
  %958 = vmatpush.bf16.xpose.msra.mxu0 0
  %959 = vmatpush.bf16.xpose.msra.mxu0 0
  %960 = vmatpush.bf16.xpose.msra.mxu0 0
  %961 = vmatpush.bf16.xpose.msra.mxu0 0
  %962 = vmatpush.bf16.xpose.msra.mxu0 0
  %963 = vmatpush.bf16.xpose.msra.mxu0 0
  %964 = vmatpush.bf16.xpose.msra.mxu0 0
  %965 = vmatpush.bf16.xpose.msra.mxu0 %v956
  %966 = vmatmul.bf16.gmra.mxu0 %v953
  %v967 = vpop.f32.mrf.mxu0
  %v968 = vadd.f32 0.0, %v967
  %v969 = vpop.f32.mrf.mxu0
  %970 = vdwg.mxu0
  %v971 = vmul.f32 %v968, 0.17677669
  %v972 = vsel %vm372, %v971, -1e+30
  %v973 = vsel %vm414, %v972, -inf
  %974 = vmax.xlane.f32.xlu0 %v973
  %v975 = vpop.xlane.xlu0 %974
  %v976 = vsub.f32 %v972, %v975
  %v977 = vmul.f32 %v976, 1.442695
  %v978 = vpow.pop %v977
  %v979 = vsel %vm414, %v978, 0.0
  %980 = vadd.xlane.f32.xlu0 %v979
  %v981 = vpop.xlane.xlu0 %980
  %v982 = vpack.c.bf16 %v978, %v978
  %983 = vrot.lane.b32.xlu0 %v814, 32
  %v984 = vpop.permute.xlu0 %983
  %v986 = vsel %vm414, %v982, 0
  %v989 = vsel %vm433, %v984, 0
  %991 = vmatpush.bf16.msra.mxu0 0
  %992 = vmatpush.bf16.msra.mxu0 0
  %993 = vmatpush.bf16.msra.mxu0 0
  %994 = vmatpush.bf16.msra.mxu0 0
  %995 = vmatpush.bf16.msra.mxu0 0
  %996 = vmatpush.bf16.msra.mxu0 0
  %997 = vmatpush.bf16.msra.mxu0 0
  %998 = vmatpush.bf16.msra.mxu0 %v989
  %999 = vmatmul.bf16.gmra.mxu0 %v986
  %v1000 = vpop.f32.mrf.mxu0
  %v1001 = vadd.f32 0.0, %v1000
  %v1002 = vpop.f32.mrf.mxu0
  %1003 = vdwg.mxu0
  %v1004 = vrcp.pop %v981
  %v1005 = vmul.f32 %v981, %v1004
  %v1006 = vsub.f32 1.0, %v1005
  %v1007 = vmul.f32 %v1004, %v1006
  %v1008 = vadd.f32 %v1004, %v1007
  %vm1009 = vweird.f32 %v981
  %vm1010 = vweird.f32 %v1004
  %vm1011 = vmor %vm1009, %vm1010
  %v1012 = vsel %vm1011, %v1004, %v1008
  %v1013 = vand.u32 2147483647, %v981
  %vm1014 = vcmp.eq.f32.partialorder %v1013, 8.507059e+37
  %v1015 = vand.u32 %v981, 2147483648
  %v1016 = vor.u32 1.1754944e-38, %v1015
  %v1017 = vsel %vm1014, %v1016, %v1012
  %v1018 = vmul.f32 %v1001, %v1017
  %v1019 = vpack.c.bf16 %v1018, %v1018
  %v1021 = vsel %vm392, %v1019, 0
  %1023 = vmatpush.bf16.msra.mxu0 0
  %1024 = vmatpush.bf16.msra.mxu0 0
  %1025 = vmatpush.bf16.msra.mxu0 0
  %1026 = vmatpush.bf16.msra.mxu0 0
  %1027 = vmatpush.bf16.msra.mxu0 0
  %1028 = vmatpush.bf16.msra.mxu0 0
  %1029 = vmatpush.bf16.msra.mxu0 %v667
  %1030 = vmatpush.bf16.msra.mxu0 %v666
  %1031 = vmatmul.bf16.gmra.mxu0 %v1021
  %v1032 = vpop.f32.mrf.mxu0
  %v1033 = vadd.f32 0.0, %v1032
  %v1034 = vpop.f32.mrf.mxu0
  %1035 = vdwg.mxu0
  %v1036 = vadd.f32 %v945, %v1033
  %1037 = vrot.lane.b32.xlu0 %v853, 32
  %v1038 = vpop.permute.xlu0 %1037
  %v1040 = vsel %vm392, %v1038, 0
  %1042 = vmatpush.bf16.xpose.msra.mxu0 0
  %1043 = vmatpush.bf16.xpose.msra.mxu0 0
  %1044 = vmatpush.bf16.xpose.msra.mxu0 0
  %1045 = vmatpush.bf16.xpose.msra.mxu0 0
  %1046 = vmatpush.bf16.xpose.msra.mxu0 0
  %1047 = vmatpush.bf16.xpose.msra.mxu0 0
  %1048 = vmatpush.bf16.xpose.msra.mxu0 0
  %1049 = vmatpush.bf16.xpose.msra.mxu0 %v956
  %1050 = vmatmul.bf16.gmra.mxu0 %v1040
  %v1051 = vpop.f32.mrf.mxu0
  %v1052 = vadd.f32 0.0, %v1051
  %v1053 = vpop.f32.mrf.mxu0
  %1054 = vdwg.mxu0
  %v1055 = vmul.f32 %v1052, 0.17677669
  %v1056 = vsel %vm372, %v1055, -1e+30
  %v1057 = vsel %vm414, %v1056, -inf
  %1058 = vmax.xlane.f32.xlu0 %v1057
  %v1059 = vpop.xlane.xlu0 %1058
  %v1060 = vsub.f32 %v1056, %v1059
  %v1061 = vmul.f32 %v1060, 1.442695
  %v1062 = vpow.pop %v1061
  %v1063 = vsel %vm414, %v1062, 0.0
  %1064 = vadd.xlane.f32.xlu0 %v1063
  %v1065 = vpop.xlane.xlu0 %1064
  %v1066 = vpack.c.bf16 %v1062, %v1062
  %v1068 = vsel %vm414, %v1066, 0
  %1070 = vmatpush.bf16.msra.mxu0 0
  %1071 = vmatpush.bf16.msra.mxu0 0
  %1072 = vmatpush.bf16.msra.mxu0 0
  %1073 = vmatpush.bf16.msra.mxu0 0
  %1074 = vmatpush.bf16.msra.mxu0 0
  %1075 = vmatpush.bf16.msra.mxu0 0
  %1076 = vmatpush.bf16.msra.mxu0 0
  %1077 = vmatpush.bf16.msra.mxu0 %v989
  %1078 = vmatmul.bf16.gmra.mxu0 %v1068
  %v1079 = vpop.f32.mrf.mxu0
  %v1080 = vadd.f32 0.0, %v1079
  %v1081 = vpop.f32.mrf.mxu0
  %1082 = vdwg.mxu0
  %v1083 = vrcp.pop %v1065
  %v1084 = vmul.f32 %v1065, %v1083
  %v1085 = vsub.f32 1.0, %v1084
  %v1086 = vmul.f32 %v1083, %v1085
  %v1087 = vadd.f32 %v1083, %v1086
  %vm1088 = vweird.f32 %v1065
  %vm1089 = vweird.f32 %v1083
  %vm1090 = vmor %vm1088, %vm1089
  %v1091 = vsel %vm1090, %v1083, %v1087
  %v1092 = vand.u32 2147483647, %v1065
  %vm1093 = vcmp.eq.f32.partialorder %v1092, 8.507059e+37
  %v1094 = vand.u32 %v1065, 2147483648
  %v1095 = vor.u32 1.1754944e-38, %v1094
  %v1096 = vsel %vm1093, %v1095, %v1091
  %v1097 = vmul.f32 %v1080, %v1096
  %v1098 = vpack.c.bf16 %v1097, %v1097
  %v1100 = vsel %vm392, %v1098, 0
  %1102 = vmatpush.bf16.msra.mxu0 0
  %1103 = vmatpush.bf16.msra.mxu0 0
  %1104 = vmatpush.bf16.msra.mxu0 0
  %1105 = vmatpush.bf16.msra.mxu0 0
  %1106 = vmatpush.bf16.msra.mxu0 0
  %1107 = vmatpush.bf16.msra.mxu0 0
  %1108 = vmatpush.bf16.msra.mxu0 %v758
  %1109 = vmatpush.bf16.msra.mxu0 %v757
  %1110 = vmatmul.bf16.gmra.mxu0 %v1100
  %v1111 = vpop.f32.mrf.mxu0
  %v1112 = vadd.f32 0.0, %v1111
  %v1113 = vpop.f32.mrf.mxu0
  %1114 = vdwg.mxu0
  %v1115 = vadd.f32 %v1036, %v1112
  %v1116 = vadd.f32 %v38, %v777
  %v1117 = vadd.f32 %v39, %v1115
  %v1118 = vmul.f32 %v1116, %v1116
  %v1119 = vmul.f32 %v1117, %v1117
  %1120 = vadd.xlane.f32.xlu0 %v1118
  %v1121 = vpop.xlane.xlu0 %1120
  %1122 = vadd.xlane.f32.xlu0 %v1119
  %v1123 = vpop.xlane.xlu0 %1122
  %v1124 = vmul.f32 %v1121, %v52
  %v1125 = vmul.f32 %v1123, %v52
  %v1126 = vadd.f32 %v1124, 1e-06
  %v1127 = vadd.f32 %v1125, 1e-06
  %v1128 = vrsqrt.pop %v1126
  %v1129 = vmul.f32 %v1128, %v1126
  %v1130 = vmul.f32 %v1129, %v1128
  %v1131 = vmul.f32 0.5, %v1130
  %v1132 = vsub.f32 1.5, %v1131
  %v1133 = vmul.f32 %v1128, %v1132
  %vm1134 = vweird.f32 %v1126
  %vm1135 = vweird.f32 %v1128
  %vm1136 = vmor %vm1134, %vm1135
  %v1137 = vsel %vm1136, %v1128, %v1133
  %v1138 = vrsqrt.pop %v1127
  %v1139 = vmul.f32 %v1138, %v1127
  %v1140 = vmul.f32 %v1139, %v1138
  %v1141 = vmul.f32 0.5, %v1140
  %v1142 = vsub.f32 1.5, %v1141
  %v1143 = vmul.f32 %v1138, %v1142
  %vm1144 = vweird.f32 %v1127
  %vm1145 = vweird.f32 %v1138
  %vm1146 = vmor %vm1144, %vm1145
  %v1147 = vsel %vm1146, %v1138, %v1143
  %v1148 = vmul.f32 %v1116, %v1137
  %v1149 = vmul.f32 %v1117, %v1147
  %v1150 = vld [vmem:[%s5] sm:$0x1]
  %v1152 = vperm.slane %v1150, 0
  %v1154 = vmul.f32 %v1148, %v1152
  %v1155 = vmul.f32 %v1149, %v1152
  %v1156 = vpack.c.bf16 %v1155, %v1154
  %v1157 = vld [vmem:[%s6] sm:$0xff]
  %v1158 = vld [vmem:[%s6 + $0x8] sm:$0xff]
  %v1159 = vld [vmem:[%s6 + $0x10] sm:$0xff]
  %v1160 = vld [vmem:[%s6 + $0x18] sm:$0xff]
  %v1161 = vld [vmem:[%s6 + $0x20] sm:$0xff]
  %v1162 = vld [vmem:[%s6 + $0x28] sm:$0xff]
  %v1163 = vld [vmem:[%s6 + $0x30] sm:$0xff]
  %v1164 = vld [vmem:[%s6 + $0x38] sm:$0xff]
  %v1165 = vld [vmem:[%s6 + $0x40] sm:$0xff]
  %v1166 = vld [vmem:[%s6 + $0x48] sm:$0xff]
  %v1167 = vld [vmem:[%s6 + $0x50] sm:$0xff]
  %v1168 = vld [vmem:[%s6 + $0x58] sm:$0xff]
  %v1169 = vld [vmem:[%s6 + $0x60] sm:$0xff]
  %v1170 = vld [vmem:[%s6 + $0x68] sm:$0xff]
  %v1171 = vld [vmem:[%s6 + $0x70] sm:$0xff]
  %v1172 = vld [vmem:[%s6 + $0x78] sm:$0xff]
  %v1173 = vld [vmem:[%s6 + $0x80] sm:$0xff]
  %v1174 = vld [vmem:[%s6 + $0x88] sm:$0xff]
  %v1175 = vld [vmem:[%s6 + $0x90] sm:$0xff]
  %v1176 = vld [vmem:[%s6 + $0x98] sm:$0xff]
  %v1177 = vld [vmem:[%s6 + $0xa0] sm:$0xff]
  %v1178 = vld [vmem:[%s6 + $0xa8] sm:$0xff]
  %v1179 = vld [vmem:[%s6 + $0xb0] sm:$0xff]
  %v1180 = vld [vmem:[%s6 + $0xb8] sm:$0xff]
  %v1181 = vld [vmem:[%s6 + $0xc0] sm:$0xff]
  %v1182 = vld [vmem:[%s6 + $0xc8] sm:$0xff]
  %v1183 = vld [vmem:[%s6 + $0xd0] sm:$0xff]
  %v1184 = vld [vmem:[%s6 + $0xd8] sm:$0xff]
  %v1185 = vld [vmem:[%s6 + $0xe0] sm:$0xff]
  %v1186 = vld [vmem:[%s6 + $0xe8] sm:$0xff]
  %v1187 = vld [vmem:[%s6 + $0xf0] sm:$0xff]
  %v1188 = vld [vmem:[%s6 + $0xf8] sm:$0xff]
  %v1221 = vunpack.c.l.b16 %v1157
  %v1222 = vunpack.c.h.b16 %v1157
  %v1223 = vunpack.c.l.b16 %v1158
  %v1224 = vunpack.c.h.b16 %v1158
  %v1225 = vunpack.c.l.b16 %v1159
  %v1226 = vunpack.c.h.b16 %v1159
  %v1227 = vunpack.c.l.b16 %v1160
  %v1228 = vunpack.c.h.b16 %v1160
  %v1229 = vunpack.c.l.b16 %v1161
  %v1230 = vunpack.c.h.b16 %v1161
  %v1231 = vunpack.c.l.b16 %v1162
  %v1232 = vunpack.c.h.b16 %v1162
  %v1233 = vunpack.c.l.b16 %v1163
  %v1234 = vunpack.c.h.b16 %v1163
  %v1235 = vunpack.c.l.b16 %v1164
  %v1236 = vunpack.c.h.b16 %v1164
  %v1237 = vunpack.c.l.b16 %v1165
  %v1238 = vunpack.c.h.b16 %v1165
  %v1239 = vunpack.c.l.b16 %v1166
  %v1240 = vunpack.c.h.b16 %v1166
  %v1241 = vunpack.c.l.b16 %v1167
  %v1242 = vunpack.c.h.b16 %v1167
  %v1243 = vunpack.c.l.b16 %v1168
  %v1244 = vunpack.c.h.b16 %v1168
  %v1245 = vunpack.c.l.b16 %v1169
  %v1246 = vunpack.c.h.b16 %v1169
  %v1247 = vunpack.c.l.b16 %v1170
  %v1248 = vunpack.c.h.b16 %v1170
  %v1249 = vunpack.c.l.b16 %v1171
  %v1250 = vunpack.c.h.b16 %v1171
  %v1251 = vunpack.c.l.b16 %v1172
  %v1252 = vunpack.c.h.b16 %v1172
  %v1253 = vunpack.c.l.b16 %v1173
  %v1254 = vunpack.c.h.b16 %v1173
  %v1255 = vunpack.c.l.b16 %v1174
  %v1256 = vunpack.c.h.b16 %v1174
  %v1257 = vunpack.c.l.b16 %v1175
  %v1258 = vunpack.c.h.b16 %v1175
  %v1259 = vunpack.c.l.b16 %v1176
  %v1260 = vunpack.c.h.b16 %v1176
  %v1261 = vunpack.c.l.b16 %v1177
  %v1262 = vunpack.c.h.b16 %v1177
  %v1263 = vunpack.c.l.b16 %v1178
  %v1264 = vunpack.c.h.b16 %v1178
  %v1265 = vunpack.c.l.b16 %v1179
  %v1266 = vunpack.c.h.b16 %v1179
  %v1267 = vunpack.c.l.b16 %v1180
  %v1268 = vunpack.c.h.b16 %v1180
  %v1269 = vunpack.c.l.b16 %v1181
  %v1270 = vunpack.c.h.b16 %v1181
  %v1271 = vunpack.c.l.b16 %v1182
  %v1272 = vunpack.c.h.b16 %v1182
  %v1273 = vunpack.c.l.b16 %v1183
  %v1274 = vunpack.c.h.b16 %v1183
  %v1275 = vunpack.c.l.b16 %v1184
  %v1276 = vunpack.c.h.b16 %v1184
  %v1277 = vunpack.c.l.b16 %v1185
  %v1278 = vunpack.c.h.b16 %v1185
  %v1279 = vunpack.c.l.b16 %v1186
  %v1280 = vunpack.c.h.b16 %v1186
  %v1281 = vunpack.c.l.b16 %v1187
  %v1282 = vunpack.c.h.b16 %v1187
  %v1283 = vunpack.c.l.b16 %v1188
  %v1284 = vunpack.c.h.b16 %v1188
  %v1285 = vpack.c.b16 %v1225, %v1221
  %v1286 = vpack.c.b16 %v1226, %v1222
  %v1287 = vpack.c.b16 %v1227, %v1223
  %v1288 = vpack.c.b16 %v1228, %v1224
  %v1289 = vpack.c.b16 %v1233, %v1229
  %v1290 = vpack.c.b16 %v1234, %v1230
  %v1291 = vpack.c.b16 %v1235, %v1231
  %v1292 = vpack.c.b16 %v1236, %v1232
  %v1293 = vpack.c.b16 %v1241, %v1237
  %v1294 = vpack.c.b16 %v1242, %v1238
  %v1295 = vpack.c.b16 %v1243, %v1239
  %v1296 = vpack.c.b16 %v1244, %v1240
  %v1297 = vpack.c.b16 %v1249, %v1245
  %v1298 = vpack.c.b16 %v1250, %v1246
  %v1299 = vpack.c.b16 %v1251, %v1247
  %v1300 = vpack.c.b16 %v1252, %v1248
  %v1301 = vpack.c.b16 %v1257, %v1253
  %v1302 = vpack.c.b16 %v1258, %v1254
  %v1303 = vpack.c.b16 %v1259, %v1255
  %v1304 = vpack.c.b16 %v1260, %v1256
  %v1305 = vpack.c.b16 %v1265, %v1261
  %v1306 = vpack.c.b16 %v1266, %v1262
  %v1307 = vpack.c.b16 %v1267, %v1263
  %v1308 = vpack.c.b16 %v1268, %v1264
  %v1309 = vpack.c.b16 %v1273, %v1269
  %v1310 = vpack.c.b16 %v1274, %v1270
  %v1311 = vpack.c.b16 %v1275, %v1271
  %v1312 = vpack.c.b16 %v1276, %v1272
  %v1313 = vpack.c.b16 %v1281, %v1277
  %v1314 = vpack.c.b16 %v1282, %v1278
  %v1315 = vpack.c.b16 %v1283, %v1279
  %v1316 = vpack.c.b16 %v1284, %v1280
  %1349 = vmatpush.bf16.msra.mxu0 %v1313
  %1350 = vmatpush.bf16.msra.mxu0 %v1309
  %1351 = vmatpush.bf16.msra.mxu0 %v1305
  %1352 = vmatpush.bf16.msra.mxu0 %v1301
  %1353 = vmatpush.bf16.msra.mxu0 %v1297
  %1354 = vmatpush.bf16.msra.mxu0 %v1293
  %1355 = vmatpush.bf16.msra.mxu0 %v1289
  %1356 = vmatpush.bf16.msra.mxu0 %v1285
  %1357 = vmatmul.bf16.gmra.mxu0 %v1156
  %v1358 = vpop.f32.mrf.mxu0
  %v1359 = vadd.f32 0.0, %v1358
  %v1360 = vpop.f32.mrf.mxu0
  %v1361 = vadd.f32 0.0, %v1360
  %1362 = vdwg.mxu0
  %1363 = vmatpush.bf16.msra.mxu0 %v1314
  %1364 = vmatpush.bf16.msra.mxu0 %v1310
  %1365 = vmatpush.bf16.msra.mxu0 %v1306
  %1366 = vmatpush.bf16.msra.mxu0 %v1302
  %1367 = vmatpush.bf16.msra.mxu0 %v1298
  %1368 = vmatpush.bf16.msra.mxu0 %v1294
  %1369 = vmatpush.bf16.msra.mxu0 %v1290
  %1370 = vmatpush.bf16.msra.mxu0 %v1286
  %1371 = vmatmul.bf16.gmra.mxu0 %v1156
  %v1372 = vpop.f32.mrf.mxu0
  %v1373 = vadd.f32 0.0, %v1372
  %v1374 = vpop.f32.mrf.mxu0
  %v1375 = vadd.f32 0.0, %v1374
  %1376 = vdwg.mxu0
  %1377 = vmatpush.bf16.msra.mxu0 %v1315
  %1378 = vmatpush.bf16.msra.mxu0 %v1311
  %1379 = vmatpush.bf16.msra.mxu0 %v1307
  %1380 = vmatpush.bf16.msra.mxu0 %v1303
  %1381 = vmatpush.bf16.msra.mxu0 %v1299
  %1382 = vmatpush.bf16.msra.mxu0 %v1295
  %1383 = vmatpush.bf16.msra.mxu0 %v1291
  %1384 = vmatpush.bf16.msra.mxu0 %v1287
  %1385 = vmatmul.bf16.gmra.mxu0 %v1156
  %v1386 = vpop.f32.mrf.mxu0
  %v1387 = vadd.f32 0.0, %v1386
  %v1388 = vpop.f32.mrf.mxu0
  %v1389 = vadd.f32 0.0, %v1388
  %1390 = vdwg.mxu0
  %1391 = vmatpush.bf16.msra.mxu0 %v1316
  %1392 = vmatpush.bf16.msra.mxu0 %v1312
  %1393 = vmatpush.bf16.msra.mxu0 %v1308
  %1394 = vmatpush.bf16.msra.mxu0 %v1304
  %1395 = vmatpush.bf16.msra.mxu0 %v1300
  %1396 = vmatpush.bf16.msra.mxu0 %v1296
  %1397 = vmatpush.bf16.msra.mxu0 %v1292
  %1398 = vmatpush.bf16.msra.mxu0 %v1288
  %1399 = vmatmul.bf16.gmra.mxu0 %v1156
  %v1400 = vpop.f32.mrf.mxu0
  %v1401 = vadd.f32 0.0, %v1400
  %v1402 = vpop.f32.mrf.mxu0
  %v1403 = vadd.f32 0.0, %v1402
  %1404 = vdwg.mxu0
  %v1405 = vmul.f32 %v1359, 0.5
  %v1406 = vmul.f32 %v1373, 0.5
  %v1407 = vmul.f32 %v1361, 0.5
  %v1408 = vmul.f32 %v1375, 0.5
  %v1409 = vtanh.pop %v1405
  %v1410 = vtanh.pop %v1406
  %v1411 = vtanh.pop %v1407
  %v1412 = vtanh.pop %v1408
  %v1413 = vadd.f32 %v1409, 1.0
  %v1414 = vadd.f32 %v1410, 1.0
  %v1415 = vadd.f32 %v1411, 1.0
  %v1416 = vadd.f32 %v1412, 1.0
  %v1417 = vmul.f32 %v1413, 0.5
  %v1418 = vmul.f32 %v1414, 0.5
  %v1419 = vmul.f32 %v1415, 0.5
  %v1420 = vmul.f32 %v1416, 0.5
  %v1421 = vmul.f32 %v1359, %v1417
  %v1422 = vmul.f32 %v1373, %v1418
  %v1423 = vmul.f32 %v1361, %v1419
  %v1424 = vmul.f32 %v1375, %v1420
  %v1425 = vmul.f32 %v1421, %v1387
  %v1426 = vmul.f32 %v1422, %v1401
  %v1427 = vmul.f32 %v1423, %v1389
  %v1428 = vmul.f32 %v1424, %v1403
  %v1429 = vpack.c.bf16 %v1427, %v1425
  %v1430 = vpack.c.bf16 %v1428, %v1426
  %v1431 = vld [vmem:[%s7] sm:$0xf]
  %v1432 = vld [vmem:[%s7 + $0x4] sm:$0xf]
  %v1433 = vld [vmem:[%s7 + $0x8] sm:$0xf]
  %v1434 = vld [vmem:[%s7 + $0xc] sm:$0xf]
  %v1435 = vld [vmem:[%s7 + $0x10] sm:$0xf]
  %v1436 = vld [vmem:[%s7 + $0x14] sm:$0xf]
  %v1437 = vld [vmem:[%s7 + $0x18] sm:$0xf]
  %v1438 = vld [vmem:[%s7 + $0x1c] sm:$0xf]
  %v1439 = vld [vmem:[%s7 + $0x20] sm:$0xf]
  %v1440 = vld [vmem:[%s7 + $0x24] sm:$0xf]
  %v1441 = vld [vmem:[%s7 + $0x28] sm:$0xf]
  %v1442 = vld [vmem:[%s7 + $0x2c] sm:$0xf]
  %v1443 = vld [vmem:[%s7 + $0x30] sm:$0xf]
  %v1444 = vld [vmem:[%s7 + $0x34] sm:$0xf]
  %v1445 = vld [vmem:[%s7 + $0x38] sm:$0xf]
  %v1446 = vld [vmem:[%s7 + $0x3c] sm:$0xf]
  %v1447 = vld [vmem:[%s7 + $0x40] sm:$0xf]
  %v1448 = vld [vmem:[%s7 + $0x44] sm:$0xf]
  %v1449 = vld [vmem:[%s7 + $0x48] sm:$0xf]
  %v1450 = vld [vmem:[%s7 + $0x4c] sm:$0xf]
  %v1451 = vld [vmem:[%s7 + $0x50] sm:$0xf]
  %v1452 = vld [vmem:[%s7 + $0x54] sm:$0xf]
  %v1453 = vld [vmem:[%s7 + $0x58] sm:$0xf]
  %v1454 = vld [vmem:[%s7 + $0x5c] sm:$0xf]
  %v1455 = vld [vmem:[%s7 + $0x60] sm:$0xf]
  %v1456 = vld [vmem:[%s7 + $0x64] sm:$0xf]
  %v1457 = vld [vmem:[%s7 + $0x68] sm:$0xf]
  %v1458 = vld [vmem:[%s7 + $0x6c] sm:$0xf]
  %v1459 = vld [vmem:[%s7 + $0x70] sm:$0xf]
  %v1460 = vld [vmem:[%s7 + $0x74] sm:$0xf]
  %v1461 = vld [vmem:[%s7 + $0x78] sm:$0xf]
  %v1462 = vld [vmem:[%s7 + $0x7c] sm:$0xf]
  %v1495 = vunpack.c.l.b16 %v1431
  %v1496 = vunpack.c.l.b16 %v1432
  %v1497 = vunpack.c.l.b16 %v1433
  %v1498 = vunpack.c.l.b16 %v1434
  %v1499 = vunpack.c.l.b16 %v1435
  %v1500 = vunpack.c.l.b16 %v1436
  %v1501 = vunpack.c.l.b16 %v1437
  %v1502 = vunpack.c.l.b16 %v1438
  %v1503 = vunpack.c.l.b16 %v1439
  %v1504 = vunpack.c.l.b16 %v1440
  %v1505 = vunpack.c.l.b16 %v1441
  %v1506 = vunpack.c.l.b16 %v1442
  %v1507 = vunpack.c.l.b16 %v1443
  %v1508 = vunpack.c.l.b16 %v1444
  %v1509 = vunpack.c.l.b16 %v1445
  %v1510 = vunpack.c.l.b16 %v1446
  %v1511 = vunpack.c.l.b16 %v1447
  %v1512 = vunpack.c.l.b16 %v1448
  %v1513 = vunpack.c.l.b16 %v1449
  %v1514 = vunpack.c.l.b16 %v1450
  %v1515 = vunpack.c.l.b16 %v1451
  %v1516 = vunpack.c.l.b16 %v1452
  %v1517 = vunpack.c.l.b16 %v1453
  %v1518 = vunpack.c.l.b16 %v1454
  %v1519 = vunpack.c.l.b16 %v1455
  %v1520 = vunpack.c.l.b16 %v1456
  %v1521 = vunpack.c.l.b16 %v1457
  %v1522 = vunpack.c.l.b16 %v1458
  %v1523 = vunpack.c.l.b16 %v1459
  %v1524 = vunpack.c.l.b16 %v1460
  %v1525 = vunpack.c.l.b16 %v1461
  %v1526 = vunpack.c.l.b16 %v1462
  %v1527 = vpack.c.b16 %v1496, %v1495
  %v1528 = vpack.c.b16 %v1498, %v1497
  %v1529 = vpack.c.b16 %v1500, %v1499
  %v1530 = vpack.c.b16 %v1502, %v1501
  %v1531 = vpack.c.b16 %v1504, %v1503
  %v1532 = vpack.c.b16 %v1506, %v1505
  %v1533 = vpack.c.b16 %v1508, %v1507
  %v1534 = vpack.c.b16 %v1510, %v1509
  %v1535 = vpack.c.b16 %v1512, %v1511
  %v1536 = vpack.c.b16 %v1514, %v1513
  %v1537 = vpack.c.b16 %v1516, %v1515
  %v1538 = vpack.c.b16 %v1518, %v1517
  %v1539 = vpack.c.b16 %v1520, %v1519
  %v1540 = vpack.c.b16 %v1522, %v1521
  %v1541 = vpack.c.b16 %v1524, %v1523
  %v1542 = vpack.c.b16 %v1526, %v1525
  %1559 = vmatpush.bf16.msra.mxu0 %v1534
  %1560 = vmatpush.bf16.msra.mxu0 %v1533
  %1561 = vmatpush.bf16.msra.mxu0 %v1532
  %1562 = vmatpush.bf16.msra.mxu0 %v1531
  %1563 = vmatpush.bf16.msra.mxu0 %v1530
  %1564 = vmatpush.bf16.msra.mxu0 %v1529
  %1565 = vmatpush.bf16.msra.mxu0 %v1528
  %1566 = vmatpush.bf16.msra.mxu0 %v1527
  %1567 = vmatmul.bf16.gmra.mxu0 %v1429
  %v1568 = vpop.f32.mrf.mxu0
  %v1569 = vadd.f32 0.0, %v1568
  %v1570 = vpop.f32.mrf.mxu0
  %v1571 = vadd.f32 0.0, %v1570
  %1572 = vdwg.mxu0
  %1573 = vmatpush.bf16.msra.mxu0 %v1542
  %1574 = vmatpush.bf16.msra.mxu0 %v1541
  %1575 = vmatpush.bf16.msra.mxu0 %v1540
  %1576 = vmatpush.bf16.msra.mxu0 %v1539
  %1577 = vmatpush.bf16.msra.mxu0 %v1538
  %1578 = vmatpush.bf16.msra.mxu0 %v1537
  %1579 = vmatpush.bf16.msra.mxu0 %v1536
  %1580 = vmatpush.bf16.msra.mxu0 %v1535
  %1581 = vmatmul.bf16.gmra.mxu0 %v1430
  %v1582 = vpop.f32.mrf.mxu0
  %v1583 = vadd.f32 %v1569, %v1582
  %v1584 = vpop.f32.mrf.mxu0
  %v1585 = vadd.f32 %v1571, %v1584
  %1586 = vdwg.mxu0
  %v1587 = vadd.f32 %v1116, %v1583
  %v1588 = vadd.f32 %v1117, %v1585
  %v1589 = vpack.c.bf16 %v1587, %v1587
  %v1590 = vpack.c.bf16 %v1588, %v1588
  %1591 = vst [vmem:[%s10] sm:$0xf] %v1589
  %1592 = vst [vmem:[%s10 + $0x4] sm:$0xf] %v1590
  // Predicated region
  $region42: #{fp8_qwen2_forward.5} parent=0 // pred_check
    _
  $region43: #{fp8_qwen2_forward.5} parent=0 // pred_check_branch
    %1594 = sbr.rel (0) target = $region45
  $region44: #{fp8_qwen2_forward.5} parent=0 // pred_region
    _
  $region45: #{fp8_qwen2_forward.5} parent=0 // pred_fallthru
    _
  // Predicated region
  $region46: #{fp8_qwen2_forward.5} parent=0 // pred_check
    _
  $region47: #{fp8_qwen2_forward.5} parent=0 // pred_check_branch
    %1596 = sbr.rel (0) target = $region49
  $region48: #{fp8_qwen2_forward.5} parent=0 // pred_region
    _
  $region49: #{fp8_qwen2_forward.5} parent=0 // pred_fallthru
    _

</llo_original>
